<compile_context>
chip_gen: v7x
topology: tpu7x:2x2x1
jax: 0.10.0
libtpu: 0.0.40
codegen_flags: <defaults>
</compile_context>

<pallas_src>
import functools
import math

import jax
import jax.numpy as jnp
from jax import lax
from jax.experimental import pallas as pl
from jax.experimental.pallas import tpu as pltpu

SCALE = 2  # kernel specialized for scale_factor=2, mode='nearest'


def _upsample_rows_kernel(x_ref, o_ref, *, w, g, strip, n_strips):
    """x_ref: (Bm, g*w) = g consecutive input rows per block-row.
    o_ref: (Bm, 4*g*w) = [rep(r0), rep(r0), ..., rep(r_{g-1}), rep(r_{g-1})]."""
    gw2 = 2 * g * w

    def body(s, carry):
        r0 = pl.multiple_of(s * strip, strip)
        x = x_ref[pl.ds(r0, strip), :]              # (strip, g*w)
        # Nearest-2x along W == per-element lane doubling; correct for all g
        # folded rows at once since row boundaries are preserved.
        # (Note: for 16-bit dtypes this could become pack_elementwise+bitcast.)
        rep = jnp.repeat(x, SCALE, axis=1)          # (strip, 2*g*w)
        if g == 1 and gw2 % 128 == 0:
            # Lane-aligned halves: duplicate the output row pair by re-storing
            # the same vregs twice (unmasked full-width stores, no extra value).
            o_ref[pl.ds(r0, strip), pl.ds(0, gw2)] = rep
            o_ref[pl.ds(r0, strip), pl.ds(gw2, gw2)] = rep
        else:
            # Per-input-row pair duplication rebuilt in-register so the single
            # store is 4*g*w wide (lane-dense whenever g*w % 32 == 0).
            parts = []
            for k in range(g):
                seg = rep[:, 2 * k * w:2 * (k + 1) * w]   # (strip, 2w)
                parts.append(seg)
                parts.append(seg)
            o_ref[pl.ds(r0, strip), :] = jnp.concatenate(parts, axis=1)
        return carry

    lax.fori_loop(0, n_strips, body, None,
                  unroll=(n_strips if n_strips <= 4 else 4))


def _vmem_limit_bytes():
    """Generation-aware scoped-VMEM request: ~40 MiB on v7x, 64 MiB on v5e/v6e."""
    phys = 128 * 1024 * 1024
    try:
        info = pltpu.get_tpu_info()
        phys = int(getattr(info, "vmem_capacity_bytes", phys)) or phys
    except Exception:
        pass
    return int(min(64 * 1024 * 1024, (phys * 5) // 8))


def _choose_row_fold(m, w):
    """Smallest g (dividing m) so the 4*g*w output width is a multiple of 128."""
    if (4 * w) % 128 == 0:
        return 1
    g = 32 // math.gcd(w, 32)
    if g > 1 and m % g == 0:
        return g
    return 1  # fall back to the masked (narrow-store) path


def _choose_tiling(m_rows, row_elems, itemsize, builds_full_width, vmem_limit):
    """(block_rows, strip_rows) for the (m_rows, row_elems)->(m_rows, 4*row_elems) kernel."""
    sub = 8 * max(1, 4 // itemsize)                 # sublanes per vreg row-group
    lg = lambda n: (n + 127) // 128                 # 128-wide lane groups
    lane_groups = lg(row_elems) + lg(2 * row_elems)
    if builds_full_width:
        lane_groups += lg(4 * row_elems)            # concat value also lives in vregs
    # ~32 live vregs per strip (of 64); leaves headroom for unroll overlap.
    strip = sub * max(1, 32 // lane_groups)
    strip = min(strip, ((m_rows + sub - 1) // sub) * sub)
    strip = max(strip, sub)

    pad = lambda n: ((n + 127) // 128) * 128
    padded_row_bytes = (pad(row_elems) + pad(4 * row_elems)) * itemsize
    # Double-buffered in+out footprint must stay under vmem_limit (~8 MiB headroom).
    per_copy_budget = max(2 * 1024 * 1024, (vmem_limit - 8 * 1024 * 1024) // 2)
    rows_vmem_cap = max(strip, per_copy_budget // padded_row_bytes)
    # ~4 MiB of real input per grid step (~20 MiB HBM traffic) so the ~0.35us
    # per-step pipeline overhead is negligible even at v7x's 3.2 TB/s.
    rows_target = max(strip, (4 * 1024 * 1024) // max(1, row_elems * itemsize))
    block = min(rows_target, rows_vmem_cap)
    block = max(strip, (block // strip) * strip)
    block = min(block, ((m_rows + strip - 1) // strip) * strip)

    # Guarantee >= 2 grid blocks whenever the data allows so
    # dimension_semantics=("parallel",) can shard across both v7x TensorCores.
    if m_rows > strip and block >= m_rows:
        half = (m_rows + 1) // 2
        block = max(strip, ((half + strip - 1) // strip) * strip)
    return block, strip


def upsample_nearest(x: jax.Array, scale: int = SCALE) -> jax.Array:
    """Nearest-neighbor 2x upsampling of an NCHW tensor via a Pallas kernel."""
    assert scale == SCALE, "kernel is specialized for scale_factor=2"
    n, c, h, w = x.shape
    m = n * c * h
    itemsize = jnp.dtype(x.dtype).itemsize

    g = _choose_row_fold(m, w)
    m_rows = m // g
    row_elems = g * w
    vmem_limit = _vmem_limit_bytes()
    builds_full_width = not (g == 1 and (2 * w) % 128 == 0)
    block, strip = _choose_tiling(m_rows, row_elems, itemsize,
                                  builds_full_width, vmem_limit)
    n_strips = block // strip
    grid = (pl.cdiv(m_rows, block),)

    x2 = x.reshape(m_rows, row_elems)               # free for contiguous NCHW
    kernel = functools.partial(_upsample_rows_kernel,
                               w=w, g=g, strip=strip, n_strips=n_strips)

    out2 = pl.pallas_call(
        kernel,
        out_shape=jax.ShapeDtypeStruct((m_rows, 4 * row_elems), x.dtype),
        grid=grid,
        in_specs=[pl.BlockSpec((block, row_elems), lambda i: (i, 0))],
        out_specs=pl.BlockSpec((block, 4 * row_elems), lambda i: (i, 0)),
        compiler_params=pltpu.CompilerParams(
            dimension_semantics=("parallel",),
            vmem_limit_bytes=vmem_limit,
        ),
        cost_estimate=pl.CostEstimate(
            flops=0,
            transcendentals=0,
            bytes_accessed=5 * m * w * itemsize,    # read 1x, write 4x
        ),
    )(x2)

    # (M/G, 4*G*W) -> (N, C, 2H, 2W) is a pure, data-movement-free reshape.
    return out2.reshape(n, c, SCALE * h, SCALE * w)


if __name__ == "__main__":
    key = jax.random.PRNGKey(0)
    # Small NCHW input consistent with the module's use (image tensor).
    x = jax.random.normal(key, (2, 4, 16, 16), dtype=jnp.float32)

    out = jax.jit(upsample_nearest)(x)
    out = jax.block_until_ready(out)

    # Reference: nearest-neighbor upsample == repeat along H and W.
    ref = jnp.repeat(jnp.repeat(x, SCALE, axis=2), SCALE, axis=3)
    assert out.shape == (2, 4, 32, 32), out.shape
    assert out.dtype == x.dtype
    assert bool(jnp.array_equal(out, ref)), "mismatch vs reference"

    print("KERNEL_OK")
</pallas_src>

<mosaic_0001>
module attributes {stable_mosaic.version = 11 : i64} {
  func.func @_upsample_rows_kernel(%arg0: i32, %arg1: memref<64x32xf32, #tpu.memory_space<vmem>>, %arg2: memref<64x128xf32, #tpu.memory_space<vmem>>) attributes {dimension_semantics = [#tpu.dimension_semantics<parallel>], iteration_bounds = array<i64: 1>, scalar_prefetch = 0 : i64, scratch_operands = 0 : i64, tpu.core_type = #tpu.core_type<tc>, window_params = [{transform_indices = @transform_0, window_bounds = array<i64: 64, 32>}, {transform_indices = @transform_1, window_bounds = array<i64: 64, 128>}]} {
    %c0_i32 = arith.constant 0 : i32
    %c64_i32 = arith.constant 64 : i32
    %0 = arith.muli %c0_i32, %c64_i32 : i32
    %1 = tpu.assume_multiple %0, 64 : i32
    %2 = arith.index_cast %1 : i32 to index
    %c0 = arith.constant 0 : index
    %3 = vector.load %arg1[%2, %c0] : memref<64x32xf32, #tpu.memory_space<vmem>>, vector<64x32xf32>
    %4 = vector.shape_cast %3 : vector<64x32xf32> to vector<64x32x1xf32>
    %5 = vector.broadcast %4 : vector<64x32x1xf32> to vector<64x32x2xf32>
    %6 = vector.shape_cast %5 : vector<64x32x2xf32> to vector<64x64xf32>
    %7 = vector.extract_strided_slice %6 {offsets = [0, 0], sizes = [64, 32], strides = [1, 1]} : vector<64x64xf32> to vector<64x32xf32>
    %8 = vector.extract_strided_slice %6 {offsets = [0, 32], sizes = [64, 32], strides = [1, 1]} : vector<64x64xf32> to vector<64x32xf32>
    %9 = tpu.concatenate %7, %7, %8, %8 in 1 : vector<64x32xf32>, vector<64x32xf32>, vector<64x32xf32>, vector<64x32xf32> -> vector<64x128xf32>
    %10 = arith.index_cast %1 : i32 to index
    %c0_0 = arith.constant 0 : index
    %11 = vector.load %arg2[%10, %c0_0] : memref<64x128xf32, #tpu.memory_space<vmem>>, vector<64x128xf32>
    tpu.vector_store %arg2[%10, %c0_0], %9 {strides = array<i32>} : memref<64x128xf32, #tpu.memory_space<vmem>>, vector<64x128xf32>,
    %c1_i32 = arith.constant 1 : i32
    return
  }
  func.func @transform_0(%arg0: i32) -> (i32, i32) {
    %c0_i32 = arith.constant 0 : i32
    %c0_i32_0 = arith.constant 0 : i32
    return %arg0, %c0_i32 : i32, i32
  }
  func.func @transform_1(%arg0: i32) -> (i32, i32) {
    %c0_i32 = arith.constant 0 : i32
    %c0_i32_0 = arith.constant 0 : i32
    return %arg0, %c0_i32 : i32, i32
  }
}

</mosaic_0001>

<llo_original>
// kernel: upsample_nearest.1
$region0: #{upsample_nearest.1}
  #allocation0 [shape = 'u32[]', space=smem, size = 0x4, offset = 0x4, fixed_abs, tag = 'smem constant byte address 0x4 - core index']
  #allocation1 [shape = 'u32[144,128]{1,0:T(1,128)}', space=vmem, size = 0x12000, scoped, tag = 'internal scratch']
  %s0 = inlined_call_operand.hbm [shape: f32[64,32], index: 0, kind: input, shape index: {}]
  %s1 = inlined_call_operand.hbm [shape: f32[64,128], index: 1, kind: output, shape index: {}]
  %s2 = sld [smem:[#allocation0]]
  $region18: #{upsample_nearest.1} parent=0
    _
  %s4 = ssub.s32 1, %s2
  %s5 = scalar_select 0, %s4, %s2
  $region1: #{upsample_nearest.1} parent=0
    #allocation2 [shape = 'u8[32768]{0}', space=vmem, size = 0x8000, scoped, tag = 'input window, operand 0, single buffered']
    #allocation3 [shape = 's32[1]{0}', space=sflag, size = 0x4, scoped, tag = 'scoped memory for upsample_nearest.1']
    #allocation4 [shape = 's32[1]{0}', space=sflag, size = 0x4, scoped, tag = 'scoped memory for upsample_nearest.1']
    #allocation5 [shape = 'u8[32768]{0}', space=vmem, size = 0x8000, scoped, tag = 'output window, operand 0, single buffered']
    %6 = vsyncpa [#allocation3], 0
    %7 = vsyncpa [#allocation4], 0
    // Predicated region
    $region2: #{upsample_nearest.1} parent=1 // pred_check
      _
    $region3: #{upsample_nearest.1} parent=1 // pred_check_branch
      %9 = sbr.rel (0) target = $region5
    $region4: #{upsample_nearest.1} parent=1 // pred_region
      %s11 = ssub.s32 1024, 1024
      %12 = vsyncadd [#allocation3], %s11
      %s13 = sshll.u32 [#allocation2], 4
      %s14 = int_to_ptr.vmem [resolvable:$true] %s13
      %19 = dma.hbm_to_vmem [thread:$0]  %s0, 1024, %s14, [#allocation3], 128, 128, 8
    $region5: #{upsample_nearest.1} parent=1 // pred_fallthru
      _
    // Predicated region
    $region6: #{upsample_nearest.1} parent=1 // pred_check
      _
    $region7: #{upsample_nearest.1} parent=1 // pred_check_branch
      %21 = sbr.rel (0) target = $region9
    $region8: #{upsample_nearest.1} parent=1 // pred_region
      %22 = dma.done [#allocation3], 1024
    $region9: #{upsample_nearest.1} parent=1 // pred_fallthru
      _
    %v23 = vld [vmem:[#allocation2] sm:$0xff]
    %v24 = vld [vmem:[#allocation2 + $0x8] sm:$0xff]
    %v25 = vld [vmem:[#allocation2 + $0x10] sm:$0xff]
    %v26 = vld [vmem:[#allocation2 + $0x18] sm:$0xff]
    %v27 = vld [vmem:[#allocation2 + $0x20] sm:$0xff]
    %v28 = vld [vmem:[#allocation2 + $0x28] sm:$0xff]
    %v29 = vld [vmem:[#allocation2 + $0x30] sm:$0xff]
    %v30 = vld [vmem:[#allocation2 + $0x38] sm:$0xff]
    %v31 = vlaneseq
    %v32 = vshrl.u32 %v31, 7
    %v33 = vsub.s32 0, %v32
    %v34 = vrot.slane %v23, %v33
    %36 = vbcast.lane.b32.xlu0 %v34, 256
    %v37 = vpop.permute.xlu0 %36
    %s39 = sor.u32 256, 8
    %40 = vbcast.lane.b32.xlu0 %v34, %s39
    %v41 = vpop.permute.xlu0 %40
    %s43 = sor.u32 256, 16
    %44 = vbcast.lane.b32.xlu0 %v34, %s43
    %v45 = vpop.permute.xlu0 %44
    %s47 = sor.u32 256, 24
    %48 = vbcast.lane.b32.xlu0 %v34, %s47
    %v49 = vpop.permute.xlu0 %48
    %v50 = vlaneseq
    %v51 = vshrl.u32 %v50, 7
    %v52 = vsub.s32 1, %v51
    %v53 = vrot.slane %v23, %v52
    %55 = vbcast.lane.b32.xlu0 %v53, 256
    %v56 = vpop.permute.xlu0 %55
    %s58 = sor.u32 256, 8
    %59 = vbcast.lane.b32.xlu0 %v53, %s58
    %v60 = vpop.permute.xlu0 %59
    %s62 = sor.u32 256, 16
    %63 = vbcast.lane.b32.xlu0 %v53, %s62
    %v64 = vpop.permute.xlu0 %63
    %s66 = sor.u32 256, 24
    %67 = vbcast.lane.b32.xlu0 %v53, %s66
    %v68 = vpop.permute.xlu0 %67
    %v69 = vlaneseq
    %v70 = vshrl.u32 %v69, 7
    %v71 = vsub.s32 2, %v70
    %v72 = vrot.slane %v23, %v71
    %74 = vbcast.lane.b32.xlu0 %v72, 256
    %v75 = vpop.permute.xlu0 %74
    %s77 = sor.u32 256, 8
    %78 = vbcast.lane.b32.xlu0 %v72, %s77
    %v79 = vpop.permute.xlu0 %78
    %s81 = sor.u32 256, 16
    %82 = vbcast.lane.b32.xlu0 %v72, %s81
    %v83 = vpop.permute.xlu0 %82
    %s85 = sor.u32 256, 24
    %86 = vbcast.lane.b32.xlu0 %v72, %s85
    %v87 = vpop.permute.xlu0 %86
    %v88 = vlaneseq
    %v89 = vshrl.u32 %v88, 7
    %v90 = vsub.s32 3, %v89
    %v91 = vrot.slane %v23, %v90
    %93 = vbcast.lane.b32.xlu0 %v91, 256
    %v94 = vpop.permute.xlu0 %93
    %s96 = sor.u32 256, 8
    %97 = vbcast.lane.b32.xlu0 %v91, %s96
    %v98 = vpop.permute.xlu0 %97
    %s100 = sor.u32 256, 16
    %101 = vbcast.lane.b32.xlu0 %v91, %s100
    %v102 = vpop.permute.xlu0 %101
    %s104 = sor.u32 256, 24
    %105 = vbcast.lane.b32.xlu0 %v91, %s104
    %v106 = vpop.permute.xlu0 %105
    %v107 = vlaneseq
    %v108 = vshrl.u32 %v107, 7
    %v109 = vsub.s32 4, %v108
    %v110 = vrot.slane %v23, %v109
    %112 = vbcast.lane.b32.xlu0 %v110, 256
    %v113 = vpop.permute.xlu0 %112
    %s115 = sor.u32 256, 8
    %116 = vbcast.lane.b32.xlu0 %v110, %s115
    %v117 = vpop.permute.xlu0 %116
    %s119 = sor.u32 256, 16
    %120 = vbcast.lane.b32.xlu0 %v110, %s119
    %v121 = vpop.permute.xlu0 %120
    %s123 = sor.u32 256, 24
    %124 = vbcast.lane.b32.xlu0 %v110, %s123
    %v125 = vpop.permute.xlu0 %124
    %v126 = vlaneseq
    %v127 = vshrl.u32 %v126, 7
    %v128 = vsub.s32 5, %v127
    %v129 = vrot.slane %v23, %v128
    %131 = vbcast.lane.b32.xlu0 %v129, 256
    %v132 = vpop.permute.xlu0 %131
    %s134 = sor.u32 256, 8
    %135 = vbcast.lane.b32.xlu0 %v129, %s134
    %v136 = vpop.permute.xlu0 %135
    %s138 = sor.u32 256, 16
    %139 = vbcast.lane.b32.xlu0 %v129, %s138
    %v140 = vpop.permute.xlu0 %139
    %s142 = sor.u32 256, 24
    %143 = vbcast.lane.b32.xlu0 %v129, %s142
    %v144 = vpop.permute.xlu0 %143
    %v145 = vlaneseq
    %v146 = vshrl.u32 %v145, 7
    %v147 = vsub.s32 6, %v146
    %v148 = vrot.slane %v23, %v147
    %150 = vbcast.lane.b32.xlu0 %v148, 256
    %v151 = vpop.permute.xlu0 %150
    %s153 = sor.u32 256, 8
    %154 = vbcast.lane.b32.xlu0 %v148, %s153
    %v155 = vpop.permute.xlu0 %154
    %s157 = sor.u32 256, 16
    %158 = vbcast.lane.b32.xlu0 %v148, %s157
    %v159 = vpop.permute.xlu0 %158
    %s161 = sor.u32 256, 24
    %162 = vbcast.lane.b32.xlu0 %v148, %s161
    %v163 = vpop.permute.xlu0 %162
    %v164 = vlaneseq
    %v165 = vshrl.u32 %v164, 7
    %v166 = vsub.s32 7, %v165
    %v167 = vrot.slane %v23, %v166
    %169 = vbcast.lane.b32.xlu0 %v167, 256
    %v170 = vpop.permute.xlu0 %169
    %s172 = sor.u32 256, 8
    %173 = vbcast.lane.b32.xlu0 %v167, %s172
    %v174 = vpop.permute.xlu0 %173
    %s176 = sor.u32 256, 16
    %177 = vbcast.lane.b32.xlu0 %v167, %s176
    %v178 = vpop.permute.xlu0 %177
    %s180 = sor.u32 256, 24
    %181 = vbcast.lane.b32.xlu0 %v167, %s180
    %v182 = vpop.permute.xlu0 %181
    %v183 = vlaneseq
    %v184 = vshrl.u32 %v183, 7
    %v185 = vsub.s32 0, %v184
    %v186 = vrot.slane %v24, %v185
    %188 = vbcast.lane.b32.xlu0 %v186, 256
    %v189 = vpop.permute.xlu0 %188
    %s191 = sor.u32 256, 8
    %192 = vbcast.lane.b32.xlu0 %v186, %s191
    %v193 = vpop.permute.xlu0 %192
    %s195 = sor.u32 256, 16
    %196 = vbcast.lane.b32.xlu0 %v186, %s195
    %v197 = vpop.permute.xlu0 %196
    %s199 = sor.u32 256, 24
    %200 = vbcast.lane.b32.xlu0 %v186, %s199
    %v201 = vpop.permute.xlu0 %200
    %v202 = vlaneseq
    %v203 = vshrl.u32 %v202, 7
    %v204 = vsub.s32 1, %v203
    %v205 = vrot.slane %v24, %v204
    %207 = vbcast.lane.b32.xlu0 %v205, 256
    %v208 = vpop.permute.xlu0 %207
    %s210 = sor.u32 256, 8
    %211 = vbcast.lane.b32.xlu0 %v205, %s210
    %v212 = vpop.permute.xlu0 %211
    %s214 = sor.u32 256, 16
    %215 = vbcast.lane.b32.xlu0 %v205, %s214
    %v216 = vpop.permute.xlu0 %215
    %s218 = sor.u32 256, 24
    %219 = vbcast.lane.b32.xlu0 %v205, %s218
    %v220 = vpop.permute.xlu0 %219
    %v221 = vlaneseq
    %v222 = vshrl.u32 %v221, 7
    %v223 = vsub.s32 2, %v222
    %v224 = vrot.slane %v24, %v223
    %226 = vbcast.lane.b32.xlu0 %v224, 256
    %v227 = vpop.permute.xlu0 %226
    %s229 = sor.u32 256, 8
    %230 = vbcast.lane.b32.xlu0 %v224, %s229
    %v231 = vpop.permute.xlu0 %230
    %s233 = sor.u32 256, 16
    %234 = vbcast.lane.b32.xlu0 %v224, %s233
    %v235 = vpop.permute.xlu0 %234
    %s237 = sor.u32 256, 24
    %238 = vbcast.lane.b32.xlu0 %v224, %s237
    %v239 = vpop.permute.xlu0 %238
    %v240 = vlaneseq
    %v241 = vshrl.u32 %v240, 7
    %v242 = vsub.s32 3, %v241
    %v243 = vrot.slane %v24, %v242
    %245 = vbcast.lane.b32.xlu0 %v243, 256
    %v246 = vpop.permute.xlu0 %245
    %s248 = sor.u32 256, 8
    %249 = vbcast.lane.b32.xlu0 %v243, %s248
    %v250 = vpop.permute.xlu0 %249
    %s252 = sor.u32 256, 16
    %253 = vbcast.lane.b32.xlu0 %v243, %s252
    %v254 = vpop.permute.xlu0 %253
    %s256 = sor.u32 256, 24
    %257 = vbcast.lane.b32.xlu0 %v243, %s256
    %v258 = vpop.permute.xlu0 %257
    %v259 = vlaneseq
    %v260 = vshrl.u32 %v259, 7
    %v261 = vsub.s32 4, %v260
    %v262 = vrot.slane %v24, %v261
    %264 = vbcast.lane.b32.xlu0 %v262, 256
    %v265 = vpop.permute.xlu0 %264
    %s267 = sor.u32 256, 8
    %268 = vbcast.lane.b32.xlu0 %v262, %s267
    %v269 = vpop.permute.xlu0 %268
    %s271 = sor.u32 256, 16
    %272 = vbcast.lane.b32.xlu0 %v262, %s271
    %v273 = vpop.permute.xlu0 %272
    %s275 = sor.u32 256, 24
    %276 = vbcast.lane.b32.xlu0 %v262, %s275
    %v277 = vpop.permute.xlu0 %276
    %v278 = vlaneseq
    %v279 = vshrl.u32 %v278, 7
    %v280 = vsub.s32 5, %v279
    %v281 = vrot.slane %v24, %v280
    %283 = vbcast.lane.b32.xlu0 %v281, 256
    %v284 = vpop.permute.xlu0 %283
    %s286 = sor.u32 256, 8
    %287 = vbcast.lane.b32.xlu0 %v281, %s286
    %v288 = vpop.permute.xlu0 %287
    %s290 = sor.u32 256, 16
    %291 = vbcast.lane.b32.xlu0 %v281, %s290
    %v292 = vpop.permute.xlu0 %291
    %s294 = sor.u32 256, 24
    %295 = vbcast.lane.b32.xlu0 %v281, %s294
    %v296 = vpop.permute.xlu0 %295
    %v297 = vlaneseq
    %v298 = vshrl.u32 %v297, 7
    %v299 = vsub.s32 6, %v298
    %v300 = vrot.slane %v24, %v299
    %302 = vbcast.lane.b32.xlu0 %v300, 256
    %v303 = vpop.permute.xlu0 %302
    %s305 = sor.u32 256, 8
    %306 = vbcast.lane.b32.xlu0 %v300, %s305
    %v307 = vpop.permute.xlu0 %306
    %s309 = sor.u32 256, 16
    %310 = vbcast.lane.b32.xlu0 %v300, %s309
    %v311 = vpop.permute.xlu0 %310
    %s313 = sor.u32 256, 24
    %314 = vbcast.lane.b32.xlu0 %v300, %s313
    %v315 = vpop.permute.xlu0 %314
    %v316 = vlaneseq
    %v317 = vshrl.u32 %v316, 7
    %v318 = vsub.s32 7, %v317
    %v319 = vrot.slane %v24, %v318
    %321 = vbcast.lane.b32.xlu0 %v319, 256
    %v322 = vpop.permute.xlu0 %321
    %s324 = sor.u32 256, 8
    %325 = vbcast.lane.b32.xlu0 %v319, %s324
    %v326 = vpop.permute.xlu0 %325
    %s328 = sor.u32 256, 16
    %329 = vbcast.lane.b32.xlu0 %v319, %s328
    %v330 = vpop.permute.xlu0 %329
    %s332 = sor.u32 256, 24
    %333 = vbcast.lane.b32.xlu0 %v319, %s332
    %v334 = vpop.permute.xlu0 %333
    %v335 = vlaneseq
    %v336 = vshrl.u32 %v335, 7
    %v337 = vsub.s32 0, %v336
    %v338 = vrot.slane %v25, %v337
    %340 = vbcast.lane.b32.xlu0 %v338, 256
    %v341 = vpop.permute.xlu0 %340
    %s343 = sor.u32 256, 8
    %344 = vbcast.lane.b32.xlu0 %v338, %s343
    %v345 = vpop.permute.xlu0 %344
    %s347 = sor.u32 256, 16
    %348 = vbcast.lane.b32.xlu0 %v338, %s347
    %v349 = vpop.permute.xlu0 %348
    %s351 = sor.u32 256, 24
    %352 = vbcast.lane.b32.xlu0 %v338, %s351
    %v353 = vpop.permute.xlu0 %352
    %v354 = vlaneseq
    %v355 = vshrl.u32 %v354, 7
    %v356 = vsub.s32 1, %v355
    %v357 = vrot.slane %v25, %v356
    %359 = vbcast.lane.b32.xlu0 %v357, 256
    %v360 = vpop.permute.xlu0 %359
    %s362 = sor.u32 256, 8
    %363 = vbcast.lane.b32.xlu0 %v357, %s362
    %v364 = vpop.permute.xlu0 %363
    %s366 = sor.u32 256, 16
    %367 = vbcast.lane.b32.xlu0 %v357, %s366
    %v368 = vpop.permute.xlu0 %367
    %s370 = sor.u32 256, 24
    %371 = vbcast.lane.b32.xlu0 %v357, %s370
    %v372 = vpop.permute.xlu0 %371
    %v373 = vlaneseq
    %v374 = vshrl.u32 %v373, 7
    %v375 = vsub.s32 2, %v374
    %v376 = vrot.slane %v25, %v375
    %378 = vbcast.lane.b32.xlu0 %v376, 256
    %v379 = vpop.permute.xlu0 %378
    %s381 = sor.u32 256, 8
    %382 = vbcast.lane.b32.xlu0 %v376, %s381
    %v383 = vpop.permute.xlu0 %382
    %s385 = sor.u32 256, 16
    %386 = vbcast.lane.b32.xlu0 %v376, %s385
    %v387 = vpop.permute.xlu0 %386
    %s389 = sor.u32 256, 24
    %390 = vbcast.lane.b32.xlu0 %v376, %s389
    %v391 = vpop.permute.xlu0 %390
    %v392 = vlaneseq
    %v393 = vshrl.u32 %v392, 7
    %v394 = vsub.s32 3, %v393
    %v395 = vrot.slane %v25, %v394
    %397 = vbcast.lane.b32.xlu0 %v395, 256
    %v398 = vpop.permute.xlu0 %397
    %s400 = sor.u32 256, 8
    %401 = vbcast.lane.b32.xlu0 %v395, %s400
    %v402 = vpop.permute.xlu0 %401
    %s404 = sor.u32 256, 16
    %405 = vbcast.lane.b32.xlu0 %v395, %s404
    %v406 = vpop.permute.xlu0 %405
    %s408 = sor.u32 256, 24
    %409 = vbcast.lane.b32.xlu0 %v395, %s408
    %v410 = vpop.permute.xlu0 %409
    %v411 = vlaneseq
    %v412 = vshrl.u32 %v411, 7
    %v413 = vsub.s32 4, %v412
    %v414 = vrot.slane %v25, %v413
    %416 = vbcast.lane.b32.xlu0 %v414, 256
    %v417 = vpop.permute.xlu0 %416
    %s419 = sor.u32 256, 8
    %420 = vbcast.lane.b32.xlu0 %v414, %s419
    %v421 = vpop.permute.xlu0 %420
    %s423 = sor.u32 256, 16
    %424 = vbcast.lane.b32.xlu0 %v414, %s423
    %v425 = vpop.permute.xlu0 %424
    %s427 = sor.u32 256, 24
    %428 = vbcast.lane.b32.xlu0 %v414, %s427
    %v429 = vpop.permute.xlu0 %428
    %v430 = vlaneseq
    %v431 = vshrl.u32 %v430, 7
    %v432 = vsub.s32 5, %v431
    %v433 = vrot.slane %v25, %v432
    %435 = vbcast.lane.b32.xlu0 %v433, 256
    %v436 = vpop.permute.xlu0 %435
    %s438 = sor.u32 256, 8
    %439 = vbcast.lane.b32.xlu0 %v433, %s438
    %v440 = vpop.permute.xlu0 %439
    %s442 = sor.u32 256, 16
    %443 = vbcast.lane.b32.xlu0 %v433, %s442
    %v444 = vpop.permute.xlu0 %443
    %s446 = sor.u32 256, 24
    %447 = vbcast.lane.b32.xlu0 %v433, %s446
    %v448 = vpop.permute.xlu0 %447
    %v449 = vlaneseq
    %v450 = vshrl.u32 %v449, 7
    %v451 = vsub.s32 6, %v450
    %v452 = vrot.slane %v25, %v451
    %454 = vbcast.lane.b32.xlu0 %v452, 256
    %v455 = vpop.permute.xlu0 %454
    %s457 = sor.u32 256, 8
    %458 = vbcast.lane.b32.xlu0 %v452, %s457
    %v459 = vpop.permute.xlu0 %458
    %s461 = sor.u32 256, 16
    %462 = vbcast.lane.b32.xlu0 %v452, %s461
    %v463 = vpop.permute.xlu0 %462
    %s465 = sor.u32 256, 24
    %466 = vbcast.lane.b32.xlu0 %v452, %s465
    %v467 = vpop.permute.xlu0 %466
    %v468 = vlaneseq
    %v469 = vshrl.u32 %v468, 7
    %v470 = vsub.s32 7, %v469
    %v471 = vrot.slane %v25, %v470
    %473 = vbcast.lane.b32.xlu0 %v471, 256
    %v474 = vpop.permute.xlu0 %473
    %s476 = sor.u32 256, 8
    %477 = vbcast.lane.b32.xlu0 %v471, %s476
    %v478 = vpop.permute.xlu0 %477
    %s480 = sor.u32 256, 16
    %481 = vbcast.lane.b32.xlu0 %v471, %s480
    %v482 = vpop.permute.xlu0 %481
    %s484 = sor.u32 256, 24
    %485 = vbcast.lane.b32.xlu0 %v471, %s484
    %v486 = vpop.permute.xlu0 %485
    %v487 = vlaneseq
    %v488 = vshrl.u32 %v487, 7
    %v489 = vsub.s32 0, %v488
    %v490 = vrot.slane %v26, %v489
    %492 = vbcast.lane.b32.xlu0 %v490, 256
    %v493 = vpop.permute.xlu0 %492
    %s495 = sor.u32 256, 8
    %496 = vbcast.lane.b32.xlu0 %v490, %s495
    %v497 = vpop.permute.xlu0 %496
    %s499 = sor.u32 256, 16
    %500 = vbcast.lane.b32.xlu0 %v490, %s499
    %v501 = vpop.permute.xlu0 %500
    %s503 = sor.u32 256, 24
    %504 = vbcast.lane.b32.xlu0 %v490, %s503
    %v505 = vpop.permute.xlu0 %504
    %v506 = vlaneseq
    %v507 = vshrl.u32 %v506, 7
    %v508 = vsub.s32 1, %v507
    %v509 = vrot.slane %v26, %v508
    %511 = vbcast.lane.b32.xlu0 %v509, 256
    %v512 = vpop.permute.xlu0 %511
    %s514 = sor.u32 256, 8
    %515 = vbcast.lane.b32.xlu0 %v509, %s514
    %v516 = vpop.permute.xlu0 %515
    %s518 = sor.u32 256, 16
    %519 = vbcast.lane.b32.xlu0 %v509, %s518
    %v520 = vpop.permute.xlu0 %519
    %s522 = sor.u32 256, 24
    %523 = vbcast.lane.b32.xlu0 %v509, %s522
    %v524 = vpop.permute.xlu0 %523
    %v525 = vlaneseq
    %v526 = vshrl.u32 %v525, 7
    %v527 = vsub.s32 2, %v526
    %v528 = vrot.slane %v26, %v527
    %530 = vbcast.lane.b32.xlu0 %v528, 256
    %v531 = vpop.permute.xlu0 %530
    %s533 = sor.u32 256, 8
    %534 = vbcast.lane.b32.xlu0 %v528, %s533
    %v535 = vpop.permute.xlu0 %534
    %s537 = sor.u32 256, 16
    %538 = vbcast.lane.b32.xlu0 %v528, %s537
    %v539 = vpop.permute.xlu0 %538
    %s541 = sor.u32 256, 24
    %542 = vbcast.lane.b32.xlu0 %v528, %s541
    %v543 = vpop.permute.xlu0 %542
    %v544 = vlaneseq
    %v545 = vshrl.u32 %v544, 7
    %v546 = vsub.s32 3, %v545
    %v547 = vrot.slane %v26, %v546
    %549 = vbcast.lane.b32.xlu0 %v547, 256
    %v550 = vpop.permute.xlu0 %549
    %s552 = sor.u32 256, 8
    %553 = vbcast.lane.b32.xlu0 %v547, %s552
    %v554 = vpop.permute.xlu0 %553
    %s556 = sor.u32 256, 16
    %557 = vbcast.lane.b32.xlu0 %v547, %s556
    %v558 = vpop.permute.xlu0 %557
    %s560 = sor.u32 256, 24
    %561 = vbcast.lane.b32.xlu0 %v547, %s560
    %v562 = vpop.permute.xlu0 %561
    %v563 = vlaneseq
    %v564 = vshrl.u32 %v563, 7
    %v565 = vsub.s32 4, %v564
    %v566 = vrot.slane %v26, %v565
    %568 = vbcast.lane.b32.xlu0 %v566, 256
    %v569 = vpop.permute.xlu0 %568
    %s571 = sor.u32 256, 8
    %572 = vbcast.lane.b32.xlu0 %v566, %s571
    %v573 = vpop.permute.xlu0 %572
    %s575 = sor.u32 256, 16
    %576 = vbcast.lane.b32.xlu0 %v566, %s575
    %v577 = vpop.permute.xlu0 %576
    %s579 = sor.u32 256, 24
    %580 = vbcast.lane.b32.xlu0 %v566, %s579
    %v581 = vpop.permute.xlu0 %580
    %v582 = vlaneseq
    %v583 = vshrl.u32 %v582, 7
    %v584 = vsub.s32 5, %v583
    %v585 = vrot.slane %v26, %v584
    %587 = vbcast.lane.b32.xlu0 %v585, 256
    %v588 = vpop.permute.xlu0 %587
    %s590 = sor.u32 256, 8
    %591 = vbcast.lane.b32.xlu0 %v585, %s590
    %v592 = vpop.permute.xlu0 %591
    %s594 = sor.u32 256, 16
    %595 = vbcast.lane.b32.xlu0 %v585, %s594
    %v596 = vpop.permute.xlu0 %595
    %s598 = sor.u32 256, 24
    %599 = vbcast.lane.b32.xlu0 %v585, %s598
    %v600 = vpop.permute.xlu0 %599
    %v601 = vlaneseq
    %v602 = vshrl.u32 %v601, 7
    %v603 = vsub.s32 6, %v602
    %v604 = vrot.slane %v26, %v603
    %606 = vbcast.lane.b32.xlu0 %v604, 256
    %v607 = vpop.permute.xlu0 %606
    %s609 = sor.u32 256, 8
    %610 = vbcast.lane.b32.xlu0 %v604, %s609
    %v611 = vpop.permute.xlu0 %610
    %s613 = sor.u32 256, 16
    %614 = vbcast.lane.b32.xlu0 %v604, %s613
    %v615 = vpop.permute.xlu0 %614
    %s617 = sor.u32 256, 24
    %618 = vbcast.lane.b32.xlu0 %v604, %s617
    %v619 = vpop.permute.xlu0 %618
    %v620 = vlaneseq
    %v621 = vshrl.u32 %v620, 7
    %v622 = vsub.s32 7, %v621
    %v623 = vrot.slane %v26, %v622
    %625 = vbcast.lane.b32.xlu0 %v623, 256
    %v626 = vpop.permute.xlu0 %625
    %s628 = sor.u32 256, 8
    %629 = vbcast.lane.b32.xlu0 %v623, %s628
    %v630 = vpop.permute.xlu0 %629
    %s632 = sor.u32 256, 16
    %633 = vbcast.lane.b32.xlu0 %v623, %s632
    %v634 = vpop.permute.xlu0 %633
    %s636 = sor.u32 256, 24
    %637 = vbcast.lane.b32.xlu0 %v623, %s636
    %v638 = vpop.permute.xlu0 %637
    %v639 = vlaneseq
    %v640 = vshrl.u32 %v639, 7
    %v641 = vsub.s32 0, %v640
    %v642 = vrot.slane %v27, %v641
    %644 = vbcast.lane.b32.xlu0 %v642, 256
    %v645 = vpop.permute.xlu0 %644
    %s647 = sor.u32 256, 8
    %648 = vbcast.lane.b32.xlu0 %v642, %s647
    %v649 = vpop.permute.xlu0 %648
    %s651 = sor.u32 256, 16
    %652 = vbcast.lane.b32.xlu0 %v642, %s651
    %v653 = vpop.permute.xlu0 %652
    %s655 = sor.u32 256, 24
    %656 = vbcast.lane.b32.xlu0 %v642, %s655
    %v657 = vpop.permute.xlu0 %656
    %v658 = vlaneseq
    %v659 = vshrl.u32 %v658, 7
    %v660 = vsub.s32 1, %v659
    %v661 = vrot.slane %v27, %v660
    %663 = vbcast.lane.b32.xlu0 %v661, 256
    %v664 = vpop.permute.xlu0 %663
    %s666 = sor.u32 256, 8
    %667 = vbcast.lane.b32.xlu0 %v661, %s666
    %v668 = vpop.permute.xlu0 %667
    %s670 = sor.u32 256, 16
    %671 = vbcast.lane.b32.xlu0 %v661, %s670
    %v672 = vpop.permute.xlu0 %671
    %s674 = sor.u32 256, 24
    %675 = vbcast.lane.b32.xlu0 %v661, %s674
    %v676 = vpop.permute.xlu0 %675
    %v677 = vlaneseq
    %v678 = vshrl.u32 %v677, 7
    %v679 = vsub.s32 2, %v678
    %v680 = vrot.slane %v27, %v679
    %682 = vbcast.lane.b32.xlu0 %v680, 256
    %v683 = vpop.permute.xlu0 %682
    %s685 = sor.u32 256, 8
    %686 = vbcast.lane.b32.xlu0 %v680, %s685
    %v687 = vpop.permute.xlu0 %686
    %s689 = sor.u32 256, 16
    %690 = vbcast.lane.b32.xlu0 %v680, %s689
    %v691 = vpop.permute.xlu0 %690
    %s693 = sor.u32 256, 24
    %694 = vbcast.lane.b32.xlu0 %v680, %s693
    %v695 = vpop.permute.xlu0 %694
    %v696 = vlaneseq
    %v697 = vshrl.u32 %v696, 7
    %v698 = vsub.s32 3, %v697
    %v699 = vrot.slane %v27, %v698
    %701 = vbcast.lane.b32.xlu0 %v699, 256
    %v702 = vpop.permute.xlu0 %701
    %s704 = sor.u32 256, 8
    %705 = vbcast.lane.b32.xlu0 %v699, %s704
    %v706 = vpop.permute.xlu0 %705
    %s708 = sor.u32 256, 16
    %709 = vbcast.lane.b32.xlu0 %v699, %s708
    %v710 = vpop.permute.xlu0 %709
    %s712 = sor.u32 256, 24
    %713 = vbcast.lane.b32.xlu0 %v699, %s712
    %v714 = vpop.permute.xlu0 %713
    %v715 = vlaneseq
    %v716 = vshrl.u32 %v715, 7
    %v717 = vsub.s32 4, %v716
    %v718 = vrot.slane %v27, %v717
    %720 = vbcast.lane.b32.xlu0 %v718, 256
    %v721 = vpop.permute.xlu0 %720
    %s723 = sor.u32 256, 8
    %724 = vbcast.lane.b32.xlu0 %v718, %s723
    %v725 = vpop.permute.xlu0 %724
    %s727 = sor.u32 256, 16
    %728 = vbcast.lane.b32.xlu0 %v718, %s727
    %v729 = vpop.permute.xlu0 %728
    %s731 = sor.u32 256, 24
    %732 = vbcast.lane.b32.xlu0 %v718, %s731
    %v733 = vpop.permute.xlu0 %732
    %v734 = vlaneseq
    %v735 = vshrl.u32 %v734, 7
    %v736 = vsub.s32 5, %v735
    %v737 = vrot.slane %v27, %v736
    %739 = vbcast.lane.b32.xlu0 %v737, 256
    %v740 = vpop.permute.xlu0 %739
    %s742 = sor.u32 256, 8
    %743 = vbcast.lane.b32.xlu0 %v737, %s742
    %v744 = vpop.permute.xlu0 %743
    %s746 = sor.u32 256, 16
    %747 = vbcast.lane.b32.xlu0 %v737, %s746
    %v748 = vpop.permute.xlu0 %747
    %s750 = sor.u32 256, 24
    %751 = vbcast.lane.b32.xlu0 %v737, %s750
    %v752 = vpop.permute.xlu0 %751
    %v753 = vlaneseq
    %v754 = vshrl.u32 %v753, 7
    %v755 = vsub.s32 6, %v754
    %v756 = vrot.slane %v27, %v755
    %758 = vbcast.lane.b32.xlu0 %v756, 256
    %v759 = vpop.permute.xlu0 %758
    %s761 = sor.u32 256, 8
    %762 = vbcast.lane.b32.xlu0 %v756, %s761
    %v763 = vpop.permute.xlu0 %762
    %s765 = sor.u32 256, 16
    %766 = vbcast.lane.b32.xlu0 %v756, %s765
    %v767 = vpop.permute.xlu0 %766
    %s769 = sor.u32 256, 24
    %770 = vbcast.lane.b32.xlu0 %v756, %s769
    %v771 = vpop.permute.xlu0 %770
    %v772 = vlaneseq
    %v773 = vshrl.u32 %v772, 7
    %v774 = vsub.s32 7, %v773
    %v775 = vrot.slane %v27, %v774
    %777 = vbcast.lane.b32.xlu0 %v775, 256
    %v778 = vpop.permute.xlu0 %777
    %s780 = sor.u32 256, 8
    %781 = vbcast.lane.b32.xlu0 %v775, %s780
    %v782 = vpop.permute.xlu0 %781
    %s784 = sor.u32 256, 16
    %785 = vbcast.lane.b32.xlu0 %v775, %s784
    %v786 = vpop.permute.xlu0 %785
    %s788 = sor.u32 256, 24
    %789 = vbcast.lane.b32.xlu0 %v775, %s788
    %v790 = vpop.permute.xlu0 %789
    %v791 = vlaneseq
    %v792 = vshrl.u32 %v791, 7
    %v793 = vsub.s32 0, %v792
    %v794 = vrot.slane %v28, %v793
    %796 = vbcast.lane.b32.xlu0 %v794, 256
    %v797 = vpop.permute.xlu0 %796
    %s799 = sor.u32 256, 8
    %800 = vbcast.lane.b32.xlu0 %v794, %s799
    %v801 = vpop.permute.xlu0 %800
    %s803 = sor.u32 256, 16
    %804 = vbcast.lane.b32.xlu0 %v794, %s803
    %v805 = vpop.permute.xlu0 %804
    %s807 = sor.u32 256, 24
    %808 = vbcast.lane.b32.xlu0 %v794, %s807
    %v809 = vpop.permute.xlu0 %808
    %v810 = vlaneseq
    %v811 = vshrl.u32 %v810, 7
    %v812 = vsub.s32 1, %v811
    %v813 = vrot.slane %v28, %v812
    %815 = vbcast.lane.b32.xlu0 %v813, 256
    %v816 = vpop.permute.xlu0 %815
    %s818 = sor.u32 256, 8
    %819 = vbcast.lane.b32.xlu0 %v813, %s818
    %v820 = vpop.permute.xlu0 %819
    %s822 = sor.u32 256, 16
    %823 = vbcast.lane.b32.xlu0 %v813, %s822
    %v824 = vpop.permute.xlu0 %823
    %s826 = sor.u32 256, 24
    %827 = vbcast.lane.b32.xlu0 %v813, %s826
    %v828 = vpop.permute.xlu0 %827
    %v829 = vlaneseq
    %v830 = vshrl.u32 %v829, 7
    %v831 = vsub.s32 2, %v830
    %v832 = vrot.slane %v28, %v831
    %834 = vbcast.lane.b32.xlu0 %v832, 256
    %v835 = vpop.permute.xlu0 %834
    %s837 = sor.u32 256, 8
    %838 = vbcast.lane.b32.xlu0 %v832, %s837
    %v839 = vpop.permute.xlu0 %838
    %s841 = sor.u32 256, 16
    %842 = vbcast.lane.b32.xlu0 %v832, %s841
    %v843 = vpop.permute.xlu0 %842
    %s845 = sor.u32 256, 24
    %846 = vbcast.lane.b32.xlu0 %v832, %s845
    %v847 = vpop.permute.xlu0 %846
    %v848 = vlaneseq
    %v849 = vshrl.u32 %v848, 7
    %v850 = vsub.s32 3, %v849
    %v851 = vrot.slane %v28, %v850
    %853 = vbcast.lane.b32.xlu0 %v851, 256
    %v854 = vpop.permute.xlu0 %853
    %s856 = sor.u32 256, 8
    %857 = vbcast.lane.b32.xlu0 %v851, %s856
    %v858 = vpop.permute.xlu0 %857
    %s860 = sor.u32 256, 16
    %861 = vbcast.lane.b32.xlu0 %v851, %s860
    %v862 = vpop.permute.xlu0 %861
    %s864 = sor.u32 256, 24
    %865 = vbcast.lane.b32.xlu0 %v851, %s864
    %v866 = vpop.permute.xlu0 %865
    %v867 = vlaneseq
    %v868 = vshrl.u32 %v867, 7
    %v869 = vsub.s32 4, %v868
    %v870 = vrot.slane %v28, %v869
    %872 = vbcast.lane.b32.xlu0 %v870, 256
    %v873 = vpop.permute.xlu0 %872
    %s875 = sor.u32 256, 8
    %876 = vbcast.lane.b32.xlu0 %v870, %s875
    %v877 = vpop.permute.xlu0 %876
    %s879 = sor.u32 256, 16
    %880 = vbcast.lane.b32.xlu0 %v870, %s879
    %v881 = vpop.permute.xlu0 %880
    %s883 = sor.u32 256, 24
    %884 = vbcast.lane.b32.xlu0 %v870, %s883
    %v885 = vpop.permute.xlu0 %884
    %v886 = vlaneseq
    %v887 = vshrl.u32 %v886, 7
    %v888 = vsub.s32 5, %v887
    %v889 = vrot.slane %v28, %v888
    %891 = vbcast.lane.b32.xlu0 %v889, 256
    %v892 = vpop.permute.xlu0 %891
    %s894 = sor.u32 256, 8
    %895 = vbcast.lane.b32.xlu0 %v889, %s894
    %v896 = vpop.permute.xlu0 %895
    %s898 = sor.u32 256, 16
    %899 = vbcast.lane.b32.xlu0 %v889, %s898
    %v900 = vpop.permute.xlu0 %899
    %s902 = sor.u32 256, 24
    %903 = vbcast.lane.b32.xlu0 %v889, %s902
    %v904 = vpop.permute.xlu0 %903
    %v905 = vlaneseq
    %v906 = vshrl.u32 %v905, 7
    %v907 = vsub.s32 6, %v906
    %v908 = vrot.slane %v28, %v907
    %910 = vbcast.lane.b32.xlu0 %v908, 256
    %v911 = vpop.permute.xlu0 %910
    %s913 = sor.u32 256, 8
    %914 = vbcast.lane.b32.xlu0 %v908, %s913
    %v915 = vpop.permute.xlu0 %914
    %s917 = sor.u32 256, 16
    %918 = vbcast.lane.b32.xlu0 %v908, %s917
    %v919 = vpop.permute.xlu0 %918
    %s921 = sor.u32 256, 24
    %922 = vbcast.lane.b32.xlu0 %v908, %s921
    %v923 = vpop.permute.xlu0 %922
    %v924 = vlaneseq
    %v925 = vshrl.u32 %v924, 7
    %v926 = vsub.s32 7, %v925
    %v927 = vrot.slane %v28, %v926
    %929 = vbcast.lane.b32.xlu0 %v927, 256
    %v930 = vpop.permute.xlu0 %929
    %s932 = sor.u32 256, 8
    %933 = vbcast.lane.b32.xlu0 %v927, %s932
    %v934 = vpop.permute.xlu0 %933
    %s936 = sor.u32 256, 16
    %937 = vbcast.lane.b32.xlu0 %v927, %s936
    %v938 = vpop.permute.xlu0 %937
    %s940 = sor.u32 256, 24
    %941 = vbcast.lane.b32.xlu0 %v927, %s940
    %v942 = vpop.permute.xlu0 %941
    %v943 = vlaneseq
    %v944 = vshrl.u32 %v943, 7
    %v945 = vsub.s32 0, %v944
    %v946 = vrot.slane %v29, %v945
    %948 = vbcast.lane.b32.xlu0 %v946, 256
    %v949 = vpop.permute.xlu0 %948
    %s951 = sor.u32 256, 8
    %952 = vbcast.lane.b32.xlu0 %v946, %s951
    %v953 = vpop.permute.xlu0 %952
    %s955 = sor.u32 256, 16
    %956 = vbcast.lane.b32.xlu0 %v946, %s955
    %v957 = vpop.permute.xlu0 %956
    %s959 = sor.u32 256, 24
    %960 = vbcast.lane.b32.xlu0 %v946, %s959
    %v961 = vpop.permute.xlu0 %960
    %v962 = vlaneseq
    %v963 = vshrl.u32 %v962, 7
    %v964 = vsub.s32 1, %v963
    %v965 = vrot.slane %v29, %v964
    %967 = vbcast.lane.b32.xlu0 %v965, 256
    %v968 = vpop.permute.xlu0 %967
    %s970 = sor.u32 256, 8
    %971 = vbcast.lane.b32.xlu0 %v965, %s970
    %v972 = vpop.permute.xlu0 %971
    %s974 = sor.u32 256, 16
    %975 = vbcast.lane.b32.xlu0 %v965, %s974
    %v976 = vpop.permute.xlu0 %975
    %s978 = sor.u32 256, 24
    %979 = vbcast.lane.b32.xlu0 %v965, %s978
    %v980 = vpop.permute.xlu0 %979
    %v981 = vlaneseq
    %v982 = vshrl.u32 %v981, 7
    %v983 = vsub.s32 2, %v982
    %v984 = vrot.slane %v29, %v983
    %986 = vbcast.lane.b32.xlu0 %v984, 256
    %v987 = vpop.permute.xlu0 %986
    %s989 = sor.u32 256, 8
    %990 = vbcast.lane.b32.xlu0 %v984, %s989
    %v991 = vpop.permute.xlu0 %990
    %s993 = sor.u32 256, 16
    %994 = vbcast.lane.b32.xlu0 %v984, %s993
    %v995 = vpop.permute.xlu0 %994
    %s997 = sor.u32 256, 24
    %998 = vbcast.lane.b32.xlu0 %v984, %s997
    %v999 = vpop.permute.xlu0 %998
    %v1000 = vlaneseq
    %v1001 = vshrl.u32 %v1000, 7
    %v1002 = vsub.s32 3, %v1001
    %v1003 = vrot.slane %v29, %v1002
    %1005 = vbcast.lane.b32.xlu0 %v1003, 256
    %v1006 = vpop.permute.xlu0 %1005
    %s1008 = sor.u32 256, 8
    %1009 = vbcast.lane.b32.xlu0 %v1003, %s1008
    %v1010 = vpop.permute.xlu0 %1009
    %s1012 = sor.u32 256, 16
    %1013 = vbcast.lane.b32.xlu0 %v1003, %s1012
    %v1014 = vpop.permute.xlu0 %1013
    %s1016 = sor.u32 256, 24
    %1017 = vbcast.lane.b32.xlu0 %v1003, %s1016
    %v1018 = vpop.permute.xlu0 %1017
    %v1019 = vlaneseq
    %v1020 = vshrl.u32 %v1019, 7
    %v1021 = vsub.s32 4, %v1020
    %v1022 = vrot.slane %v29, %v1021
    %1024 = vbcast.lane.b32.xlu0 %v1022, 256
    %v1025 = vpop.permute.xlu0 %1024
    %s1027 = sor.u32 256, 8
    %1028 = vbcast.lane.b32.xlu0 %v1022, %s1027
    %v1029 = vpop.permute.xlu0 %1028
    %s1031 = sor.u32 256, 16
    %1032 = vbcast.lane.b32.xlu0 %v1022, %s1031
    %v1033 = vpop.permute.xlu0 %1032
    %s1035 = sor.u32 256, 24
    %1036 = vbcast.lane.b32.xlu0 %v1022, %s1035
    %v1037 = vpop.permute.xlu0 %1036
    %v1038 = vlaneseq
    %v1039 = vshrl.u32 %v1038, 7
    %v1040 = vsub.s32 5, %v1039
    %v1041 = vrot.slane %v29, %v1040
    %1043 = vbcast.lane.b32.xlu0 %v1041, 256
    %v1044 = vpop.permute.xlu0 %1043
    %s1046 = sor.u32 256, 8
    %1047 = vbcast.lane.b32.xlu0 %v1041, %s1046
    %v1048 = vpop.permute.xlu0 %1047
    %s1050 = sor.u32 256, 16
    %1051 = vbcast.lane.b32.xlu0 %v1041, %s1050
    %v1052 = vpop.permute.xlu0 %1051
    %s1054 = sor.u32 256, 24
    %1055 = vbcast.lane.b32.xlu0 %v1041, %s1054
    %v1056 = vpop.permute.xlu0 %1055
    %v1057 = vlaneseq
    %v1058 = vshrl.u32 %v1057, 7
    %v1059 = vsub.s32 6, %v1058
    %v1060 = vrot.slane %v29, %v1059
    %1062 = vbcast.lane.b32.xlu0 %v1060, 256
    %v1063 = vpop.permute.xlu0 %1062
    %s1065 = sor.u32 256, 8
    %1066 = vbcast.lane.b32.xlu0 %v1060, %s1065
    %v1067 = vpop.permute.xlu0 %1066
    %s1069 = sor.u32 256, 16
    %1070 = vbcast.lane.b32.xlu0 %v1060, %s1069
    %v1071 = vpop.permute.xlu0 %1070
    %s1073 = sor.u32 256, 24
    %1074 = vbcast.lane.b32.xlu0 %v1060, %s1073
    %v1075 = vpop.permute.xlu0 %1074
    %v1076 = vlaneseq
    %v1077 = vshrl.u32 %v1076, 7
    %v1078 = vsub.s32 7, %v1077
    %v1079 = vrot.slane %v29, %v1078
    %1081 = vbcast.lane.b32.xlu0 %v1079, 256
    %v1082 = vpop.permute.xlu0 %1081
    %s1084 = sor.u32 256, 8
    %1085 = vbcast.lane.b32.xlu0 %v1079, %s1084
    %v1086 = vpop.permute.xlu0 %1085
    %s1088 = sor.u32 256, 16
    %1089 = vbcast.lane.b32.xlu0 %v1079, %s1088
    %v1090 = vpop.permute.xlu0 %1089
    %s1092 = sor.u32 256, 24
    %1093 = vbcast.lane.b32.xlu0 %v1079, %s1092
    %v1094 = vpop.permute.xlu0 %1093
    %v1095 = vlaneseq
    %v1096 = vshrl.u32 %v1095, 7
    %v1097 = vsub.s32 0, %v1096
    %v1098 = vrot.slane %v30, %v1097
    %1100 = vbcast.lane.b32.xlu0 %v1098, 256
    %v1101 = vpop.permute.xlu0 %1100
    %s1103 = sor.u32 256, 8
    %1104 = vbcast.lane.b32.xlu0 %v1098, %s1103
    %v1105 = vpop.permute.xlu0 %1104
    %s1107 = sor.u32 256, 16
    %1108 = vbcast.lane.b32.xlu0 %v1098, %s1107
    %v1109 = vpop.permute.xlu0 %1108
    %s1111 = sor.u32 256, 24
    %1112 = vbcast.lane.b32.xlu0 %v1098, %s1111
    %v1113 = vpop.permute.xlu0 %1112
    %v1114 = vlaneseq
    %v1115 = vshrl.u32 %v1114, 7
    %v1116 = vsub.s32 1, %v1115
    %v1117 = vrot.slane %v30, %v1116
    %1119 = vbcast.lane.b32.xlu0 %v1117, 256
    %v1120 = vpop.permute.xlu0 %1119
    %s1122 = sor.u32 256, 8
    %1123 = vbcast.lane.b32.xlu0 %v1117, %s1122
    %v1124 = vpop.permute.xlu0 %1123
    %s1126 = sor.u32 256, 16
    %1127 = vbcast.lane.b32.xlu0 %v1117, %s1126
    %v1128 = vpop.permute.xlu0 %1127
    %s1130 = sor.u32 256, 24
    %1131 = vbcast.lane.b32.xlu0 %v1117, %s1130
    %v1132 = vpop.permute.xlu0 %1131
    %v1133 = vlaneseq
    %v1134 = vshrl.u32 %v1133, 7
    %v1135 = vsub.s32 2, %v1134
    %v1136 = vrot.slane %v30, %v1135
    %1138 = vbcast.lane.b32.xlu0 %v1136, 256
    %v1139 = vpop.permute.xlu0 %1138
    %s1141 = sor.u32 256, 8
    %1142 = vbcast.lane.b32.xlu0 %v1136, %s1141
    %v1143 = vpop.permute.xlu0 %1142
    %s1145 = sor.u32 256, 16
    %1146 = vbcast.lane.b32.xlu0 %v1136, %s1145
    %v1147 = vpop.permute.xlu0 %1146
    %s1149 = sor.u32 256, 24
    %1150 = vbcast.lane.b32.xlu0 %v1136, %s1149
    %v1151 = vpop.permute.xlu0 %1150
    %v1152 = vlaneseq
    %v1153 = vshrl.u32 %v1152, 7
    %v1154 = vsub.s32 3, %v1153
    %v1155 = vrot.slane %v30, %v1154
    %1157 = vbcast.lane.b32.xlu0 %v1155, 256
    %v1158 = vpop.permute.xlu0 %1157
    %s1160 = sor.u32 256, 8
    %1161 = vbcast.lane.b32.xlu0 %v1155, %s1160
    %v1162 = vpop.permute.xlu0 %1161
    %s1164 = sor.u32 256, 16
    %1165 = vbcast.lane.b32.xlu0 %v1155, %s1164
    %v1166 = vpop.permute.xlu0 %1165
    %s1168 = sor.u32 256, 24
    %1169 = vbcast.lane.b32.xlu0 %v1155, %s1168
    %v1170 = vpop.permute.xlu0 %1169
    %v1171 = vlaneseq
    %v1172 = vshrl.u32 %v1171, 7
    %v1173 = vsub.s32 4, %v1172
    %v1174 = vrot.slane %v30, %v1173
    %1176 = vbcast.lane.b32.xlu0 %v1174, 256
    %v1177 = vpop.permute.xlu0 %1176
    %s1179 = sor.u32 256, 8
    %1180 = vbcast.lane.b32.xlu0 %v1174, %s1179
    %v1181 = vpop.permute.xlu0 %1180
    %s1183 = sor.u32 256, 16
    %1184 = vbcast.lane.b32.xlu0 %v1174, %s1183
    %v1185 = vpop.permute.xlu0 %1184
    %s1187 = sor.u32 256, 24
    %1188 = vbcast.lane.b32.xlu0 %v1174, %s1187
    %v1189 = vpop.permute.xlu0 %1188
    %v1190 = vlaneseq
    %v1191 = vshrl.u32 %v1190, 7
    %v1192 = vsub.s32 5, %v1191
    %v1193 = vrot.slane %v30, %v1192
    %1195 = vbcast.lane.b32.xlu0 %v1193, 256
    %v1196 = vpop.permute.xlu0 %1195
    %s1198 = sor.u32 256, 8
    %1199 = vbcast.lane.b32.xlu0 %v1193, %s1198
    %v1200 = vpop.permute.xlu0 %1199
    %s1202 = sor.u32 256, 16
    %1203 = vbcast.lane.b32.xlu0 %v1193, %s1202
    %v1204 = vpop.permute.xlu0 %1203
    %s1206 = sor.u32 256, 24
    %1207 = vbcast.lane.b32.xlu0 %v1193, %s1206
    %v1208 = vpop.permute.xlu0 %1207
    %v1209 = vlaneseq
    %v1210 = vshrl.u32 %v1209, 7
    %v1211 = vsub.s32 6, %v1210
    %v1212 = vrot.slane %v30, %v1211
    %1214 = vbcast.lane.b32.xlu0 %v1212, 256
    %v1215 = vpop.permute.xlu0 %1214
    %s1217 = sor.u32 256, 8
    %1218 = vbcast.lane.b32.xlu0 %v1212, %s1217
    %v1219 = vpop.permute.xlu0 %1218
    %s1221 = sor.u32 256, 16
    %1222 = vbcast.lane.b32.xlu0 %v1212, %s1221
    %v1223 = vpop.permute.xlu0 %1222
    %s1225 = sor.u32 256, 24
    %1226 = vbcast.lane.b32.xlu0 %v1212, %s1225
    %v1227 = vpop.permute.xlu0 %1226
    %v1228 = vlaneseq
    %v1229 = vshrl.u32 %v1228, 7
    %v1230 = vsub.s32 7, %v1229
    %v1231 = vrot.slane %v30, %v1230
    %1233 = vbcast.lane.b32.xlu0 %v1231, 256
    %v1234 = vpop.permute.xlu0 %1233
    %s1236 = sor.u32 256, 8
    %1237 = vbcast.lane.b32.xlu0 %v1231, %s1236
    %v1238 = vpop.permute.xlu0 %1237
    %s1240 = sor.u32 256, 16
    %1241 = vbcast.lane.b32.xlu0 %v1231, %s1240
    %v1242 = vpop.permute.xlu0 %1241
    %s1244 = sor.u32 256, 24
    %1245 = vbcast.lane.b32.xlu0 %v1231, %s1244
    %v1246 = vpop.permute.xlu0 %1245
    %v1247 = vcombine.low %v37, %v75
    %v1248 = vcombine.high %v37, %v75
    %v1250 = vunpack.c.l.s4 1983009808
    %v1251 = vunpack.c.0.s8 %v1250
    %v1252 = vlaneseq
    %v1253 = vshrl.u32 %v1252, 7
    %v1254 = vsub.s32 %v1251, %v1253
    %v1255 = vrot.slane %v1247, %v1254
    %v1257 = vunpack.c.l.s4 1983009808
    %v1258 = vunpack.c.0.s8 %v1257
    %v1259 = vlaneseq
    %v1260 = vshrl.u32 %v1259, 7
    %v1261 = vsub.s32 %v1258, %v1260
    %v1262 = vrot.slane %v1248, %v1261
    %v1263 = vcombine.low %v56, %v94
    %v1264 = vcombine.high %v56, %v94
    %v1266 = vunpack.c.l.s4 1983009808
    %v1267 = vunpack.c.0.s8 %v1266
    %v1268 = vlaneseq
    %v1269 = vshrl.u32 %v1268, 7
    %v1270 = vsub.s32 %v1267, %v1269
    %v1271 = vrot.slane %v1263, %v1270
    %v1273 = vunpack.c.l.s4 1983009808
    %v1274 = vunpack.c.0.s8 %v1273
    %v1275 = vlaneseq
    %v1276 = vshrl.u32 %v1275, 7
    %v1277 = vsub.s32 %v1274, %v1276
    %v1278 = vrot.slane %v1264, %v1277
    %v1279 = vcombine.low %v113, %v151
    %v1280 = vcombine.high %v113, %v151
    %v1282 = vunpack.c.l.s4 1983009808
    %v1283 = vunpack.c.0.s8 %v1282
    %v1284 = vlaneseq
    %v1285 = vshrl.u32 %v1284, 7
    %v1286 = vsub.s32 %v1283, %v1285
    %v1287 = vrot.slane %v1279, %v1286
    %v1289 = vunpack.c.l.s4 1983009808
    %v1290 = vunpack.c.0.s8 %v1289
    %v1291 = vlaneseq
    %v1292 = vshrl.u32 %v1291, 7
    %v1293 = vsub.s32 %v1290, %v1292
    %v1294 = vrot.slane %v1280, %v1293
    %v1295 = vcombine.low %v132, %v170
    %v1296 = vcombine.high %v132, %v170
    %v1298 = vunpack.c.l.s4 1983009808
    %v1299 = vunpack.c.0.s8 %v1298
    %v1300 = vlaneseq
    %v1301 = vshrl.u32 %v1300, 7
    %v1302 = vsub.s32 %v1299, %v1301
    %v1303 = vrot.slane %v1295, %v1302
    %v1305 = vunpack.c.l.s4 1983009808
    %v1306 = vunpack.c.0.s8 %v1305
    %v1307 = vlaneseq
    %v1308 = vshrl.u32 %v1307, 7
    %v1309 = vsub.s32 %v1306, %v1308
    %v1310 = vrot.slane %v1296, %v1309
    %v1311 = vcombine.low %v1255, %v1271
    %v1312 = vcombine.high %v1255, %v1271
    %v1314 = vunpack.c.l.s4 1934713408
    %v1315 = vunpack.c.0.s8 %v1314
    %v1316 = vlaneseq
    %v1317 = vshrl.u32 %v1316, 7
    %v1318 = vsub.s32 %v1315, %v1317
    %v1319 = vrot.slane %v1311, %v1318
    %v1321 = vunpack.c.l.s4 1934713408
    %v1322 = vunpack.c.0.s8 %v1321
    %v1323 = vlaneseq
    %v1324 = vshrl.u32 %v1323, 7
    %v1325 = vsub.s32 %v1322, %v1324
    %v1326 = vrot.slane %v1312, %v1325
    %v1327 = vcombine.low %v1262, %v1278
    %v1328 = vcombine.high %v1262, %v1278
    %v1330 = vunpack.c.l.s4 1934713408
    %v1331 = vunpack.c.0.s8 %v1330
    %v1332 = vlaneseq
    %v1333 = vshrl.u32 %v1332, 7
    %v1334 = vsub.s32 %v1331, %v1333
    %v1335 = vrot.slane %v1327, %v1334
    %v1337 = vunpack.c.l.s4 1934713408
    %v1338 = vunpack.c.0.s8 %v1337
    %v1339 = vlaneseq
    %v1340 = vshrl.u32 %v1339, 7
    %v1341 = vsub.s32 %v1338, %v1340
    %v1342 = vrot.slane %v1328, %v1341
    %v1343 = vcombine.low %v1287, %v1303
    %v1344 = vcombine.high %v1287, %v1303
    %v1346 = vunpack.c.l.s4 1934713408
    %v1347 = vunpack.c.0.s8 %v1346
    %v1348 = vlaneseq
    %v1349 = vshrl.u32 %v1348, 7
    %v1350 = vsub.s32 %v1347, %v1349
    %v1351 = vrot.slane %v1343, %v1350
    %v1353 = vunpack.c.l.s4 1934713408
    %v1354 = vunpack.c.0.s8 %v1353
    %v1355 = vlaneseq
    %v1356 = vshrl.u32 %v1355, 7
    %v1357 = vsub.s32 %v1354, %v1356
    %v1358 = vrot.slane %v1344, %v1357
    %v1359 = vcombine.low %v1294, %v1310
    %v1360 = vcombine.high %v1294, %v1310
    %v1362 = vunpack.c.l.s4 1934713408
    %v1363 = vunpack.c.0.s8 %v1362
    %v1364 = vlaneseq
    %v1365 = vshrl.u32 %v1364, 7
    %v1366 = vsub.s32 %v1363, %v1365
    %v1367 = vrot.slane %v1359, %v1366
    %v1369 = vunpack.c.l.s4 1934713408
    %v1370 = vunpack.c.0.s8 %v1369
    %v1371 = vlaneseq
    %v1372 = vshrl.u32 %v1371, 7
    %v1373 = vsub.s32 %v1370, %v1372
    %v1374 = vrot.slane %v1360, %v1373
    %v1375 = vcombine.low %v1319, %v1351
    %v1376 = vcombine.high %v1319, %v1351
    %v1377 = vcombine.low %v1326, %v1358
    %v1378 = vcombine.high %v1326, %v1358
    %v1379 = vcombine.low %v1335, %v1367
    %v1380 = vcombine.high %v1335, %v1367
    %v1381 = vcombine.low %v1342, %v1374
    %v1382 = vcombine.high %v1342, %v1374
    %v1383 = vcombine.low %v189, %v227
    %v1384 = vcombine.high %v189, %v227
    %v1386 = vunpack.c.l.s4 1983009808
    %v1387 = vunpack.c.0.s8 %v1386
    %v1388 = vlaneseq
    %v1389 = vshrl.u32 %v1388, 7
    %v1390 = vsub.s32 %v1387, %v1389
    %v1391 = vrot.slane %v1383, %v1390
    %v1393 = vunpack.c.l.s4 1983009808
    %v1394 = vunpack.c.0.s8 %v1393
    %v1395 = vlaneseq
    %v1396 = vshrl.u32 %v1395, 7
    %v1397 = vsub.s32 %v1394, %v1396
    %v1398 = vrot.slane %v1384, %v1397
    %v1399 = vcombine.low %v208, %v246
    %v1400 = vcombine.high %v208, %v246
    %v1402 = vunpack.c.l.s4 1983009808
    %v1403 = vunpack.c.0.s8 %v1402
    %v1404 = vlaneseq
    %v1405 = vshrl.u32 %v1404, 7
    %v1406 = vsub.s32 %v1403, %v1405
    %v1407 = vrot.slane %v1399, %v1406
    %v1409 = vunpack.c.l.s4 1983009808
    %v1410 = vunpack.c.0.s8 %v1409
    %v1411 = vlaneseq
    %v1412 = vshrl.u32 %v1411, 7
    %v1413 = vsub.s32 %v1410, %v1412
    %v1414 = vrot.slane %v1400, %v1413
    %v1415 = vcombine.low %v265, %v303
    %v1416 = vcombine.high %v265, %v303
    %v1418 = vunpack.c.l.s4 1983009808
    %v1419 = vunpack.c.0.s8 %v1418
    %v1420 = vlaneseq
    %v1421 = vshrl.u32 %v1420, 7
    %v1422 = vsub.s32 %v1419, %v1421
    %v1423 = vrot.slane %v1415, %v1422
    %v1425 = vunpack.c.l.s4 1983009808
    %v1426 = vunpack.c.0.s8 %v1425
    %v1427 = vlaneseq
    %v1428 = vshrl.u32 %v1427, 7
    %v1429 = vsub.s32 %v1426, %v1428
    %v1430 = vrot.slane %v1416, %v1429
    %v1431 = vcombine.low %v284, %v322
    %v1432 = vcombine.high %v284, %v322
    %v1434 = vunpack.c.l.s4 1983009808
    %v1435 = vunpack.c.0.s8 %v1434
    %v1436 = vlaneseq
    %v1437 = vshrl.u32 %v1436, 7
    %v1438 = vsub.s32 %v1435, %v1437
    %v1439 = vrot.slane %v1431, %v1438
    %v1441 = vunpack.c.l.s4 1983009808
    %v1442 = vunpack.c.0.s8 %v1441
    %v1443 = vlaneseq
    %v1444 = vshrl.u32 %v1443, 7
    %v1445 = vsub.s32 %v1442, %v1444
    %v1446 = vrot.slane %v1432, %v1445
    %v1447 = vcombine.low %v1391, %v1407
    %v1448 = vcombine.high %v1391, %v1407
    %v1450 = vunpack.c.l.s4 1934713408
    %v1451 = vunpack.c.0.s8 %v1450
    %v1452 = vlaneseq
    %v1453 = vshrl.u32 %v1452, 7
    %v1454 = vsub.s32 %v1451, %v1453
    %v1455 = vrot.slane %v1447, %v1454
    %v1457 = vunpack.c.l.s4 1934713408
    %v1458 = vunpack.c.0.s8 %v1457
    %v1459 = vlaneseq
    %v1460 = vshrl.u32 %v1459, 7
    %v1461 = vsub.s32 %v1458, %v1460
    %v1462 = vrot.slane %v1448, %v1461
    %v1463 = vcombine.low %v1398, %v1414
    %v1464 = vcombine.high %v1398, %v1414
    %v1466 = vunpack.c.l.s4 1934713408
    %v1467 = vunpack.c.0.s8 %v1466
    %v1468 = vlaneseq
    %v1469 = vshrl.u32 %v1468, 7
    %v1470 = vsub.s32 %v1467, %v1469
    %v1471 = vrot.slane %v1463, %v1470
    %v1473 = vunpack.c.l.s4 1934713408
    %v1474 = vunpack.c.0.s8 %v1473
    %v1475 = vlaneseq
    %v1476 = vshrl.u32 %v1475, 7
    %v1477 = vsub.s32 %v1474, %v1476
    %v1478 = vrot.slane %v1464, %v1477
    %v1479 = vcombine.low %v1423, %v1439
    %v1480 = vcombine.high %v1423, %v1439
    %v1482 = vunpack.c.l.s4 1934713408
    %v1483 = vunpack.c.0.s8 %v1482
    %v1484 = vlaneseq
    %v1485 = vshrl.u32 %v1484, 7
    %v1486 = vsub.s32 %v1483, %v1485
    %v1487 = vrot.slane %v1479, %v1486
    %v1489 = vunpack.c.l.s4 1934713408
    %v1490 = vunpack.c.0.s8 %v1489
    %v1491 = vlaneseq
    %v1492 = vshrl.u32 %v1491, 7
    %v1493 = vsub.s32 %v1490, %v1492
    %v1494 = vrot.slane %v1480, %v1493
    %v1495 = vcombine.low %v1430, %v1446
    %v1496 = vcombine.high %v1430, %v1446
    %v1498 = vunpack.c.l.s4 1934713408
    %v1499 = vunpack.c.0.s8 %v1498
    %v1500 = vlaneseq
    %v1501 = vshrl.u32 %v1500, 7
    %v1502 = vsub.s32 %v1499, %v1501
    %v1503 = vrot.slane %v1495, %v1502
    %v1505 = vunpack.c.l.s4 1934713408
    %v1506 = vunpack.c.0.s8 %v1505
    %v1507 = vlaneseq
    %v1508 = vshrl.u32 %v1507, 7
    %v1509 = vsub.s32 %v1506, %v1508
    %v1510 = vrot.slane %v1496, %v1509
    %v1511 = vcombine.low %v1455, %v1487
    %v1512 = vcombine.high %v1455, %v1487
    %v1513 = vcombine.low %v1462, %v1494
    %v1514 = vcombine.high %v1462, %v1494
    %v1515 = vcombine.low %v1471, %v1503
    %v1516 = vcombine.high %v1471, %v1503
    %v1517 = vcombine.low %v1478, %v1510
    %v1518 = vcombine.high %v1478, %v1510
    %v1519 = vcombine.low %v341, %v379
    %v1520 = vcombine.high %v341, %v379
    %v1522 = vunpack.c.l.s4 1983009808
    %v1523 = vunpack.c.0.s8 %v1522
    %v1524 = vlaneseq
    %v1525 = vshrl.u32 %v1524, 7
    %v1526 = vsub.s32 %v1523, %v1525
    %v1527 = vrot.slane %v1519, %v1526
    %v1529 = vunpack.c.l.s4 1983009808
    %v1530 = vunpack.c.0.s8 %v1529
    %v1531 = vlaneseq
    %v1532 = vshrl.u32 %v1531, 7
    %v1533 = vsub.s32 %v1530, %v1532
    %v1534 = vrot.slane %v1520, %v1533
    %v1535 = vcombine.low %v360, %v398
    %v1536 = vcombine.high %v360, %v398
    %v1538 = vunpack.c.l.s4 1983009808
    %v1539 = vunpack.c.0.s8 %v1538
    %v1540 = vlaneseq
    %v1541 = vshrl.u32 %v1540, 7
    %v1542 = vsub.s32 %v1539, %v1541
    %v1543 = vrot.slane %v1535, %v1542
    %v1545 = vunpack.c.l.s4 1983009808
    %v1546 = vunpack.c.0.s8 %v1545
    %v1547 = vlaneseq
    %v1548 = vshrl.u32 %v1547, 7
    %v1549 = vsub.s32 %v1546, %v1548
    %v1550 = vrot.slane %v1536, %v1549
    %v1551 = vcombine.low %v417, %v455
    %v1552 = vcombine.high %v417, %v455
    %v1554 = vunpack.c.l.s4 1983009808
    %v1555 = vunpack.c.0.s8 %v1554
    %v1556 = vlaneseq
    %v1557 = vshrl.u32 %v1556, 7
    %v1558 = vsub.s32 %v1555, %v1557
    %v1559 = vrot.slane %v1551, %v1558
    %v1561 = vunpack.c.l.s4 1983009808
    %v1562 = vunpack.c.0.s8 %v1561
    %v1563 = vlaneseq
    %v1564 = vshrl.u32 %v1563, 7
    %v1565 = vsub.s32 %v1562, %v1564
    %v1566 = vrot.slane %v1552, %v1565
    %v1567 = vcombine.low %v436, %v474
    %v1568 = vcombine.high %v436, %v474
    %v1570 = vunpack.c.l.s4 1983009808
    %v1571 = vunpack.c.0.s8 %v1570
    %v1572 = vlaneseq
    %v1573 = vshrl.u32 %v1572, 7
    %v1574 = vsub.s32 %v1571, %v1573
    %v1575 = vrot.slane %v1567, %v1574
    %v1577 = vunpack.c.l.s4 1983009808
    %v1578 = vunpack.c.0.s8 %v1577
    %v1579 = vlaneseq
    %v1580 = vshrl.u32 %v1579, 7
    %v1581 = vsub.s32 %v1578, %v1580
    %v1582 = vrot.slane %v1568, %v1581
    %v1583 = vcombine.low %v1527, %v1543
    %v1584 = vcombine.high %v1527, %v1543
    %v1586 = vunpack.c.l.s4 1934713408
    %v1587 = vunpack.c.0.s8 %v1586
    %v1588 = vlaneseq
    %v1589 = vshrl.u32 %v1588, 7
    %v1590 = vsub.s32 %v1587, %v1589
    %v1591 = vrot.slane %v1583, %v1590
    %v1593 = vunpack.c.l.s4 1934713408
    %v1594 = vunpack.c.0.s8 %v1593
    %v1595 = vlaneseq
    %v1596 = vshrl.u32 %v1595, 7
    %v1597 = vsub.s32 %v1594, %v1596
    %v1598 = vrot.slane %v1584, %v1597
    %v1599 = vcombine.low %v1534, %v1550
    %v1600 = vcombine.high %v1534, %v1550
    %v1602 = vunpack.c.l.s4 1934713408
    %v1603 = vunpack.c.0.s8 %v1602
    %v1604 = vlaneseq
    %v1605 = vshrl.u32 %v1604, 7
    %v1606 = vsub.s32 %v1603, %v1605
    %v1607 = vrot.slane %v1599, %v1606
    %v1609 = vunpack.c.l.s4 1934713408
    %v1610 = vunpack.c.0.s8 %v1609
    %v1611 = vlaneseq
    %v1612 = vshrl.u32 %v1611, 7
    %v1613 = vsub.s32 %v1610, %v1612
    %v1614 = vrot.slane %v1600, %v1613
    %v1615 = vcombine.low %v1559, %v1575
    %v1616 = vcombine.high %v1559, %v1575
    %v1618 = vunpack.c.l.s4 1934713408
    %v1619 = vunpack.c.0.s8 %v1618
    %v1620 = vlaneseq
    %v1621 = vshrl.u32 %v1620, 7
    %v1622 = vsub.s32 %v1619, %v1621
    %v1623 = vrot.slane %v1615, %v1622
    %v1625 = vunpack.c.l.s4 1934713408
    %v1626 = vunpack.c.0.s8 %v1625
    %v1627 = vlaneseq
    %v1628 = vshrl.u32 %v1627, 7
    %v1629 = vsub.s32 %v1626, %v1628
    %v1630 = vrot.slane %v1616, %v1629
    %v1631 = vcombine.low %v1566, %v1582
    %v1632 = vcombine.high %v1566, %v1582
    %v1634 = vunpack.c.l.s4 1934713408
    %v1635 = vunpack.c.0.s8 %v1634
    %v1636 = vlaneseq
    %v1637 = vshrl.u32 %v1636, 7
    %v1638 = vsub.s32 %v1635, %v1637
    %v1639 = vrot.slane %v1631, %v1638
    %v1641 = vunpack.c.l.s4 1934713408
    %v1642 = vunpack.c.0.s8 %v1641
    %v1643 = vlaneseq
    %v1644 = vshrl.u32 %v1643, 7
    %v1645 = vsub.s32 %v1642, %v1644
    %v1646 = vrot.slane %v1632, %v1645
    %v1647 = vcombine.low %v1591, %v1623
    %v1648 = vcombine.high %v1591, %v1623
    %v1649 = vcombine.low %v1598, %v1630
    %v1650 = vcombine.high %v1598, %v1630
    %v1651 = vcombine.low %v1607, %v1639
    %v1652 = vcombine.high %v1607, %v1639
    %v1653 = vcombine.low %v1614, %v1646
    %v1654 = vcombine.high %v1614, %v1646
    %v1655 = vcombine.low %v493, %v531
    %v1656 = vcombine.high %v493, %v531
    %v1658 = vunpack.c.l.s4 1983009808
    %v1659 = vunpack.c.0.s8 %v1658
    %v1660 = vlaneseq
    %v1661 = vshrl.u32 %v1660, 7
    %v1662 = vsub.s32 %v1659, %v1661
    %v1663 = vrot.slane %v1655, %v1662
    %v1665 = vunpack.c.l.s4 1983009808
    %v1666 = vunpack.c.0.s8 %v1665
    %v1667 = vlaneseq
    %v1668 = vshrl.u32 %v1667, 7
    %v1669 = vsub.s32 %v1666, %v1668
    %v1670 = vrot.slane %v1656, %v1669
    %v1671 = vcombine.low %v512, %v550
    %v1672 = vcombine.high %v512, %v550
    %v1674 = vunpack.c.l.s4 1983009808
    %v1675 = vunpack.c.0.s8 %v1674
    %v1676 = vlaneseq
    %v1677 = vshrl.u32 %v1676, 7
    %v1678 = vsub.s32 %v1675, %v1677
    %v1679 = vrot.slane %v1671, %v1678
    %v1681 = vunpack.c.l.s4 1983009808
    %v1682 = vunpack.c.0.s8 %v1681
    %v1683 = vlaneseq
    %v1684 = vshrl.u32 %v1683, 7
    %v1685 = vsub.s32 %v1682, %v1684
    %v1686 = vrot.slane %v1672, %v1685
    %v1687 = vcombine.low %v569, %v607
    %v1688 = vcombine.high %v569, %v607
    %v1690 = vunpack.c.l.s4 1983009808
    %v1691 = vunpack.c.0.s8 %v1690
    %v1692 = vlaneseq
    %v1693 = vshrl.u32 %v1692, 7
    %v1694 = vsub.s32 %v1691, %v1693
    %v1695 = vrot.slane %v1687, %v1694
    %v1697 = vunpack.c.l.s4 1983009808
    %v1698 = vunpack.c.0.s8 %v1697
    %v1699 = vlaneseq
    %v1700 = vshrl.u32 %v1699, 7
    %v1701 = vsub.s32 %v1698, %v1700
    %v1702 = vrot.slane %v1688, %v1701
    %v1703 = vcombine.low %v588, %v626
    %v1704 = vcombine.high %v588, %v626
    %v1706 = vunpack.c.l.s4 1983009808
    %v1707 = vunpack.c.0.s8 %v1706
    %v1708 = vlaneseq
    %v1709 = vshrl.u32 %v1708, 7
    %v1710 = vsub.s32 %v1707, %v1709
    %v1711 = vrot.slane %v1703, %v1710
    %v1713 = vunpack.c.l.s4 1983009808
    %v1714 = vunpack.c.0.s8 %v1713
    %v1715 = vlaneseq
    %v1716 = vshrl.u32 %v1715, 7
    %v1717 = vsub.s32 %v1714, %v1716
    %v1718 = vrot.slane %v1704, %v1717
    %v1719 = vcombine.low %v1663, %v1679
    %v1720 = vcombine.high %v1663, %v1679
    %v1722 = vunpack.c.l.s4 1934713408
    %v1723 = vunpack.c.0.s8 %v1722
    %v1724 = vlaneseq
    %v1725 = vshrl.u32 %v1724, 7
    %v1726 = vsub.s32 %v1723, %v1725
    %v1727 = vrot.slane %v1719, %v1726
    %v1729 = vunpack.c.l.s4 1934713408
    %v1730 = vunpack.c.0.s8 %v1729
    %v1731 = vlaneseq
    %v1732 = vshrl.u32 %v1731, 7
    %v1733 = vsub.s32 %v1730, %v1732
    %v1734 = vrot.slane %v1720, %v1733
    %v1735 = vcombine.low %v1670, %v1686
    %v1736 = vcombine.high %v1670, %v1686
    %v1738 = vunpack.c.l.s4 1934713408
    %v1739 = vunpack.c.0.s8 %v1738
    %v1740 = vlaneseq
    %v1741 = vshrl.u32 %v1740, 7
    %v1742 = vsub.s32 %v1739, %v1741
    %v1743 = vrot.slane %v1735, %v1742
    %v1745 = vunpack.c.l.s4 1934713408
    %v1746 = vunpack.c.0.s8 %v1745
    %v1747 = vlaneseq
    %v1748 = vshrl.u32 %v1747, 7
    %v1749 = vsub.s32 %v1746, %v1748
    %v1750 = vrot.slane %v1736, %v1749
    %v1751 = vcombine.low %v1695, %v1711
    %v1752 = vcombine.high %v1695, %v1711
    %v1754 = vunpack.c.l.s4 1934713408
    %v1755 = vunpack.c.0.s8 %v1754
    %v1756 = vlaneseq
    %v1757 = vshrl.u32 %v1756, 7
    %v1758 = vsub.s32 %v1755, %v1757
    %v1759 = vrot.slane %v1751, %v1758
    %v1761 = vunpack.c.l.s4 1934713408
    %v1762 = vunpack.c.0.s8 %v1761
    %v1763 = vlaneseq
    %v1764 = vshrl.u32 %v1763, 7
    %v1765 = vsub.s32 %v1762, %v1764
    %v1766 = vrot.slane %v1752, %v1765
    %v1767 = vcombine.low %v1702, %v1718
    %v1768 = vcombine.high %v1702, %v1718
    %v1770 = vunpack.c.l.s4 1934713408
    %v1771 = vunpack.c.0.s8 %v1770
    %v1772 = vlaneseq
    %v1773 = vshrl.u32 %v1772, 7
    %v1774 = vsub.s32 %v1771, %v1773
    %v1775 = vrot.slane %v1767, %v1774
    %v1777 = vunpack.c.l.s4 1934713408
    %v1778 = vunpack.c.0.s8 %v1777
    %v1779 = vlaneseq
    %v1780 = vshrl.u32 %v1779, 7
    %v1781 = vsub.s32 %v1778, %v1780
    %v1782 = vrot.slane %v1768, %v1781
    %v1783 = vcombine.low %v1727, %v1759
    %v1784 = vcombine.high %v1727, %v1759
    %v1785 = vcombine.low %v1734, %v1766
    %v1786 = vcombine.high %v1734, %v1766
    %v1787 = vcombine.low %v1743, %v1775
    %v1788 = vcombine.high %v1743, %v1775
    %v1789 = vcombine.low %v1750, %v1782
    %v1790 = vcombine.high %v1750, %v1782
    %v1791 = vcombine.low %v645, %v683
    %v1792 = vcombine.high %v645, %v683
    %v1794 = vunpack.c.l.s4 1983009808
    %v1795 = vunpack.c.0.s8 %v1794
    %v1796 = vlaneseq
    %v1797 = vshrl.u32 %v1796, 7
    %v1798 = vsub.s32 %v1795, %v1797
    %v1799 = vrot.slane %v1791, %v1798
    %v1801 = vunpack.c.l.s4 1983009808
    %v1802 = vunpack.c.0.s8 %v1801
    %v1803 = vlaneseq
    %v1804 = vshrl.u32 %v1803, 7
    %v1805 = vsub.s32 %v1802, %v1804
    %v1806 = vrot.slane %v1792, %v1805
    %v1807 = vcombine.low %v664, %v702
    %v1808 = vcombine.high %v664, %v702
    %v1810 = vunpack.c.l.s4 1983009808
    %v1811 = vunpack.c.0.s8 %v1810
    %v1812 = vlaneseq
    %v1813 = vshrl.u32 %v1812, 7
    %v1814 = vsub.s32 %v1811, %v1813
    %v1815 = vrot.slane %v1807, %v1814
    %v1817 = vunpack.c.l.s4 1983009808
    %v1818 = vunpack.c.0.s8 %v1817
    %v1819 = vlaneseq
    %v1820 = vshrl.u32 %v1819, 7
    %v1821 = vsub.s32 %v1818, %v1820
    %v1822 = vrot.slane %v1808, %v1821
    %v1823 = vcombine.low %v721, %v759
    %v1824 = vcombine.high %v721, %v759
    %v1826 = vunpack.c.l.s4 1983009808
    %v1827 = vunpack.c.0.s8 %v1826
    %v1828 = vlaneseq
    %v1829 = vshrl.u32 %v1828, 7
    %v1830 = vsub.s32 %v1827, %v1829
    %v1831 = vrot.slane %v1823, %v1830
    %v1833 = vunpack.c.l.s4 1983009808
    %v1834 = vunpack.c.0.s8 %v1833
    %v1835 = vlaneseq
    %v1836 = vshrl.u32 %v1835, 7
    %v1837 = vsub.s32 %v1834, %v1836
    %v1838 = vrot.slane %v1824, %v1837
    %v1839 = vcombine.low %v740, %v778
    %v1840 = vcombine.high %v740, %v778
    %v1842 = vunpack.c.l.s4 1983009808
    %v1843 = vunpack.c.0.s8 %v1842
    %v1844 = vlaneseq
    %v1845 = vshrl.u32 %v1844, 7
    %v1846 = vsub.s32 %v1843, %v1845
    %v1847 = vrot.slane %v1839, %v1846
    %v1849 = vunpack.c.l.s4 1983009808
    %v1850 = vunpack.c.0.s8 %v1849
    %v1851 = vlaneseq
    %v1852 = vshrl.u32 %v1851, 7
    %v1853 = vsub.s32 %v1850, %v1852
    %v1854 = vrot.slane %v1840, %v1853
    %v1855 = vcombine.low %v1799, %v1815
    %v1856 = vcombine.high %v1799, %v1815
    %v1858 = vunpack.c.l.s4 1934713408
    %v1859 = vunpack.c.0.s8 %v1858
    %v1860 = vlaneseq
    %v1861 = vshrl.u32 %v1860, 7
    %v1862 = vsub.s32 %v1859, %v1861
    %v1863 = vrot.slane %v1855, %v1862
    %v1865 = vunpack.c.l.s4 1934713408
    %v1866 = vunpack.c.0.s8 %v1865
    %v1867 = vlaneseq
    %v1868 = vshrl.u32 %v1867, 7
    %v1869 = vsub.s32 %v1866, %v1868
    %v1870 = vrot.slane %v1856, %v1869
    %v1871 = vcombine.low %v1806, %v1822
    %v1872 = vcombine.high %v1806, %v1822
    %v1874 = vunpack.c.l.s4 1934713408
    %v1875 = vunpack.c.0.s8 %v1874
    %v1876 = vlaneseq
    %v1877 = vshrl.u32 %v1876, 7
    %v1878 = vsub.s32 %v1875, %v1877
    %v1879 = vrot.slane %v1871, %v1878
    %v1881 = vunpack.c.l.s4 1934713408
    %v1882 = vunpack.c.0.s8 %v1881
    %v1883 = vlaneseq
    %v1884 = vshrl.u32 %v1883, 7
    %v1885 = vsub.s32 %v1882, %v1884
    %v1886 = vrot.slane %v1872, %v1885
    %v1887 = vcombine.low %v1831, %v1847
    %v1888 = vcombine.high %v1831, %v1847
    %v1890 = vunpack.c.l.s4 1934713408
    %v1891 = vunpack.c.0.s8 %v1890
    %v1892 = vlaneseq
    %v1893 = vshrl.u32 %v1892, 7
    %v1894 = vsub.s32 %v1891, %v1893
    %v1895 = vrot.slane %v1887, %v1894
    %v1897 = vunpack.c.l.s4 1934713408
    %v1898 = vunpack.c.0.s8 %v1897
    %v1899 = vlaneseq
    %v1900 = vshrl.u32 %v1899, 7
    %v1901 = vsub.s32 %v1898, %v1900
    %v1902 = vrot.slane %v1888, %v1901
    %v1903 = vcombine.low %v1838, %v1854
    %v1904 = vcombine.high %v1838, %v1854
    %v1906 = vunpack.c.l.s4 1934713408
    %v1907 = vunpack.c.0.s8 %v1906
    %v1908 = vlaneseq
    %v1909 = vshrl.u32 %v1908, 7
    %v1910 = vsub.s32 %v1907, %v1909
    %v1911 = vrot.slane %v1903, %v1910
    %v1913 = vunpack.c.l.s4 1934713408
    %v1914 = vunpack.c.0.s8 %v1913
    %v1915 = vlaneseq
    %v1916 = vshrl.u32 %v1915, 7
    %v1917 = vsub.s32 %v1914, %v1916
    %v1918 = vrot.slane %v1904, %v1917
    %v1919 = vcombine.low %v1863, %v1895
    %v1920 = vcombine.high %v1863, %v1895
    %v1921 = vcombine.low %v1870, %v1902
    %v1922 = vcombine.high %v1870, %v1902
    %v1923 = vcombine.low %v1879, %v1911
    %v1924 = vcombine.high %v1879, %v1911
    %v1925 = vcombine.low %v1886, %v1918
    %v1926 = vcombine.high %v1886, %v1918
    %v1927 = vcombine.low %v797, %v835
    %v1928 = vcombine.high %v797, %v835
    %v1930 = vunpack.c.l.s4 1983009808
    %v1931 = vunpack.c.0.s8 %v1930
    %v1932 = vlaneseq
    %v1933 = vshrl.u32 %v1932, 7
    %v1934 = vsub.s32 %v1931, %v1933
    %v1935 = vrot.slane %v1927, %v1934
    %v1937 = vunpack.c.l.s4 1983009808
    %v1938 = vunpack.c.0.s8 %v1937
    %v1939 = vlaneseq
    %v1940 = vshrl.u32 %v1939, 7
    %v1941 = vsub.s32 %v1938, %v1940
    %v1942 = vrot.slane %v1928, %v1941
    %v1943 = vcombine.low %v816, %v854
    %v1944 = vcombine.high %v816, %v854
    %v1946 = vunpack.c.l.s4 1983009808
    %v1947 = vunpack.c.0.s8 %v1946
    %v1948 = vlaneseq
    %v1949 = vshrl.u32 %v1948, 7
    %v1950 = vsub.s32 %v1947, %v1949
    %v1951 = vrot.slane %v1943, %v1950
    %v1953 = vunpack.c.l.s4 1983009808
    %v1954 = vunpack.c.0.s8 %v1953
    %v1955 = vlaneseq
    %v1956 = vshrl.u32 %v1955, 7
    %v1957 = vsub.s32 %v1954, %v1956
    %v1958 = vrot.slane %v1944, %v1957
    %v1959 = vcombine.low %v873, %v911
    %v1960 = vcombine.high %v873, %v911
    %v1962 = vunpack.c.l.s4 1983009808
    %v1963 = vunpack.c.0.s8 %v1962
    %v1964 = vlaneseq
    %v1965 = vshrl.u32 %v1964, 7
    %v1966 = vsub.s32 %v1963, %v1965
    %v1967 = vrot.slane %v1959, %v1966
    %v1969 = vunpack.c.l.s4 1983009808
    %v1970 = vunpack.c.0.s8 %v1969
    %v1971 = vlaneseq
    %v1972 = vshrl.u32 %v1971, 7
    %v1973 = vsub.s32 %v1970, %v1972
    %v1974 = vrot.slane %v1960, %v1973
    %v1975 = vcombine.low %v892, %v930
    %v1976 = vcombine.high %v892, %v930
    %v1978 = vunpack.c.l.s4 1983009808
    %v1979 = vunpack.c.0.s8 %v1978
    %v1980 = vlaneseq
    %v1981 = vshrl.u32 %v1980, 7
    %v1982 = vsub.s32 %v1979, %v1981
    %v1983 = vrot.slane %v1975, %v1982
    %v1985 = vunpack.c.l.s4 1983009808
    %v1986 = vunpack.c.0.s8 %v1985
    %v1987 = vlaneseq
    %v1988 = vshrl.u32 %v1987, 7
    %v1989 = vsub.s32 %v1986, %v1988
    %v1990 = vrot.slane %v1976, %v1989
    %v1991 = vcombine.low %v1935, %v1951
    %v1992 = vcombine.high %v1935, %v1951
    %v1994 = vunpack.c.l.s4 1934713408
    %v1995 = vunpack.c.0.s8 %v1994
    %v1996 = vlaneseq
    %v1997 = vshrl.u32 %v1996, 7
    %v1998 = vsub.s32 %v1995, %v1997
    %v1999 = vrot.slane %v1991, %v1998
    %v2001 = vunpack.c.l.s4 1934713408
    %v2002 = vunpack.c.0.s8 %v2001
    %v2003 = vlaneseq
    %v2004 = vshrl.u32 %v2003, 7
    %v2005 = vsub.s32 %v2002, %v2004
    %v2006 = vrot.slane %v1992, %v2005
    %v2007 = vcombine.low %v1942, %v1958
    %v2008 = vcombine.high %v1942, %v1958
    %v2010 = vunpack.c.l.s4 1934713408
    %v2011 = vunpack.c.0.s8 %v2010
    %v2012 = vlaneseq
    %v2013 = vshrl.u32 %v2012, 7
    %v2014 = vsub.s32 %v2011, %v2013
    %v2015 = vrot.slane %v2007, %v2014
    %v2017 = vunpack.c.l.s4 1934713408
    %v2018 = vunpack.c.0.s8 %v2017
    %v2019 = vlaneseq
    %v2020 = vshrl.u32 %v2019, 7
    %v2021 = vsub.s32 %v2018, %v2020
    %v2022 = vrot.slane %v2008, %v2021
    %v2023 = vcombine.low %v1967, %v1983
    %v2024 = vcombine.high %v1967, %v1983
    %v2026 = vunpack.c.l.s4 1934713408
    %v2027 = vunpack.c.0.s8 %v2026
    %v2028 = vlaneseq
    %v2029 = vshrl.u32 %v2028, 7
    %v2030 = vsub.s32 %v2027, %v2029
    %v2031 = vrot.slane %v2023, %v2030
    %v2033 = vunpack.c.l.s4 1934713408
    %v2034 = vunpack.c.0.s8 %v2033
    %v2035 = vlaneseq
    %v2036 = vshrl.u32 %v2035, 7
    %v2037 = vsub.s32 %v2034, %v2036
    %v2038 = vrot.slane %v2024, %v2037
    %v2039 = vcombine.low %v1974, %v1990
    %v2040 = vcombine.high %v1974, %v1990
    %v2042 = vunpack.c.l.s4 1934713408
    %v2043 = vunpack.c.0.s8 %v2042
    %v2044 = vlaneseq
    %v2045 = vshrl.u32 %v2044, 7
    %v2046 = vsub.s32 %v2043, %v2045
    %v2047 = vrot.slane %v2039, %v2046
    %v2049 = vunpack.c.l.s4 1934713408
    %v2050 = vunpack.c.0.s8 %v2049
    %v2051 = vlaneseq
    %v2052 = vshrl.u32 %v2051, 7
    %v2053 = vsub.s32 %v2050, %v2052
    %v2054 = vrot.slane %v2040, %v2053
    %v2055 = vcombine.low %v1999, %v2031
    %v2056 = vcombine.high %v1999, %v2031
    %v2057 = vcombine.low %v2006, %v2038
    %v2058 = vcombine.high %v2006, %v2038
    %v2059 = vcombine.low %v2015, %v2047
    %v2060 = vcombine.high %v2015, %v2047
    %v2061 = vcombine.low %v2022, %v2054
    %v2062 = vcombine.high %v2022, %v2054
    %v2063 = vcombine.low %v949, %v987
    %v2064 = vcombine.high %v949, %v987
    %v2066 = vunpack.c.l.s4 1983009808
    %v2067 = vunpack.c.0.s8 %v2066
    %v2068 = vlaneseq
    %v2069 = vshrl.u32 %v2068, 7
    %v2070 = vsub.s32 %v2067, %v2069
    %v2071 = vrot.slane %v2063, %v2070
    %v2073 = vunpack.c.l.s4 1983009808
    %v2074 = vunpack.c.0.s8 %v2073
    %v2075 = vlaneseq
    %v2076 = vshrl.u32 %v2075, 7
    %v2077 = vsub.s32 %v2074, %v2076
    %v2078 = vrot.slane %v2064, %v2077
    %v2079 = vcombine.low %v968, %v1006
    %v2080 = vcombine.high %v968, %v1006
    %v2082 = vunpack.c.l.s4 1983009808
    %v2083 = vunpack.c.0.s8 %v2082
    %v2084 = vlaneseq
    %v2085 = vshrl.u32 %v2084, 7
    %v2086 = vsub.s32 %v2083, %v2085
    %v2087 = vrot.slane %v2079, %v2086
    %v2089 = vunpack.c.l.s4 1983009808
    %v2090 = vunpack.c.0.s8 %v2089
    %v2091 = vlaneseq
    %v2092 = vshrl.u32 %v2091, 7
    %v2093 = vsub.s32 %v2090, %v2092
    %v2094 = vrot.slane %v2080, %v2093
    %v2095 = vcombine.low %v1025, %v1063
    %v2096 = vcombine.high %v1025, %v1063
    %v2098 = vunpack.c.l.s4 1983009808
    %v2099 = vunpack.c.0.s8 %v2098
    %v2100 = vlaneseq
    %v2101 = vshrl.u32 %v2100, 7
    %v2102 = vsub.s32 %v2099, %v2101
    %v2103 = vrot.slane %v2095, %v2102
    %v2105 = vunpack.c.l.s4 1983009808
    %v2106 = vunpack.c.0.s8 %v2105
    %v2107 = vlaneseq
    %v2108 = vshrl.u32 %v2107, 7
    %v2109 = vsub.s32 %v2106, %v2108
    %v2110 = vrot.slane %v2096, %v2109
    %v2111 = vcombine.low %v1044, %v1082
    %v2112 = vcombine.high %v1044, %v1082
    %v2114 = vunpack.c.l.s4 1983009808
    %v2115 = vunpack.c.0.s8 %v2114
    %v2116 = vlaneseq
    %v2117 = vshrl.u32 %v2116, 7
    %v2118 = vsub.s32 %v2115, %v2117
    %v2119 = vrot.slane %v2111, %v2118
    %v2121 = vunpack.c.l.s4 1983009808
    %v2122 = vunpack.c.0.s8 %v2121
    %v2123 = vlaneseq
    %v2124 = vshrl.u32 %v2123, 7
    %v2125 = vsub.s32 %v2122, %v2124
    %v2126 = vrot.slane %v2112, %v2125
    %v2127 = vcombine.low %v2071, %v2087
    %v2128 = vcombine.high %v2071, %v2087
    %v2130 = vunpack.c.l.s4 1934713408
    %v2131 = vunpack.c.0.s8 %v2130
    %v2132 = vlaneseq
    %v2133 = vshrl.u32 %v2132, 7
    %v2134 = vsub.s32 %v2131, %v2133
    %v2135 = vrot.slane %v2127, %v2134
    %v2137 = vunpack.c.l.s4 1934713408
    %v2138 = vunpack.c.0.s8 %v2137
    %v2139 = vlaneseq
    %v2140 = vshrl.u32 %v2139, 7
    %v2141 = vsub.s32 %v2138, %v2140
    %v2142 = vrot.slane %v2128, %v2141
    %v2143 = vcombine.low %v2078, %v2094
    %v2144 = vcombine.high %v2078, %v2094
    %v2146 = vunpack.c.l.s4 1934713408
    %v2147 = vunpack.c.0.s8 %v2146
    %v2148 = vlaneseq
    %v2149 = vshrl.u32 %v2148, 7
    %v2150 = vsub.s32 %v2147, %v2149
    %v2151 = vrot.slane %v2143, %v2150
    %v2153 = vunpack.c.l.s4 1934713408
    %v2154 = vunpack.c.0.s8 %v2153
    %v2155 = vlaneseq
    %v2156 = vshrl.u32 %v2155, 7
    %v2157 = vsub.s32 %v2154, %v2156
    %v2158 = vrot.slane %v2144, %v2157
    %v2159 = vcombine.low %v2103, %v2119
    %v2160 = vcombine.high %v2103, %v2119
    %v2162 = vunpack.c.l.s4 1934713408
    %v2163 = vunpack.c.0.s8 %v2162
    %v2164 = vlaneseq
    %v2165 = vshrl.u32 %v2164, 7
    %v2166 = vsub.s32 %v2163, %v2165
    %v2167 = vrot.slane %v2159, %v2166
    %v2169 = vunpack.c.l.s4 1934713408
    %v2170 = vunpack.c.0.s8 %v2169
    %v2171 = vlaneseq
    %v2172 = vshrl.u32 %v2171, 7
    %v2173 = vsub.s32 %v2170, %v2172
    %v2174 = vrot.slane %v2160, %v2173
    %v2175 = vcombine.low %v2110, %v2126
    %v2176 = vcombine.high %v2110, %v2126
    %v2178 = vunpack.c.l.s4 1934713408
    %v2179 = vunpack.c.0.s8 %v2178
    %v2180 = vlaneseq
    %v2181 = vshrl.u32 %v2180, 7
    %v2182 = vsub.s32 %v2179, %v2181
    %v2183 = vrot.slane %v2175, %v2182
    %v2185 = vunpack.c.l.s4 1934713408
    %v2186 = vunpack.c.0.s8 %v2185
    %v2187 = vlaneseq
    %v2188 = vshrl.u32 %v2187, 7
    %v2189 = vsub.s32 %v2186, %v2188
    %v2190 = vrot.slane %v2176, %v2189
    %v2191 = vcombine.low %v2135, %v2167
    %v2192 = vcombine.high %v2135, %v2167
    %v2193 = vcombine.low %v2142, %v2174
    %v2194 = vcombine.high %v2142, %v2174
    %v2195 = vcombine.low %v2151, %v2183
    %v2196 = vcombine.high %v2151, %v2183
    %v2197 = vcombine.low %v2158, %v2190
    %v2198 = vcombine.high %v2158, %v2190
    %v2199 = vcombine.low %v1101, %v1139
    %v2200 = vcombine.high %v1101, %v1139
    %v2202 = vunpack.c.l.s4 1983009808
    %v2203 = vunpack.c.0.s8 %v2202
    %v2204 = vlaneseq
    %v2205 = vshrl.u32 %v2204, 7
    %v2206 = vsub.s32 %v2203, %v2205
    %v2207 = vrot.slane %v2199, %v2206
    %v2209 = vunpack.c.l.s4 1983009808
    %v2210 = vunpack.c.0.s8 %v2209
    %v2211 = vlaneseq
    %v2212 = vshrl.u32 %v2211, 7
    %v2213 = vsub.s32 %v2210, %v2212
    %v2214 = vrot.slane %v2200, %v2213
    %v2215 = vcombine.low %v1120, %v1158
    %v2216 = vcombine.high %v1120, %v1158
    %v2218 = vunpack.c.l.s4 1983009808
    %v2219 = vunpack.c.0.s8 %v2218
    %v2220 = vlaneseq
    %v2221 = vshrl.u32 %v2220, 7
    %v2222 = vsub.s32 %v2219, %v2221
    %v2223 = vrot.slane %v2215, %v2222
    %v2225 = vunpack.c.l.s4 1983009808
    %v2226 = vunpack.c.0.s8 %v2225
    %v2227 = vlaneseq
    %v2228 = vshrl.u32 %v2227, 7
    %v2229 = vsub.s32 %v2226, %v2228
    %v2230 = vrot.slane %v2216, %v2229
    %v2231 = vcombine.low %v1177, %v1215
    %v2232 = vcombine.high %v1177, %v1215
    %v2234 = vunpack.c.l.s4 1983009808
    %v2235 = vunpack.c.0.s8 %v2234
    %v2236 = vlaneseq
    %v2237 = vshrl.u32 %v2236, 7
    %v2238 = vsub.s32 %v2235, %v2237
    %v2239 = vrot.slane %v2231, %v2238
    %v2241 = vunpack.c.l.s4 1983009808
    %v2242 = vunpack.c.0.s8 %v2241
    %v2243 = vlaneseq
    %v2244 = vshrl.u32 %v2243, 7
    %v2245 = vsub.s32 %v2242, %v2244
    %v2246 = vrot.slane %v2232, %v2245
    %v2247 = vcombine.low %v1196, %v1234
    %v2248 = vcombine.high %v1196, %v1234
    %v2250 = vunpack.c.l.s4 1983009808
    %v2251 = vunpack.c.0.s8 %v2250
    %v2252 = vlaneseq
    %v2253 = vshrl.u32 %v2252, 7
    %v2254 = vsub.s32 %v2251, %v2253
    %v2255 = vrot.slane %v2247, %v2254
    %v2257 = vunpack.c.l.s4 1983009808
    %v2258 = vunpack.c.0.s8 %v2257
    %v2259 = vlaneseq
    %v2260 = vshrl.u32 %v2259, 7
    %v2261 = vsub.s32 %v2258, %v2260
    %v2262 = vrot.slane %v2248, %v2261
    %v2263 = vcombine.low %v2207, %v2223
    %v2264 = vcombine.high %v2207, %v2223
    %v2266 = vunpack.c.l.s4 1934713408
    %v2267 = vunpack.c.0.s8 %v2266
    %v2268 = vlaneseq
    %v2269 = vshrl.u32 %v2268, 7
    %v2270 = vsub.s32 %v2267, %v2269
    %v2271 = vrot.slane %v2263, %v2270
    %v2273 = vunpack.c.l.s4 1934713408
    %v2274 = vunpack.c.0.s8 %v2273
    %v2275 = vlaneseq
    %v2276 = vshrl.u32 %v2275, 7
    %v2277 = vsub.s32 %v2274, %v2276
    %v2278 = vrot.slane %v2264, %v2277
    %v2279 = vcombine.low %v2214, %v2230
    %v2280 = vcombine.high %v2214, %v2230
    %v2282 = vunpack.c.l.s4 1934713408
    %v2283 = vunpack.c.0.s8 %v2282
    %v2284 = vlaneseq
    %v2285 = vshrl.u32 %v2284, 7
    %v2286 = vsub.s32 %v2283, %v2285
    %v2287 = vrot.slane %v2279, %v2286
    %v2289 = vunpack.c.l.s4 1934713408
    %v2290 = vunpack.c.0.s8 %v2289
    %v2291 = vlaneseq
    %v2292 = vshrl.u32 %v2291, 7
    %v2293 = vsub.s32 %v2290, %v2292
    %v2294 = vrot.slane %v2280, %v2293
    %v2295 = vcombine.low %v2239, %v2255
    %v2296 = vcombine.high %v2239, %v2255
    %v2298 = vunpack.c.l.s4 1934713408
    %v2299 = vunpack.c.0.s8 %v2298
    %v2300 = vlaneseq
    %v2301 = vshrl.u32 %v2300, 7
    %v2302 = vsub.s32 %v2299, %v2301
    %v2303 = vrot.slane %v2295, %v2302
    %v2305 = vunpack.c.l.s4 1934713408
    %v2306 = vunpack.c.0.s8 %v2305
    %v2307 = vlaneseq
    %v2308 = vshrl.u32 %v2307, 7
    %v2309 = vsub.s32 %v2306, %v2308
    %v2310 = vrot.slane %v2296, %v2309
    %v2311 = vcombine.low %v2246, %v2262
    %v2312 = vcombine.high %v2246, %v2262
    %v2314 = vunpack.c.l.s4 1934713408
    %v2315 = vunpack.c.0.s8 %v2314
    %v2316 = vlaneseq
    %v2317 = vshrl.u32 %v2316, 7
    %v2318 = vsub.s32 %v2315, %v2317
    %v2319 = vrot.slane %v2311, %v2318
    %v2321 = vunpack.c.l.s4 1934713408
    %v2322 = vunpack.c.0.s8 %v2321
    %v2323 = vlaneseq
    %v2324 = vshrl.u32 %v2323, 7
    %v2325 = vsub.s32 %v2322, %v2324
    %v2326 = vrot.slane %v2312, %v2325
    %v2327 = vcombine.low %v2271, %v2303
    %v2328 = vcombine.high %v2271, %v2303
    %v2329 = vcombine.low %v2278, %v2310
    %v2330 = vcombine.high %v2278, %v2310
    %v2331 = vcombine.low %v2287, %v2319
    %v2332 = vcombine.high %v2287, %v2319
    %v2333 = vcombine.low %v2294, %v2326
    %v2334 = vcombine.high %v2294, %v2326
    %v2335 = vcombine.low %v41, %v79
    %v2336 = vcombine.high %v41, %v79
    %v2338 = vunpack.c.l.s4 1983009808
    %v2339 = vunpack.c.0.s8 %v2338
    %v2340 = vlaneseq
    %v2341 = vshrl.u32 %v2340, 7
    %v2342 = vsub.s32 %v2339, %v2341
    %v2343 = vrot.slane %v2335, %v2342
    %v2345 = vunpack.c.l.s4 1983009808
    %v2346 = vunpack.c.0.s8 %v2345
    %v2347 = vlaneseq
    %v2348 = vshrl.u32 %v2347, 7
    %v2349 = vsub.s32 %v2346, %v2348
    %v2350 = vrot.slane %v2336, %v2349
    %v2351 = vcombine.low %v60, %v98
    %v2352 = vcombine.high %v60, %v98
    %v2354 = vunpack.c.l.s4 1983009808
    %v2355 = vunpack.c.0.s8 %v2354
    %v2356 = vlaneseq
    %v2357 = vshrl.u32 %v2356, 7
    %v2358 = vsub.s32 %v2355, %v2357
    %v2359 = vrot.slane %v2351, %v2358
    %v2361 = vunpack.c.l.s4 1983009808
    %v2362 = vunpack.c.0.s8 %v2361
    %v2363 = vlaneseq
    %v2364 = vshrl.u32 %v2363, 7
    %v2365 = vsub.s32 %v2362, %v2364
    %v2366 = vrot.slane %v2352, %v2365
    %v2367 = vcombine.low %v117, %v155
    %v2368 = vcombine.high %v117, %v155
    %v2370 = vunpack.c.l.s4 1983009808
    %v2371 = vunpack.c.0.s8 %v2370
    %v2372 = vlaneseq
    %v2373 = vshrl.u32 %v2372, 7
    %v2374 = vsub.s32 %v2371, %v2373
    %v2375 = vrot.slane %v2367, %v2374
    %v2377 = vunpack.c.l.s4 1983009808
    %v2378 = vunpack.c.0.s8 %v2377
    %v2379 = vlaneseq
    %v2380 = vshrl.u32 %v2379, 7
    %v2381 = vsub.s32 %v2378, %v2380
    %v2382 = vrot.slane %v2368, %v2381
    %v2383 = vcombine.low %v136, %v174
    %v2384 = vcombine.high %v136, %v174
    %v2386 = vunpack.c.l.s4 1983009808
    %v2387 = vunpack.c.0.s8 %v2386
    %v2388 = vlaneseq
    %v2389 = vshrl.u32 %v2388, 7
    %v2390 = vsub.s32 %v2387, %v2389
    %v2391 = vrot.slane %v2383, %v2390
    %v2393 = vunpack.c.l.s4 1983009808
    %v2394 = vunpack.c.0.s8 %v2393
    %v2395 = vlaneseq
    %v2396 = vshrl.u32 %v2395, 7
    %v2397 = vsub.s32 %v2394, %v2396
    %v2398 = vrot.slane %v2384, %v2397
    %v2399 = vcombine.low %v2343, %v2359
    %v2400 = vcombine.high %v2343, %v2359
    %v2402 = vunpack.c.l.s4 1934713408
    %v2403 = vunpack.c.0.s8 %v2402
    %v2404 = vlaneseq
    %v2405 = vshrl.u32 %v2404, 7
    %v2406 = vsub.s32 %v2403, %v2405
    %v2407 = vrot.slane %v2399, %v2406
    %v2409 = vunpack.c.l.s4 1934713408
    %v2410 = vunpack.c.0.s8 %v2409
    %v2411 = vlaneseq
    %v2412 = vshrl.u32 %v2411, 7
    %v2413 = vsub.s32 %v2410, %v2412
    %v2414 = vrot.slane %v2400, %v2413
    %v2415 = vcombine.low %v2350, %v2366
    %v2416 = vcombine.high %v2350, %v2366
    %v2418 = vunpack.c.l.s4 1934713408
    %v2419 = vunpack.c.0.s8 %v2418
    %v2420 = vlaneseq
    %v2421 = vshrl.u32 %v2420, 7
    %v2422 = vsub.s32 %v2419, %v2421
    %v2423 = vrot.slane %v2415, %v2422
    %v2425 = vunpack.c.l.s4 1934713408
    %v2426 = vunpack.c.0.s8 %v2425
    %v2427 = vlaneseq
    %v2428 = vshrl.u32 %v2427, 7
    %v2429 = vsub.s32 %v2426, %v2428
    %v2430 = vrot.slane %v2416, %v2429
    %v2431 = vcombine.low %v2375, %v2391
    %v2432 = vcombine.high %v2375, %v2391
    %v2434 = vunpack.c.l.s4 1934713408
    %v2435 = vunpack.c.0.s8 %v2434
    %v2436 = vlaneseq
    %v2437 = vshrl.u32 %v2436, 7
    %v2438 = vsub.s32 %v2435, %v2437
    %v2439 = vrot.slane %v2431, %v2438
    %v2441 = vunpack.c.l.s4 1934713408
    %v2442 = vunpack.c.0.s8 %v2441
    %v2443 = vlaneseq
    %v2444 = vshrl.u32 %v2443, 7
    %v2445 = vsub.s32 %v2442, %v2444
    %v2446 = vrot.slane %v2432, %v2445
    %v2447 = vcombine.low %v2382, %v2398
    %v2448 = vcombine.high %v2382, %v2398
    %v2450 = vunpack.c.l.s4 1934713408
    %v2451 = vunpack.c.0.s8 %v2450
    %v2452 = vlaneseq
    %v2453 = vshrl.u32 %v2452, 7
    %v2454 = vsub.s32 %v2451, %v2453
    %v2455 = vrot.slane %v2447, %v2454
    %v2457 = vunpack.c.l.s4 1934713408
    %v2458 = vunpack.c.0.s8 %v2457
    %v2459 = vlaneseq
    %v2460 = vshrl.u32 %v2459, 7
    %v2461 = vsub.s32 %v2458, %v2460
    %v2462 = vrot.slane %v2448, %v2461
    %v2463 = vcombine.low %v2407, %v2439
    %v2464 = vcombine.high %v2407, %v2439
    %v2465 = vcombine.low %v2414, %v2446
    %v2466 = vcombine.high %v2414, %v2446
    %v2467 = vcombine.low %v2423, %v2455
    %v2468 = vcombine.high %v2423, %v2455
    %v2469 = vcombine.low %v2430, %v2462
    %v2470 = vcombine.high %v2430, %v2462
    %v2471 = vcombine.low %v193, %v231
    %v2472 = vcombine.high %v193, %v231
    %v2474 = vunpack.c.l.s4 1983009808
    %v2475 = vunpack.c.0.s8 %v2474
    %v2476 = vlaneseq
    %v2477 = vshrl.u32 %v2476, 7
    %v2478 = vsub.s32 %v2475, %v2477
    %v2479 = vrot.slane %v2471, %v2478
    %v2481 = vunpack.c.l.s4 1983009808
    %v2482 = vunpack.c.0.s8 %v2481
    %v2483 = vlaneseq
    %v2484 = vshrl.u32 %v2483, 7
    %v2485 = vsub.s32 %v2482, %v2484
    %v2486 = vrot.slane %v2472, %v2485
    %v2487 = vcombine.low %v212, %v250
    %v2488 = vcombine.high %v212, %v250
    %v2490 = vunpack.c.l.s4 1983009808
    %v2491 = vunpack.c.0.s8 %v2490
    %v2492 = vlaneseq
    %v2493 = vshrl.u32 %v2492, 7
    %v2494 = vsub.s32 %v2491, %v2493
    %v2495 = vrot.slane %v2487, %v2494
    %v2497 = vunpack.c.l.s4 1983009808
    %v2498 = vunpack.c.0.s8 %v2497
    %v2499 = vlaneseq
    %v2500 = vshrl.u32 %v2499, 7
    %v2501 = vsub.s32 %v2498, %v2500
    %v2502 = vrot.slane %v2488, %v2501
    %v2503 = vcombine.low %v269, %v307
    %v2504 = vcombine.high %v269, %v307
    %v2506 = vunpack.c.l.s4 1983009808
    %v2507 = vunpack.c.0.s8 %v2506
    %v2508 = vlaneseq
    %v2509 = vshrl.u32 %v2508, 7
    %v2510 = vsub.s32 %v2507, %v2509
    %v2511 = vrot.slane %v2503, %v2510
    %v2513 = vunpack.c.l.s4 1983009808
    %v2514 = vunpack.c.0.s8 %v2513
    %v2515 = vlaneseq
    %v2516 = vshrl.u32 %v2515, 7
    %v2517 = vsub.s32 %v2514, %v2516
    %v2518 = vrot.slane %v2504, %v2517
    %v2519 = vcombine.low %v288, %v326
    %v2520 = vcombine.high %v288, %v326
    %v2522 = vunpack.c.l.s4 1983009808
    %v2523 = vunpack.c.0.s8 %v2522
    %v2524 = vlaneseq
    %v2525 = vshrl.u32 %v2524, 7
    %v2526 = vsub.s32 %v2523, %v2525
    %v2527 = vrot.slane %v2519, %v2526
    %v2529 = vunpack.c.l.s4 1983009808
    %v2530 = vunpack.c.0.s8 %v2529
    %v2531 = vlaneseq
    %v2532 = vshrl.u32 %v2531, 7
    %v2533 = vsub.s32 %v2530, %v2532
    %v2534 = vrot.slane %v2520, %v2533
    %v2535 = vcombine.low %v2479, %v2495
    %v2536 = vcombine.high %v2479, %v2495
    %v2538 = vunpack.c.l.s4 1934713408
    %v2539 = vunpack.c.0.s8 %v2538
    %v2540 = vlaneseq
    %v2541 = vshrl.u32 %v2540, 7
    %v2542 = vsub.s32 %v2539, %v2541
    %v2543 = vrot.slane %v2535, %v2542
    %v2545 = vunpack.c.l.s4 1934713408
    %v2546 = vunpack.c.0.s8 %v2545
    %v2547 = vlaneseq
    %v2548 = vshrl.u32 %v2547, 7
    %v2549 = vsub.s32 %v2546, %v2548
    %v2550 = vrot.slane %v2536, %v2549
    %v2551 = vcombine.low %v2486, %v2502
    %v2552 = vcombine.high %v2486, %v2502
    %v2554 = vunpack.c.l.s4 1934713408
    %v2555 = vunpack.c.0.s8 %v2554
    %v2556 = vlaneseq
    %v2557 = vshrl.u32 %v2556, 7
    %v2558 = vsub.s32 %v2555, %v2557
    %v2559 = vrot.slane %v2551, %v2558
    %v2561 = vunpack.c.l.s4 1934713408
    %v2562 = vunpack.c.0.s8 %v2561
    %v2563 = vlaneseq
    %v2564 = vshrl.u32 %v2563, 7
    %v2565 = vsub.s32 %v2562, %v2564
    %v2566 = vrot.slane %v2552, %v2565
    %v2567 = vcombine.low %v2511, %v2527
    %v2568 = vcombine.high %v2511, %v2527
    %v2570 = vunpack.c.l.s4 1934713408
    %v2571 = vunpack.c.0.s8 %v2570
    %v2572 = vlaneseq
    %v2573 = vshrl.u32 %v2572, 7
    %v2574 = vsub.s32 %v2571, %v2573
    %v2575 = vrot.slane %v2567, %v2574
    %v2577 = vunpack.c.l.s4 1934713408
    %v2578 = vunpack.c.0.s8 %v2577
    %v2579 = vlaneseq
    %v2580 = vshrl.u32 %v2579, 7
    %v2581 = vsub.s32 %v2578, %v2580
    %v2582 = vrot.slane %v2568, %v2581
    %v2583 = vcombine.low %v2518, %v2534
    %v2584 = vcombine.high %v2518, %v2534
    %v2586 = vunpack.c.l.s4 1934713408
    %v2587 = vunpack.c.0.s8 %v2586
    %v2588 = vlaneseq
    %v2589 = vshrl.u32 %v2588, 7
    %v2590 = vsub.s32 %v2587, %v2589
    %v2591 = vrot.slane %v2583, %v2590
    %v2593 = vunpack.c.l.s4 1934713408
    %v2594 = vunpack.c.0.s8 %v2593
    %v2595 = vlaneseq
    %v2596 = vshrl.u32 %v2595, 7
    %v2597 = vsub.s32 %v2594, %v2596
    %v2598 = vrot.slane %v2584, %v2597
    %v2599 = vcombine.low %v2543, %v2575
    %v2600 = vcombine.high %v2543, %v2575
    %v2601 = vcombine.low %v2550, %v2582
    %v2602 = vcombine.high %v2550, %v2582
    %v2603 = vcombine.low %v2559, %v2591
    %v2604 = vcombine.high %v2559, %v2591
    %v2605 = vcombine.low %v2566, %v2598
    %v2606 = vcombine.high %v2566, %v2598
    %v2607 = vcombine.low %v345, %v383
    %v2608 = vcombine.high %v345, %v383
    %v2610 = vunpack.c.l.s4 1983009808
    %v2611 = vunpack.c.0.s8 %v2610
    %v2612 = vlaneseq
    %v2613 = vshrl.u32 %v2612, 7
    %v2614 = vsub.s32 %v2611, %v2613
    %v2615 = vrot.slane %v2607, %v2614
    %v2617 = vunpack.c.l.s4 1983009808
    %v2618 = vunpack.c.0.s8 %v2617
    %v2619 = vlaneseq
    %v2620 = vshrl.u32 %v2619, 7
    %v2621 = vsub.s32 %v2618, %v2620
    %v2622 = vrot.slane %v2608, %v2621
    %v2623 = vcombine.low %v364, %v402
    %v2624 = vcombine.high %v364, %v402
    %v2626 = vunpack.c.l.s4 1983009808
    %v2627 = vunpack.c.0.s8 %v2626
    %v2628 = vlaneseq
    %v2629 = vshrl.u32 %v2628, 7
    %v2630 = vsub.s32 %v2627, %v2629
    %v2631 = vrot.slane %v2623, %v2630
    %v2633 = vunpack.c.l.s4 1983009808
    %v2634 = vunpack.c.0.s8 %v2633
    %v2635 = vlaneseq
    %v2636 = vshrl.u32 %v2635, 7
    %v2637 = vsub.s32 %v2634, %v2636
    %v2638 = vrot.slane %v2624, %v2637
    %v2639 = vcombine.low %v421, %v459
    %v2640 = vcombine.high %v421, %v459
    %v2642 = vunpack.c.l.s4 1983009808
    %v2643 = vunpack.c.0.s8 %v2642
    %v2644 = vlaneseq
    %v2645 = vshrl.u32 %v2644, 7
    %v2646 = vsub.s32 %v2643, %v2645
    %v2647 = vrot.slane %v2639, %v2646
    %v2649 = vunpack.c.l.s4 1983009808
    %v2650 = vunpack.c.0.s8 %v2649
    %v2651 = vlaneseq
    %v2652 = vshrl.u32 %v2651, 7
    %v2653 = vsub.s32 %v2650, %v2652
    %v2654 = vrot.slane %v2640, %v2653
    %v2655 = vcombine.low %v440, %v478
    %v2656 = vcombine.high %v440, %v478
    %v2658 = vunpack.c.l.s4 1983009808
    %v2659 = vunpack.c.0.s8 %v2658
    %v2660 = vlaneseq
    %v2661 = vshrl.u32 %v2660, 7
    %v2662 = vsub.s32 %v2659, %v2661
    %v2663 = vrot.slane %v2655, %v2662
    %v2665 = vunpack.c.l.s4 1983009808
    %v2666 = vunpack.c.0.s8 %v2665
    %v2667 = vlaneseq
    %v2668 = vshrl.u32 %v2667, 7
    %v2669 = vsub.s32 %v2666, %v2668
    %v2670 = vrot.slane %v2656, %v2669
    %v2671 = vcombine.low %v2615, %v2631
    %v2672 = vcombine.high %v2615, %v2631
    %v2674 = vunpack.c.l.s4 1934713408
    %v2675 = vunpack.c.0.s8 %v2674
    %v2676 = vlaneseq
    %v2677 = vshrl.u32 %v2676, 7
    %v2678 = vsub.s32 %v2675, %v2677
    %v2679 = vrot.slane %v2671, %v2678
    %v2681 = vunpack.c.l.s4 1934713408
    %v2682 = vunpack.c.0.s8 %v2681
    %v2683 = vlaneseq
    %v2684 = vshrl.u32 %v2683, 7
    %v2685 = vsub.s32 %v2682, %v2684
    %v2686 = vrot.slane %v2672, %v2685
    %v2687 = vcombine.low %v2622, %v2638
    %v2688 = vcombine.high %v2622, %v2638
    %v2690 = vunpack.c.l.s4 1934713408
    %v2691 = vunpack.c.0.s8 %v2690
    %v2692 = vlaneseq
    %v2693 = vshrl.u32 %v2692, 7
    %v2694 = vsub.s32 %v2691, %v2693
    %v2695 = vrot.slane %v2687, %v2694
    %v2697 = vunpack.c.l.s4 1934713408
    %v2698 = vunpack.c.0.s8 %v2697
    %v2699 = vlaneseq
    %v2700 = vshrl.u32 %v2699, 7
    %v2701 = vsub.s32 %v2698, %v2700
    %v2702 = vrot.slane %v2688, %v2701
    %v2703 = vcombine.low %v2647, %v2663
    %v2704 = vcombine.high %v2647, %v2663
    %v2706 = vunpack.c.l.s4 1934713408
    %v2707 = vunpack.c.0.s8 %v2706
    %v2708 = vlaneseq
    %v2709 = vshrl.u32 %v2708, 7
    %v2710 = vsub.s32 %v2707, %v2709
    %v2711 = vrot.slane %v2703, %v2710
    %v2713 = vunpack.c.l.s4 1934713408
    %v2714 = vunpack.c.0.s8 %v2713
    %v2715 = vlaneseq
    %v2716 = vshrl.u32 %v2715, 7
    %v2717 = vsub.s32 %v2714, %v2716
    %v2718 = vrot.slane %v2704, %v2717
    %v2719 = vcombine.low %v2654, %v2670
    %v2720 = vcombine.high %v2654, %v2670
    %v2722 = vunpack.c.l.s4 1934713408
    %v2723 = vunpack.c.0.s8 %v2722
    %v2724 = vlaneseq
    %v2725 = vshrl.u32 %v2724, 7
    %v2726 = vsub.s32 %v2723, %v2725
    %v2727 = vrot.slane %v2719, %v2726
    %v2729 = vunpack.c.l.s4 1934713408
    %v2730 = vunpack.c.0.s8 %v2729
    %v2731 = vlaneseq
    %v2732 = vshrl.u32 %v2731, 7
    %v2733 = vsub.s32 %v2730, %v2732
    %v2734 = vrot.slane %v2720, %v2733
    %v2735 = vcombine.low %v2679, %v2711
    %v2736 = vcombine.high %v2679, %v2711
    %v2737 = vcombine.low %v2686, %v2718
    %v2738 = vcombine.high %v2686, %v2718
    %v2739 = vcombine.low %v2695, %v2727
    %v2740 = vcombine.high %v2695, %v2727
    %v2741 = vcombine.low %v2702, %v2734
    %v2742 = vcombine.high %v2702, %v2734
    %v2743 = vcombine.low %v497, %v535
    %v2744 = vcombine.high %v497, %v535
    %v2746 = vunpack.c.l.s4 1983009808
    %v2747 = vunpack.c.0.s8 %v2746
    %v2748 = vlaneseq
    %v2749 = vshrl.u32 %v2748, 7
    %v2750 = vsub.s32 %v2747, %v2749
    %v2751 = vrot.slane %v2743, %v2750
    %v2753 = vunpack.c.l.s4 1983009808
    %v2754 = vunpack.c.0.s8 %v2753
    %v2755 = vlaneseq
    %v2756 = vshrl.u32 %v2755, 7
    %v2757 = vsub.s32 %v2754, %v2756
    %v2758 = vrot.slane %v2744, %v2757
    %v2759 = vcombine.low %v516, %v554
    %v2760 = vcombine.high %v516, %v554
    %v2762 = vunpack.c.l.s4 1983009808
    %v2763 = vunpack.c.0.s8 %v2762
    %v2764 = vlaneseq
    %v2765 = vshrl.u32 %v2764, 7
    %v2766 = vsub.s32 %v2763, %v2765
    %v2767 = vrot.slane %v2759, %v2766
    %v2769 = vunpack.c.l.s4 1983009808
    %v2770 = vunpack.c.0.s8 %v2769
    %v2771 = vlaneseq
    %v2772 = vshrl.u32 %v2771, 7
    %v2773 = vsub.s32 %v2770, %v2772
    %v2774 = vrot.slane %v2760, %v2773
    %v2775 = vcombine.low %v573, %v611
    %v2776 = vcombine.high %v573, %v611
    %v2778 = vunpack.c.l.s4 1983009808
    %v2779 = vunpack.c.0.s8 %v2778
    %v2780 = vlaneseq
    %v2781 = vshrl.u32 %v2780, 7
    %v2782 = vsub.s32 %v2779, %v2781
    %v2783 = vrot.slane %v2775, %v2782
    %v2785 = vunpack.c.l.s4 1983009808
    %v2786 = vunpack.c.0.s8 %v2785
    %v2787 = vlaneseq
    %v2788 = vshrl.u32 %v2787, 7
    %v2789 = vsub.s32 %v2786, %v2788
    %v2790 = vrot.slane %v2776, %v2789
    %v2791 = vcombine.low %v592, %v630
    %v2792 = vcombine.high %v592, %v630
    %v2794 = vunpack.c.l.s4 1983009808
    %v2795 = vunpack.c.0.s8 %v2794
    %v2796 = vlaneseq
    %v2797 = vshrl.u32 %v2796, 7
    %v2798 = vsub.s32 %v2795, %v2797
    %v2799 = vrot.slane %v2791, %v2798
    %v2801 = vunpack.c.l.s4 1983009808
    %v2802 = vunpack.c.0.s8 %v2801
    %v2803 = vlaneseq
    %v2804 = vshrl.u32 %v2803, 7
    %v2805 = vsub.s32 %v2802, %v2804
    %v2806 = vrot.slane %v2792, %v2805
    %v2807 = vcombine.low %v2751, %v2767
    %v2808 = vcombine.high %v2751, %v2767
    %v2810 = vunpack.c.l.s4 1934713408
    %v2811 = vunpack.c.0.s8 %v2810
    %v2812 = vlaneseq
    %v2813 = vshrl.u32 %v2812, 7
    %v2814 = vsub.s32 %v2811, %v2813
    %v2815 = vrot.slane %v2807, %v2814
    %v2817 = vunpack.c.l.s4 1934713408
    %v2818 = vunpack.c.0.s8 %v2817
    %v2819 = vlaneseq
    %v2820 = vshrl.u32 %v2819, 7
    %v2821 = vsub.s32 %v2818, %v2820
    %v2822 = vrot.slane %v2808, %v2821
    %v2823 = vcombine.low %v2758, %v2774
    %v2824 = vcombine.high %v2758, %v2774
    %v2826 = vunpack.c.l.s4 1934713408
    %v2827 = vunpack.c.0.s8 %v2826
    %v2828 = vlaneseq
    %v2829 = vshrl.u32 %v2828, 7
    %v2830 = vsub.s32 %v2827, %v2829
    %v2831 = vrot.slane %v2823, %v2830
    %v2833 = vunpack.c.l.s4 1934713408
    %v2834 = vunpack.c.0.s8 %v2833
    %v2835 = vlaneseq
    %v2836 = vshrl.u32 %v2835, 7
    %v2837 = vsub.s32 %v2834, %v2836
    %v2838 = vrot.slane %v2824, %v2837
    %v2839 = vcombine.low %v2783, %v2799
    %v2840 = vcombine.high %v2783, %v2799
    %v2842 = vunpack.c.l.s4 1934713408
    %v2843 = vunpack.c.0.s8 %v2842
    %v2844 = vlaneseq
    %v2845 = vshrl.u32 %v2844, 7
    %v2846 = vsub.s32 %v2843, %v2845
    %v2847 = vrot.slane %v2839, %v2846
    %v2849 = vunpack.c.l.s4 1934713408
    %v2850 = vunpack.c.0.s8 %v2849
    %v2851 = vlaneseq
    %v2852 = vshrl.u32 %v2851, 7
    %v2853 = vsub.s32 %v2850, %v2852
    %v2854 = vrot.slane %v2840, %v2853
    %v2855 = vcombine.low %v2790, %v2806
    %v2856 = vcombine.high %v2790, %v2806
    %v2858 = vunpack.c.l.s4 1934713408
    %v2859 = vunpack.c.0.s8 %v2858
    %v2860 = vlaneseq
    %v2861 = vshrl.u32 %v2860, 7
    %v2862 = vsub.s32 %v2859, %v2861
    %v2863 = vrot.slane %v2855, %v2862
    %v2865 = vunpack.c.l.s4 1934713408
    %v2866 = vunpack.c.0.s8 %v2865
    %v2867 = vlaneseq
    %v2868 = vshrl.u32 %v2867, 7
    %v2869 = vsub.s32 %v2866, %v2868
    %v2870 = vrot.slane %v2856, %v2869
    %v2871 = vcombine.low %v2815, %v2847
    %v2872 = vcombine.high %v2815, %v2847
    %v2873 = vcombine.low %v2822, %v2854
    %v2874 = vcombine.high %v2822, %v2854
    %v2875 = vcombine.low %v2831, %v2863
    %v2876 = vcombine.high %v2831, %v2863
    %v2877 = vcombine.low %v2838, %v2870
    %v2878 = vcombine.high %v2838, %v2870
    %v2879 = vcombine.low %v649, %v687
    %v2880 = vcombine.high %v649, %v687
    %v2882 = vunpack.c.l.s4 1983009808
    %v2883 = vunpack.c.0.s8 %v2882
    %v2884 = vlaneseq
    %v2885 = vshrl.u32 %v2884, 7
    %v2886 = vsub.s32 %v2883, %v2885
    %v2887 = vrot.slane %v2879, %v2886
    %v2889 = vunpack.c.l.s4 1983009808
    %v2890 = vunpack.c.0.s8 %v2889
    %v2891 = vlaneseq
    %v2892 = vshrl.u32 %v2891, 7
    %v2893 = vsub.s32 %v2890, %v2892
    %v2894 = vrot.slane %v2880, %v2893
    %v2895 = vcombine.low %v668, %v706
    %v2896 = vcombine.high %v668, %v706
    %v2898 = vunpack.c.l.s4 1983009808
    %v2899 = vunpack.c.0.s8 %v2898
    %v2900 = vlaneseq
    %v2901 = vshrl.u32 %v2900, 7
    %v2902 = vsub.s32 %v2899, %v2901
    %v2903 = vrot.slane %v2895, %v2902
    %v2905 = vunpack.c.l.s4 1983009808
    %v2906 = vunpack.c.0.s8 %v2905
    %v2907 = vlaneseq
    %v2908 = vshrl.u32 %v2907, 7
    %v2909 = vsub.s32 %v2906, %v2908
    %v2910 = vrot.slane %v2896, %v2909
    %v2911 = vcombine.low %v725, %v763
    %v2912 = vcombine.high %v725, %v763
    %v2914 = vunpack.c.l.s4 1983009808
    %v2915 = vunpack.c.0.s8 %v2914
    %v2916 = vlaneseq
    %v2917 = vshrl.u32 %v2916, 7
    %v2918 = vsub.s32 %v2915, %v2917
    %v2919 = vrot.slane %v2911, %v2918
    %v2921 = vunpack.c.l.s4 1983009808
    %v2922 = vunpack.c.0.s8 %v2921
    %v2923 = vlaneseq
    %v2924 = vshrl.u32 %v2923, 7
    %v2925 = vsub.s32 %v2922, %v2924
    %v2926 = vrot.slane %v2912, %v2925
    %v2927 = vcombine.low %v744, %v782
    %v2928 = vcombine.high %v744, %v782
    %v2930 = vunpack.c.l.s4 1983009808
    %v2931 = vunpack.c.0.s8 %v2930
    %v2932 = vlaneseq
    %v2933 = vshrl.u32 %v2932, 7
    %v2934 = vsub.s32 %v2931, %v2933
    %v2935 = vrot.slane %v2927, %v2934
    %v2937 = vunpack.c.l.s4 1983009808
    %v2938 = vunpack.c.0.s8 %v2937
    %v2939 = vlaneseq
    %v2940 = vshrl.u32 %v2939, 7
    %v2941 = vsub.s32 %v2938, %v2940
    %v2942 = vrot.slane %v2928, %v2941
    %v2943 = vcombine.low %v2887, %v2903
    %v2944 = vcombine.high %v2887, %v2903
    %v2946 = vunpack.c.l.s4 1934713408
    %v2947 = vunpack.c.0.s8 %v2946
    %v2948 = vlaneseq
    %v2949 = vshrl.u32 %v2948, 7
    %v2950 = vsub.s32 %v2947, %v2949
    %v2951 = vrot.slane %v2943, %v2950
    %v2953 = vunpack.c.l.s4 1934713408
    %v2954 = vunpack.c.0.s8 %v2953
    %v2955 = vlaneseq
    %v2956 = vshrl.u32 %v2955, 7
    %v2957 = vsub.s32 %v2954, %v2956
    %v2958 = vrot.slane %v2944, %v2957
    %v2959 = vcombine.low %v2894, %v2910
    %v2960 = vcombine.high %v2894, %v2910
    %v2962 = vunpack.c.l.s4 1934713408
    %v2963 = vunpack.c.0.s8 %v2962
    %v2964 = vlaneseq
    %v2965 = vshrl.u32 %v2964, 7
    %v2966 = vsub.s32 %v2963, %v2965
    %v2967 = vrot.slane %v2959, %v2966
    %v2969 = vunpack.c.l.s4 1934713408
    %v2970 = vunpack.c.0.s8 %v2969
    %v2971 = vlaneseq
    %v2972 = vshrl.u32 %v2971, 7
    %v2973 = vsub.s32 %v2970, %v2972
    %v2974 = vrot.slane %v2960, %v2973
    %v2975 = vcombine.low %v2919, %v2935
    %v2976 = vcombine.high %v2919, %v2935
    %v2978 = vunpack.c.l.s4 1934713408
    %v2979 = vunpack.c.0.s8 %v2978
    %v2980 = vlaneseq
    %v2981 = vshrl.u32 %v2980, 7
    %v2982 = vsub.s32 %v2979, %v2981
    %v2983 = vrot.slane %v2975, %v2982
    %v2985 = vunpack.c.l.s4 1934713408
    %v2986 = vunpack.c.0.s8 %v2985
    %v2987 = vlaneseq
    %v2988 = vshrl.u32 %v2987, 7
    %v2989 = vsub.s32 %v2986, %v2988
    %v2990 = vrot.slane %v2976, %v2989
    %v2991 = vcombine.low %v2926, %v2942
    %v2992 = vcombine.high %v2926, %v2942
    %v2994 = vunpack.c.l.s4 1934713408
    %v2995 = vunpack.c.0.s8 %v2994
    %v2996 = vlaneseq
    %v2997 = vshrl.u32 %v2996, 7
    %v2998 = vsub.s32 %v2995, %v2997
    %v2999 = vrot.slane %v2991, %v2998
    %v3001 = vunpack.c.l.s4 1934713408
    %v3002 = vunpack.c.0.s8 %v3001
    %v3003 = vlaneseq
    %v3004 = vshrl.u32 %v3003, 7
    %v3005 = vsub.s32 %v3002, %v3004
    %v3006 = vrot.slane %v2992, %v3005
    %v3007 = vcombine.low %v2951, %v2983
    %v3008 = vcombine.high %v2951, %v2983
    %v3009 = vcombine.low %v2958, %v2990
    %v3010 = vcombine.high %v2958, %v2990
    %v3011 = vcombine.low %v2967, %v2999
    %v3012 = vcombine.high %v2967, %v2999
    %v3013 = vcombine.low %v2974, %v3006
    %v3014 = vcombine.high %v2974, %v3006
    %v3015 = vcombine.low %v801, %v839
    %v3016 = vcombine.high %v801, %v839
    %v3018 = vunpack.c.l.s4 1983009808
    %v3019 = vunpack.c.0.s8 %v3018
    %v3020 = vlaneseq
    %v3021 = vshrl.u32 %v3020, 7
    %v3022 = vsub.s32 %v3019, %v3021
    %v3023 = vrot.slane %v3015, %v3022
    %v3025 = vunpack.c.l.s4 1983009808
    %v3026 = vunpack.c.0.s8 %v3025
    %v3027 = vlaneseq
    %v3028 = vshrl.u32 %v3027, 7
    %v3029 = vsub.s32 %v3026, %v3028
    %v3030 = vrot.slane %v3016, %v3029
    %v3031 = vcombine.low %v820, %v858
    %v3032 = vcombine.high %v820, %v858
    %v3034 = vunpack.c.l.s4 1983009808
    %v3035 = vunpack.c.0.s8 %v3034
    %v3036 = vlaneseq
    %v3037 = vshrl.u32 %v3036, 7
    %v3038 = vsub.s32 %v3035, %v3037
    %v3039 = vrot.slane %v3031, %v3038
    %v3041 = vunpack.c.l.s4 1983009808
    %v3042 = vunpack.c.0.s8 %v3041
    %v3043 = vlaneseq
    %v3044 = vshrl.u32 %v3043, 7
    %v3045 = vsub.s32 %v3042, %v3044
    %v3046 = vrot.slane %v3032, %v3045
    %v3047 = vcombine.low %v877, %v915
    %v3048 = vcombine.high %v877, %v915
    %v3050 = vunpack.c.l.s4 1983009808
    %v3051 = vunpack.c.0.s8 %v3050
    %v3052 = vlaneseq
    %v3053 = vshrl.u32 %v3052, 7
    %v3054 = vsub.s32 %v3051, %v3053
    %v3055 = vrot.slane %v3047, %v3054
    %v3057 = vunpack.c.l.s4 1983009808
    %v3058 = vunpack.c.0.s8 %v3057
    %v3059 = vlaneseq
    %v3060 = vshrl.u32 %v3059, 7
    %v3061 = vsub.s32 %v3058, %v3060
    %v3062 = vrot.slane %v3048, %v3061
    %v3063 = vcombine.low %v896, %v934
    %v3064 = vcombine.high %v896, %v934
    %v3066 = vunpack.c.l.s4 1983009808
    %v3067 = vunpack.c.0.s8 %v3066
    %v3068 = vlaneseq
    %v3069 = vshrl.u32 %v3068, 7
    %v3070 = vsub.s32 %v3067, %v3069
    %v3071 = vrot.slane %v3063, %v3070
    %v3073 = vunpack.c.l.s4 1983009808
    %v3074 = vunpack.c.0.s8 %v3073
    %v3075 = vlaneseq
    %v3076 = vshrl.u32 %v3075, 7
    %v3077 = vsub.s32 %v3074, %v3076
    %v3078 = vrot.slane %v3064, %v3077
    %v3079 = vcombine.low %v3023, %v3039
    %v3080 = vcombine.high %v3023, %v3039
    %v3082 = vunpack.c.l.s4 1934713408
    %v3083 = vunpack.c.0.s8 %v3082
    %v3084 = vlaneseq
    %v3085 = vshrl.u32 %v3084, 7
    %v3086 = vsub.s32 %v3083, %v3085
    %v3087 = vrot.slane %v3079, %v3086
    %v3089 = vunpack.c.l.s4 1934713408
    %v3090 = vunpack.c.0.s8 %v3089
    %v3091 = vlaneseq
    %v3092 = vshrl.u32 %v3091, 7
    %v3093 = vsub.s32 %v3090, %v3092
    %v3094 = vrot.slane %v3080, %v3093
    %v3095 = vcombine.low %v3030, %v3046
    %v3096 = vcombine.high %v3030, %v3046
    %v3098 = vunpack.c.l.s4 1934713408
    %v3099 = vunpack.c.0.s8 %v3098
    %v3100 = vlaneseq
    %v3101 = vshrl.u32 %v3100, 7
    %v3102 = vsub.s32 %v3099, %v3101
    %v3103 = vrot.slane %v3095, %v3102
    %v3105 = vunpack.c.l.s4 1934713408
    %v3106 = vunpack.c.0.s8 %v3105
    %v3107 = vlaneseq
    %v3108 = vshrl.u32 %v3107, 7
    %v3109 = vsub.s32 %v3106, %v3108
    %v3110 = vrot.slane %v3096, %v3109
    %v3111 = vcombine.low %v3055, %v3071
    %v3112 = vcombine.high %v3055, %v3071
    %v3114 = vunpack.c.l.s4 1934713408
    %v3115 = vunpack.c.0.s8 %v3114
    %v3116 = vlaneseq
    %v3117 = vshrl.u32 %v3116, 7
    %v3118 = vsub.s32 %v3115, %v3117
    %v3119 = vrot.slane %v3111, %v3118
    %v3121 = vunpack.c.l.s4 1934713408
    %v3122 = vunpack.c.0.s8 %v3121
    %v3123 = vlaneseq
    %v3124 = vshrl.u32 %v3123, 7
    %v3125 = vsub.s32 %v3122, %v3124
    %v3126 = vrot.slane %v3112, %v3125
    %v3127 = vcombine.low %v3062, %v3078
    %v3128 = vcombine.high %v3062, %v3078
    %v3130 = vunpack.c.l.s4 1934713408
    %v3131 = vunpack.c.0.s8 %v3130
    %v3132 = vlaneseq
    %v3133 = vshrl.u32 %v3132, 7
    %v3134 = vsub.s32 %v3131, %v3133
    %v3135 = vrot.slane %v3127, %v3134
    %v3137 = vunpack.c.l.s4 1934713408
    %v3138 = vunpack.c.0.s8 %v3137
    %v3139 = vlaneseq
    %v3140 = vshrl.u32 %v3139, 7
    %v3141 = vsub.s32 %v3138, %v3140
    %v3142 = vrot.slane %v3128, %v3141
    %v3143 = vcombine.low %v3087, %v3119
    %v3144 = vcombine.high %v3087, %v3119
    %v3145 = vcombine.low %v3094, %v3126
    %v3146 = vcombine.high %v3094, %v3126
    %v3147 = vcombine.low %v3103, %v3135
    %v3148 = vcombine.high %v3103, %v3135
    %v3149 = vcombine.low %v3110, %v3142
    %v3150 = vcombine.high %v3110, %v3142
    %v3151 = vcombine.low %v953, %v991
    %v3152 = vcombine.high %v953, %v991
    %v3154 = vunpack.c.l.s4 1983009808
    %v3155 = vunpack.c.0.s8 %v3154
    %v3156 = vlaneseq
    %v3157 = vshrl.u32 %v3156, 7
    %v3158 = vsub.s32 %v3155, %v3157
    %v3159 = vrot.slane %v3151, %v3158
    %v3161 = vunpack.c.l.s4 1983009808
    %v3162 = vunpack.c.0.s8 %v3161
    %v3163 = vlaneseq
    %v3164 = vshrl.u32 %v3163, 7
    %v3165 = vsub.s32 %v3162, %v3164
    %v3166 = vrot.slane %v3152, %v3165
    %v3167 = vcombine.low %v972, %v1010
    %v3168 = vcombine.high %v972, %v1010
    %v3170 = vunpack.c.l.s4 1983009808
    %v3171 = vunpack.c.0.s8 %v3170
    %v3172 = vlaneseq
    %v3173 = vshrl.u32 %v3172, 7
    %v3174 = vsub.s32 %v3171, %v3173
    %v3175 = vrot.slane %v3167, %v3174
    %v3177 = vunpack.c.l.s4 1983009808
    %v3178 = vunpack.c.0.s8 %v3177
    %v3179 = vlaneseq
    %v3180 = vshrl.u32 %v3179, 7
    %v3181 = vsub.s32 %v3178, %v3180
    %v3182 = vrot.slane %v3168, %v3181
    %v3183 = vcombine.low %v1029, %v1067
    %v3184 = vcombine.high %v1029, %v1067
    %v3186 = vunpack.c.l.s4 1983009808
    %v3187 = vunpack.c.0.s8 %v3186
    %v3188 = vlaneseq
    %v3189 = vshrl.u32 %v3188, 7
    %v3190 = vsub.s32 %v3187, %v3189
    %v3191 = vrot.slane %v3183, %v3190
    %v3193 = vunpack.c.l.s4 1983009808
    %v3194 = vunpack.c.0.s8 %v3193
    %v3195 = vlaneseq
    %v3196 = vshrl.u32 %v3195, 7
    %v3197 = vsub.s32 %v3194, %v3196
    %v3198 = vrot.slane %v3184, %v3197
    %v3199 = vcombine.low %v1048, %v1086
    %v3200 = vcombine.high %v1048, %v1086
    %v3202 = vunpack.c.l.s4 1983009808
    %v3203 = vunpack.c.0.s8 %v3202
    %v3204 = vlaneseq
    %v3205 = vshrl.u32 %v3204, 7
    %v3206 = vsub.s32 %v3203, %v3205
    %v3207 = vrot.slane %v3199, %v3206
    %v3209 = vunpack.c.l.s4 1983009808
    %v3210 = vunpack.c.0.s8 %v3209
    %v3211 = vlaneseq
    %v3212 = vshrl.u32 %v3211, 7
    %v3213 = vsub.s32 %v3210, %v3212
    %v3214 = vrot.slane %v3200, %v3213
    %v3215 = vcombine.low %v3159, %v3175
    %v3216 = vcombine.high %v3159, %v3175
    %v3218 = vunpack.c.l.s4 1934713408
    %v3219 = vunpack.c.0.s8 %v3218
    %v3220 = vlaneseq
    %v3221 = vshrl.u32 %v3220, 7
    %v3222 = vsub.s32 %v3219, %v3221
    %v3223 = vrot.slane %v3215, %v3222
    %v3225 = vunpack.c.l.s4 1934713408
    %v3226 = vunpack.c.0.s8 %v3225
    %v3227 = vlaneseq
    %v3228 = vshrl.u32 %v3227, 7
    %v3229 = vsub.s32 %v3226, %v3228
    %v3230 = vrot.slane %v3216, %v3229
    %v3231 = vcombine.low %v3166, %v3182
    %v3232 = vcombine.high %v3166, %v3182
    %v3234 = vunpack.c.l.s4 1934713408
    %v3235 = vunpack.c.0.s8 %v3234
    %v3236 = vlaneseq
    %v3237 = vshrl.u32 %v3236, 7
    %v3238 = vsub.s32 %v3235, %v3237
    %v3239 = vrot.slane %v3231, %v3238
    %v3241 = vunpack.c.l.s4 1934713408
    %v3242 = vunpack.c.0.s8 %v3241
    %v3243 = vlaneseq
    %v3244 = vshrl.u32 %v3243, 7
    %v3245 = vsub.s32 %v3242, %v3244
    %v3246 = vrot.slane %v3232, %v3245
    %v3247 = vcombine.low %v3191, %v3207
    %v3248 = vcombine.high %v3191, %v3207
    %v3250 = vunpack.c.l.s4 1934713408
    %v3251 = vunpack.c.0.s8 %v3250
    %v3252 = vlaneseq
    %v3253 = vshrl.u32 %v3252, 7
    %v3254 = vsub.s32 %v3251, %v3253
    %v3255 = vrot.slane %v3247, %v3254
    %v3257 = vunpack.c.l.s4 1934713408
    %v3258 = vunpack.c.0.s8 %v3257
    %v3259 = vlaneseq
    %v3260 = vshrl.u32 %v3259, 7
    %v3261 = vsub.s32 %v3258, %v3260
    %v3262 = vrot.slane %v3248, %v3261
    %v3263 = vcombine.low %v3198, %v3214
    %v3264 = vcombine.high %v3198, %v3214
    %v3266 = vunpack.c.l.s4 1934713408
    %v3267 = vunpack.c.0.s8 %v3266
    %v3268 = vlaneseq
    %v3269 = vshrl.u32 %v3268, 7
    %v3270 = vsub.s32 %v3267, %v3269
    %v3271 = vrot.slane %v3263, %v3270
    %v3273 = vunpack.c.l.s4 1934713408
    %v3274 = vunpack.c.0.s8 %v3273
    %v3275 = vlaneseq
    %v3276 = vshrl.u32 %v3275, 7
    %v3277 = vsub.s32 %v3274, %v3276
    %v3278 = vrot.slane %v3264, %v3277
    %v3279 = vcombine.low %v3223, %v3255
    %v3280 = vcombine.high %v3223, %v3255
    %v3281 = vcombine.low %v3230, %v3262
    %v3282 = vcombine.high %v3230, %v3262
    %v3283 = vcombine.low %v3239, %v3271
    %v3284 = vcombine.high %v3239, %v3271
    %v3285 = vcombine.low %v3246, %v3278
    %v3286 = vcombine.high %v3246, %v3278
    %v3287 = vcombine.low %v1105, %v1143
    %v3288 = vcombine.high %v1105, %v1143
    %v3290 = vunpack.c.l.s4 1983009808
    %v3291 = vunpack.c.0.s8 %v3290
    %v3292 = vlaneseq
    %v3293 = vshrl.u32 %v3292, 7
    %v3294 = vsub.s32 %v3291, %v3293
    %v3295 = vrot.slane %v3287, %v3294
    %v3297 = vunpack.c.l.s4 1983009808
    %v3298 = vunpack.c.0.s8 %v3297
    %v3299 = vlaneseq
    %v3300 = vshrl.u32 %v3299, 7
    %v3301 = vsub.s32 %v3298, %v3300
    %v3302 = vrot.slane %v3288, %v3301
    %v3303 = vcombine.low %v1124, %v1162
    %v3304 = vcombine.high %v1124, %v1162
    %v3306 = vunpack.c.l.s4 1983009808
    %v3307 = vunpack.c.0.s8 %v3306
    %v3308 = vlaneseq
    %v3309 = vshrl.u32 %v3308, 7
    %v3310 = vsub.s32 %v3307, %v3309
    %v3311 = vrot.slane %v3303, %v3310
    %v3313 = vunpack.c.l.s4 1983009808
    %v3314 = vunpack.c.0.s8 %v3313
    %v3315 = vlaneseq
    %v3316 = vshrl.u32 %v3315, 7
    %v3317 = vsub.s32 %v3314, %v3316
    %v3318 = vrot.slane %v3304, %v3317
    %v3319 = vcombine.low %v1181, %v1219
    %v3320 = vcombine.high %v1181, %v1219
    %v3322 = vunpack.c.l.s4 1983009808
    %v3323 = vunpack.c.0.s8 %v3322
    %v3324 = vlaneseq
    %v3325 = vshrl.u32 %v3324, 7
    %v3326 = vsub.s32 %v3323, %v3325
    %v3327 = vrot.slane %v3319, %v3326
    %v3329 = vunpack.c.l.s4 1983009808
    %v3330 = vunpack.c.0.s8 %v3329
    %v3331 = vlaneseq
    %v3332 = vshrl.u32 %v3331, 7
    %v3333 = vsub.s32 %v3330, %v3332
    %v3334 = vrot.slane %v3320, %v3333
    %v3335 = vcombine.low %v1200, %v1238
    %v3336 = vcombine.high %v1200, %v1238
    %v3338 = vunpack.c.l.s4 1983009808
    %v3339 = vunpack.c.0.s8 %v3338
    %v3340 = vlaneseq
    %v3341 = vshrl.u32 %v3340, 7
    %v3342 = vsub.s32 %v3339, %v3341
    %v3343 = vrot.slane %v3335, %v3342
    %v3345 = vunpack.c.l.s4 1983009808
    %v3346 = vunpack.c.0.s8 %v3345
    %v3347 = vlaneseq
    %v3348 = vshrl.u32 %v3347, 7
    %v3349 = vsub.s32 %v3346, %v3348
    %v3350 = vrot.slane %v3336, %v3349
    %v3351 = vcombine.low %v3295, %v3311
    %v3352 = vcombine.high %v3295, %v3311
    %v3354 = vunpack.c.l.s4 1934713408
    %v3355 = vunpack.c.0.s8 %v3354
    %v3356 = vlaneseq
    %v3357 = vshrl.u32 %v3356, 7
    %v3358 = vsub.s32 %v3355, %v3357
    %v3359 = vrot.slane %v3351, %v3358
    %v3361 = vunpack.c.l.s4 1934713408
    %v3362 = vunpack.c.0.s8 %v3361
    %v3363 = vlaneseq
    %v3364 = vshrl.u32 %v3363, 7
    %v3365 = vsub.s32 %v3362, %v3364
    %v3366 = vrot.slane %v3352, %v3365
    %v3367 = vcombine.low %v3302, %v3318
    %v3368 = vcombine.high %v3302, %v3318
    %v3370 = vunpack.c.l.s4 1934713408
    %v3371 = vunpack.c.0.s8 %v3370
    %v3372 = vlaneseq
    %v3373 = vshrl.u32 %v3372, 7
    %v3374 = vsub.s32 %v3371, %v3373
    %v3375 = vrot.slane %v3367, %v3374
    %v3377 = vunpack.c.l.s4 1934713408
    %v3378 = vunpack.c.0.s8 %v3377
    %v3379 = vlaneseq
    %v3380 = vshrl.u32 %v3379, 7
    %v3381 = vsub.s32 %v3378, %v3380
    %v3382 = vrot.slane %v3368, %v3381
    %v3383 = vcombine.low %v3327, %v3343
    %v3384 = vcombine.high %v3327, %v3343
    %v3386 = vunpack.c.l.s4 1934713408
    %v3387 = vunpack.c.0.s8 %v3386
    %v3388 = vlaneseq
    %v3389 = vshrl.u32 %v3388, 7
    %v3390 = vsub.s32 %v3387, %v3389
    %v3391 = vrot.slane %v3383, %v3390
    %v3393 = vunpack.c.l.s4 1934713408
    %v3394 = vunpack.c.0.s8 %v3393
    %v3395 = vlaneseq
    %v3396 = vshrl.u32 %v3395, 7
    %v3397 = vsub.s32 %v3394, %v3396
    %v3398 = vrot.slane %v3384, %v3397
    %v3399 = vcombine.low %v3334, %v3350
    %v3400 = vcombine.high %v3334, %v3350
    %v3402 = vunpack.c.l.s4 1934713408
    %v3403 = vunpack.c.0.s8 %v3402
    %v3404 = vlaneseq
    %v3405 = vshrl.u32 %v3404, 7
    %v3406 = vsub.s32 %v3403, %v3405
    %v3407 = vrot.slane %v3399, %v3406
    %v3409 = vunpack.c.l.s4 1934713408
    %v3410 = vunpack.c.0.s8 %v3409
    %v3411 = vlaneseq
    %v3412 = vshrl.u32 %v3411, 7
    %v3413 = vsub.s32 %v3410, %v3412
    %v3414 = vrot.slane %v3400, %v3413
    %v3415 = vcombine.low %v3359, %v3391
    %v3416 = vcombine.high %v3359, %v3391
    %v3417 = vcombine.low %v3366, %v3398
    %v3418 = vcombine.high %v3366, %v3398
    %v3419 = vcombine.low %v3375, %v3407
    %v3420 = vcombine.high %v3375, %v3407
    %v3421 = vcombine.low %v3382, %v3414
    %v3422 = vcombine.high %v3382, %v3414
    %v3423 = vcombine.low %v45, %v83
    %v3424 = vcombine.high %v45, %v83
    %v3426 = vunpack.c.l.s4 1983009808
    %v3427 = vunpack.c.0.s8 %v3426
    %v3428 = vlaneseq
    %v3429 = vshrl.u32 %v3428, 7
    %v3430 = vsub.s32 %v3427, %v3429
    %v3431 = vrot.slane %v3423, %v3430
    %v3433 = vunpack.c.l.s4 1983009808
    %v3434 = vunpack.c.0.s8 %v3433
    %v3435 = vlaneseq
    %v3436 = vshrl.u32 %v3435, 7
    %v3437 = vsub.s32 %v3434, %v3436
    %v3438 = vrot.slane %v3424, %v3437
    %v3439 = vcombine.low %v64, %v102
    %v3440 = vcombine.high %v64, %v102
    %v3442 = vunpack.c.l.s4 1983009808
    %v3443 = vunpack.c.0.s8 %v3442
    %v3444 = vlaneseq
    %v3445 = vshrl.u32 %v3444, 7
    %v3446 = vsub.s32 %v3443, %v3445
    %v3447 = vrot.slane %v3439, %v3446
    %v3449 = vunpack.c.l.s4 1983009808
    %v3450 = vunpack.c.0.s8 %v3449
    %v3451 = vlaneseq
    %v3452 = vshrl.u32 %v3451, 7
    %v3453 = vsub.s32 %v3450, %v3452
    %v3454 = vrot.slane %v3440, %v3453
    %v3455 = vcombine.low %v121, %v159
    %v3456 = vcombine.high %v121, %v159
    %v3458 = vunpack.c.l.s4 1983009808
    %v3459 = vunpack.c.0.s8 %v3458
    %v3460 = vlaneseq
    %v3461 = vshrl.u32 %v3460, 7
    %v3462 = vsub.s32 %v3459, %v3461
    %v3463 = vrot.slane %v3455, %v3462
    %v3465 = vunpack.c.l.s4 1983009808
    %v3466 = vunpack.c.0.s8 %v3465
    %v3467 = vlaneseq
    %v3468 = vshrl.u32 %v3467, 7
    %v3469 = vsub.s32 %v3466, %v3468
    %v3470 = vrot.slane %v3456, %v3469
    %v3471 = vcombine.low %v140, %v178
    %v3472 = vcombine.high %v140, %v178
    %v3474 = vunpack.c.l.s4 1983009808
    %v3475 = vunpack.c.0.s8 %v3474
    %v3476 = vlaneseq
    %v3477 = vshrl.u32 %v3476, 7
    %v3478 = vsub.s32 %v3475, %v3477
    %v3479 = vrot.slane %v3471, %v3478
    %v3481 = vunpack.c.l.s4 1983009808
    %v3482 = vunpack.c.0.s8 %v3481
    %v3483 = vlaneseq
    %v3484 = vshrl.u32 %v3483, 7
    %v3485 = vsub.s32 %v3482, %v3484
    %v3486 = vrot.slane %v3472, %v3485
    %v3487 = vcombine.low %v3431, %v3447
    %v3488 = vcombine.high %v3431, %v3447
    %v3490 = vunpack.c.l.s4 1934713408
    %v3491 = vunpack.c.0.s8 %v3490
    %v3492 = vlaneseq
    %v3493 = vshrl.u32 %v3492, 7
    %v3494 = vsub.s32 %v3491, %v3493
    %v3495 = vrot.slane %v3487, %v3494
    %v3497 = vunpack.c.l.s4 1934713408
    %v3498 = vunpack.c.0.s8 %v3497
    %v3499 = vlaneseq
    %v3500 = vshrl.u32 %v3499, 7
    %v3501 = vsub.s32 %v3498, %v3500
    %v3502 = vrot.slane %v3488, %v3501
    %v3503 = vcombine.low %v3438, %v3454
    %v3504 = vcombine.high %v3438, %v3454
    %v3506 = vunpack.c.l.s4 1934713408
    %v3507 = vunpack.c.0.s8 %v3506
    %v3508 = vlaneseq
    %v3509 = vshrl.u32 %v3508, 7
    %v3510 = vsub.s32 %v3507, %v3509
    %v3511 = vrot.slane %v3503, %v3510
    %v3513 = vunpack.c.l.s4 1934713408
    %v3514 = vunpack.c.0.s8 %v3513
    %v3515 = vlaneseq
    %v3516 = vshrl.u32 %v3515, 7
    %v3517 = vsub.s32 %v3514, %v3516
    %v3518 = vrot.slane %v3504, %v3517
    %v3519 = vcombine.low %v3463, %v3479
    %v3520 = vcombine.high %v3463, %v3479
    %v3522 = vunpack.c.l.s4 1934713408
    %v3523 = vunpack.c.0.s8 %v3522
    %v3524 = vlaneseq
    %v3525 = vshrl.u32 %v3524, 7
    %v3526 = vsub.s32 %v3523, %v3525
    %v3527 = vrot.slane %v3519, %v3526
    %v3529 = vunpack.c.l.s4 1934713408
    %v3530 = vunpack.c.0.s8 %v3529
    %v3531 = vlaneseq
    %v3532 = vshrl.u32 %v3531, 7
    %v3533 = vsub.s32 %v3530, %v3532
    %v3534 = vrot.slane %v3520, %v3533
    %v3535 = vcombine.low %v3470, %v3486
    %v3536 = vcombine.high %v3470, %v3486
    %v3538 = vunpack.c.l.s4 1934713408
    %v3539 = vunpack.c.0.s8 %v3538
    %v3540 = vlaneseq
    %v3541 = vshrl.u32 %v3540, 7
    %v3542 = vsub.s32 %v3539, %v3541
    %v3543 = vrot.slane %v3535, %v3542
    %v3545 = vunpack.c.l.s4 1934713408
    %v3546 = vunpack.c.0.s8 %v3545
    %v3547 = vlaneseq
    %v3548 = vshrl.u32 %v3547, 7
    %v3549 = vsub.s32 %v3546, %v3548
    %v3550 = vrot.slane %v3536, %v3549
    %v3551 = vcombine.low %v3495, %v3527
    %v3552 = vcombine.high %v3495, %v3527
    %v3553 = vcombine.low %v3502, %v3534
    %v3554 = vcombine.high %v3502, %v3534
    %v3555 = vcombine.low %v3511, %v3543
    %v3556 = vcombine.high %v3511, %v3543
    %v3557 = vcombine.low %v3518, %v3550
    %v3558 = vcombine.high %v3518, %v3550
    %v3559 = vcombine.low %v197, %v235
    %v3560 = vcombine.high %v197, %v235
    %v3562 = vunpack.c.l.s4 1983009808
    %v3563 = vunpack.c.0.s8 %v3562
    %v3564 = vlaneseq
    %v3565 = vshrl.u32 %v3564, 7
    %v3566 = vsub.s32 %v3563, %v3565
    %v3567 = vrot.slane %v3559, %v3566
    %v3569 = vunpack.c.l.s4 1983009808
    %v3570 = vunpack.c.0.s8 %v3569
    %v3571 = vlaneseq
    %v3572 = vshrl.u32 %v3571, 7
    %v3573 = vsub.s32 %v3570, %v3572
    %v3574 = vrot.slane %v3560, %v3573
    %v3575 = vcombine.low %v216, %v254
    %v3576 = vcombine.high %v216, %v254
    %v3578 = vunpack.c.l.s4 1983009808
    %v3579 = vunpack.c.0.s8 %v3578
    %v3580 = vlaneseq
    %v3581 = vshrl.u32 %v3580, 7
    %v3582 = vsub.s32 %v3579, %v3581
    %v3583 = vrot.slane %v3575, %v3582
    %v3585 = vunpack.c.l.s4 1983009808
    %v3586 = vunpack.c.0.s8 %v3585
    %v3587 = vlaneseq
    %v3588 = vshrl.u32 %v3587, 7
    %v3589 = vsub.s32 %v3586, %v3588
    %v3590 = vrot.slane %v3576, %v3589
    %v3591 = vcombine.low %v273, %v311
    %v3592 = vcombine.high %v273, %v311
    %v3594 = vunpack.c.l.s4 1983009808
    %v3595 = vunpack.c.0.s8 %v3594
    %v3596 = vlaneseq
    %v3597 = vshrl.u32 %v3596, 7
    %v3598 = vsub.s32 %v3595, %v3597
    %v3599 = vrot.slane %v3591, %v3598
    %v3601 = vunpack.c.l.s4 1983009808
    %v3602 = vunpack.c.0.s8 %v3601
    %v3603 = vlaneseq
    %v3604 = vshrl.u32 %v3603, 7
    %v3605 = vsub.s32 %v3602, %v3604
    %v3606 = vrot.slane %v3592, %v3605
    %v3607 = vcombine.low %v292, %v330
    %v3608 = vcombine.high %v292, %v330
    %v3610 = vunpack.c.l.s4 1983009808
    %v3611 = vunpack.c.0.s8 %v3610
    %v3612 = vlaneseq
    %v3613 = vshrl.u32 %v3612, 7
    %v3614 = vsub.s32 %v3611, %v3613
    %v3615 = vrot.slane %v3607, %v3614
    %v3617 = vunpack.c.l.s4 1983009808
    %v3618 = vunpack.c.0.s8 %v3617
    %v3619 = vlaneseq
    %v3620 = vshrl.u32 %v3619, 7
    %v3621 = vsub.s32 %v3618, %v3620
    %v3622 = vrot.slane %v3608, %v3621
    %v3623 = vcombine.low %v3567, %v3583
    %v3624 = vcombine.high %v3567, %v3583
    %v3626 = vunpack.c.l.s4 1934713408
    %v3627 = vunpack.c.0.s8 %v3626
    %v3628 = vlaneseq
    %v3629 = vshrl.u32 %v3628, 7
    %v3630 = vsub.s32 %v3627, %v3629
    %v3631 = vrot.slane %v3623, %v3630
    %v3633 = vunpack.c.l.s4 1934713408
    %v3634 = vunpack.c.0.s8 %v3633
    %v3635 = vlaneseq
    %v3636 = vshrl.u32 %v3635, 7
    %v3637 = vsub.s32 %v3634, %v3636
    %v3638 = vrot.slane %v3624, %v3637
    %v3639 = vcombine.low %v3574, %v3590
    %v3640 = vcombine.high %v3574, %v3590
    %v3642 = vunpack.c.l.s4 1934713408
    %v3643 = vunpack.c.0.s8 %v3642
    %v3644 = vlaneseq
    %v3645 = vshrl.u32 %v3644, 7
    %v3646 = vsub.s32 %v3643, %v3645
    %v3647 = vrot.slane %v3639, %v3646
    %v3649 = vunpack.c.l.s4 1934713408
    %v3650 = vunpack.c.0.s8 %v3649
    %v3651 = vlaneseq
    %v3652 = vshrl.u32 %v3651, 7
    %v3653 = vsub.s32 %v3650, %v3652
    %v3654 = vrot.slane %v3640, %v3653
    %v3655 = vcombine.low %v3599, %v3615
    %v3656 = vcombine.high %v3599, %v3615
    %v3658 = vunpack.c.l.s4 1934713408
    %v3659 = vunpack.c.0.s8 %v3658
    %v3660 = vlaneseq
    %v3661 = vshrl.u32 %v3660, 7
    %v3662 = vsub.s32 %v3659, %v3661
    %v3663 = vrot.slane %v3655, %v3662
    %v3665 = vunpack.c.l.s4 1934713408
    %v3666 = vunpack.c.0.s8 %v3665
    %v3667 = vlaneseq
    %v3668 = vshrl.u32 %v3667, 7
    %v3669 = vsub.s32 %v3666, %v3668
    %v3670 = vrot.slane %v3656, %v3669
    %v3671 = vcombine.low %v3606, %v3622
    %v3672 = vcombine.high %v3606, %v3622
    %v3674 = vunpack.c.l.s4 1934713408
    %v3675 = vunpack.c.0.s8 %v3674
    %v3676 = vlaneseq
    %v3677 = vshrl.u32 %v3676, 7
    %v3678 = vsub.s32 %v3675, %v3677
    %v3679 = vrot.slane %v3671, %v3678
    %v3681 = vunpack.c.l.s4 1934713408
    %v3682 = vunpack.c.0.s8 %v3681
    %v3683 = vlaneseq
    %v3684 = vshrl.u32 %v3683, 7
    %v3685 = vsub.s32 %v3682, %v3684
    %v3686 = vrot.slane %v3672, %v3685
    %v3687 = vcombine.low %v3631, %v3663
    %v3688 = vcombine.high %v3631, %v3663
    %v3689 = vcombine.low %v3638, %v3670
    %v3690 = vcombine.high %v3638, %v3670
    %v3691 = vcombine.low %v3647, %v3679
    %v3692 = vcombine.high %v3647, %v3679
    %v3693 = vcombine.low %v3654, %v3686
    %v3694 = vcombine.high %v3654, %v3686
    %v3695 = vcombine.low %v349, %v387
    %v3696 = vcombine.high %v349, %v387
    %v3698 = vunpack.c.l.s4 1983009808
    %v3699 = vunpack.c.0.s8 %v3698
    %v3700 = vlaneseq
    %v3701 = vshrl.u32 %v3700, 7
    %v3702 = vsub.s32 %v3699, %v3701
    %v3703 = vrot.slane %v3695, %v3702
    %v3705 = vunpack.c.l.s4 1983009808
    %v3706 = vunpack.c.0.s8 %v3705
    %v3707 = vlaneseq
    %v3708 = vshrl.u32 %v3707, 7
    %v3709 = vsub.s32 %v3706, %v3708
    %v3710 = vrot.slane %v3696, %v3709
    %v3711 = vcombine.low %v368, %v406
    %v3712 = vcombine.high %v368, %v406
    %v3714 = vunpack.c.l.s4 1983009808
    %v3715 = vunpack.c.0.s8 %v3714
    %v3716 = vlaneseq
    %v3717 = vshrl.u32 %v3716, 7
    %v3718 = vsub.s32 %v3715, %v3717
    %v3719 = vrot.slane %v3711, %v3718
    %v3721 = vunpack.c.l.s4 1983009808
    %v3722 = vunpack.c.0.s8 %v3721
    %v3723 = vlaneseq
    %v3724 = vshrl.u32 %v3723, 7
    %v3725 = vsub.s32 %v3722, %v3724
    %v3726 = vrot.slane %v3712, %v3725
    %v3727 = vcombine.low %v425, %v463
    %v3728 = vcombine.high %v425, %v463
    %v3730 = vunpack.c.l.s4 1983009808
    %v3731 = vunpack.c.0.s8 %v3730
    %v3732 = vlaneseq
    %v3733 = vshrl.u32 %v3732, 7
    %v3734 = vsub.s32 %v3731, %v3733
    %v3735 = vrot.slane %v3727, %v3734
    %v3737 = vunpack.c.l.s4 1983009808
    %v3738 = vunpack.c.0.s8 %v3737
    %v3739 = vlaneseq
    %v3740 = vshrl.u32 %v3739, 7
    %v3741 = vsub.s32 %v3738, %v3740
    %v3742 = vrot.slane %v3728, %v3741
    %v3743 = vcombine.low %v444, %v482
    %v3744 = vcombine.high %v444, %v482
    %v3746 = vunpack.c.l.s4 1983009808
    %v3747 = vunpack.c.0.s8 %v3746
    %v3748 = vlaneseq
    %v3749 = vshrl.u32 %v3748, 7
    %v3750 = vsub.s32 %v3747, %v3749
    %v3751 = vrot.slane %v3743, %v3750
    %v3753 = vunpack.c.l.s4 1983009808
    %v3754 = vunpack.c.0.s8 %v3753
    %v3755 = vlaneseq
    %v3756 = vshrl.u32 %v3755, 7
    %v3757 = vsub.s32 %v3754, %v3756
    %v3758 = vrot.slane %v3744, %v3757
    %v3759 = vcombine.low %v3703, %v3719
    %v3760 = vcombine.high %v3703, %v3719
    %v3762 = vunpack.c.l.s4 1934713408
    %v3763 = vunpack.c.0.s8 %v3762
    %v3764 = vlaneseq
    %v3765 = vshrl.u32 %v3764, 7
    %v3766 = vsub.s32 %v3763, %v3765
    %v3767 = vrot.slane %v3759, %v3766
    %v3769 = vunpack.c.l.s4 1934713408
    %v3770 = vunpack.c.0.s8 %v3769
    %v3771 = vlaneseq
    %v3772 = vshrl.u32 %v3771, 7
    %v3773 = vsub.s32 %v3770, %v3772
    %v3774 = vrot.slane %v3760, %v3773
    %v3775 = vcombine.low %v3710, %v3726
    %v3776 = vcombine.high %v3710, %v3726
    %v3778 = vunpack.c.l.s4 1934713408
    %v3779 = vunpack.c.0.s8 %v3778
    %v3780 = vlaneseq
    %v3781 = vshrl.u32 %v3780, 7
    %v3782 = vsub.s32 %v3779, %v3781
    %v3783 = vrot.slane %v3775, %v3782
    %v3785 = vunpack.c.l.s4 1934713408
    %v3786 = vunpack.c.0.s8 %v3785
    %v3787 = vlaneseq
    %v3788 = vshrl.u32 %v3787, 7
    %v3789 = vsub.s32 %v3786, %v3788
    %v3790 = vrot.slane %v3776, %v3789
    %v3791 = vcombine.low %v3735, %v3751
    %v3792 = vcombine.high %v3735, %v3751
    %v3794 = vunpack.c.l.s4 1934713408
    %v3795 = vunpack.c.0.s8 %v3794
    %v3796 = vlaneseq
    %v3797 = vshrl.u32 %v3796, 7
    %v3798 = vsub.s32 %v3795, %v3797
    %v3799 = vrot.slane %v3791, %v3798
    %v3801 = vunpack.c.l.s4 1934713408
    %v3802 = vunpack.c.0.s8 %v3801
    %v3803 = vlaneseq
    %v3804 = vshrl.u32 %v3803, 7
    %v3805 = vsub.s32 %v3802, %v3804
    %v3806 = vrot.slane %v3792, %v3805
    %v3807 = vcombine.low %v3742, %v3758
    %v3808 = vcombine.high %v3742, %v3758
    %v3810 = vunpack.c.l.s4 1934713408
    %v3811 = vunpack.c.0.s8 %v3810
    %v3812 = vlaneseq
    %v3813 = vshrl.u32 %v3812, 7
    %v3814 = vsub.s32 %v3811, %v3813
    %v3815 = vrot.slane %v3807, %v3814
    %v3817 = vunpack.c.l.s4 1934713408
    %v3818 = vunpack.c.0.s8 %v3817
    %v3819 = vlaneseq
    %v3820 = vshrl.u32 %v3819, 7
    %v3821 = vsub.s32 %v3818, %v3820
    %v3822 = vrot.slane %v3808, %v3821
    %v3823 = vcombine.low %v3767, %v3799
    %v3824 = vcombine.high %v3767, %v3799
    %v3825 = vcombine.low %v3774, %v3806
    %v3826 = vcombine.high %v3774, %v3806
    %v3827 = vcombine.low %v3783, %v3815
    %v3828 = vcombine.high %v3783, %v3815
    %v3829 = vcombine.low %v3790, %v3822
    %v3830 = vcombine.high %v3790, %v3822
    %v3831 = vcombine.low %v501, %v539
    %v3832 = vcombine.high %v501, %v539
    %v3834 = vunpack.c.l.s4 1983009808
    %v3835 = vunpack.c.0.s8 %v3834
    %v3836 = vlaneseq
    %v3837 = vshrl.u32 %v3836, 7
    %v3838 = vsub.s32 %v3835, %v3837
    %v3839 = vrot.slane %v3831, %v3838
    %v3841 = vunpack.c.l.s4 1983009808
    %v3842 = vunpack.c.0.s8 %v3841
    %v3843 = vlaneseq
    %v3844 = vshrl.u32 %v3843, 7
    %v3845 = vsub.s32 %v3842, %v3844
    %v3846 = vrot.slane %v3832, %v3845
    %v3847 = vcombine.low %v520, %v558
    %v3848 = vcombine.high %v520, %v558
    %v3850 = vunpack.c.l.s4 1983009808
    %v3851 = vunpack.c.0.s8 %v3850
    %v3852 = vlaneseq
    %v3853 = vshrl.u32 %v3852, 7
    %v3854 = vsub.s32 %v3851, %v3853
    %v3855 = vrot.slane %v3847, %v3854
    %v3857 = vunpack.c.l.s4 1983009808
    %v3858 = vunpack.c.0.s8 %v3857
    %v3859 = vlaneseq
    %v3860 = vshrl.u32 %v3859, 7
    %v3861 = vsub.s32 %v3858, %v3860
    %v3862 = vrot.slane %v3848, %v3861
    %v3863 = vcombine.low %v577, %v615
    %v3864 = vcombine.high %v577, %v615
    %v3866 = vunpack.c.l.s4 1983009808
    %v3867 = vunpack.c.0.s8 %v3866
    %v3868 = vlaneseq
    %v3869 = vshrl.u32 %v3868, 7
    %v3870 = vsub.s32 %v3867, %v3869
    %v3871 = vrot.slane %v3863, %v3870
    %v3873 = vunpack.c.l.s4 1983009808
    %v3874 = vunpack.c.0.s8 %v3873
    %v3875 = vlaneseq
    %v3876 = vshrl.u32 %v3875, 7
    %v3877 = vsub.s32 %v3874, %v3876
    %v3878 = vrot.slane %v3864, %v3877
    %v3879 = vcombine.low %v596, %v634
    %v3880 = vcombine.high %v596, %v634
    %v3882 = vunpack.c.l.s4 1983009808
    %v3883 = vunpack.c.0.s8 %v3882
    %v3884 = vlaneseq
    %v3885 = vshrl.u32 %v3884, 7
    %v3886 = vsub.s32 %v3883, %v3885
    %v3887 = vrot.slane %v3879, %v3886
    %v3889 = vunpack.c.l.s4 1983009808
    %v3890 = vunpack.c.0.s8 %v3889
    %v3891 = vlaneseq
    %v3892 = vshrl.u32 %v3891, 7
    %v3893 = vsub.s32 %v3890, %v3892
    %v3894 = vrot.slane %v3880, %v3893
    %v3895 = vcombine.low %v3839, %v3855
    %v3896 = vcombine.high %v3839, %v3855
    %v3898 = vunpack.c.l.s4 1934713408
    %v3899 = vunpack.c.0.s8 %v3898
    %v3900 = vlaneseq
    %v3901 = vshrl.u32 %v3900, 7
    %v3902 = vsub.s32 %v3899, %v3901
    %v3903 = vrot.slane %v3895, %v3902
    %v3905 = vunpack.c.l.s4 1934713408
    %v3906 = vunpack.c.0.s8 %v3905
    %v3907 = vlaneseq
    %v3908 = vshrl.u32 %v3907, 7
    %v3909 = vsub.s32 %v3906, %v3908
    %v3910 = vrot.slane %v3896, %v3909
    %v3911 = vcombine.low %v3846, %v3862
    %v3912 = vcombine.high %v3846, %v3862
    %v3914 = vunpack.c.l.s4 1934713408
    %v3915 = vunpack.c.0.s8 %v3914
    %v3916 = vlaneseq
    %v3917 = vshrl.u32 %v3916, 7
    %v3918 = vsub.s32 %v3915, %v3917
    %v3919 = vrot.slane %v3911, %v3918
    %v3921 = vunpack.c.l.s4 1934713408
    %v3922 = vunpack.c.0.s8 %v3921
    %v3923 = vlaneseq
    %v3924 = vshrl.u32 %v3923, 7
    %v3925 = vsub.s32 %v3922, %v3924
    %v3926 = vrot.slane %v3912, %v3925
    %v3927 = vcombine.low %v3871, %v3887
    %v3928 = vcombine.high %v3871, %v3887
    %v3930 = vunpack.c.l.s4 1934713408
    %v3931 = vunpack.c.0.s8 %v3930
    %v3932 = vlaneseq
    %v3933 = vshrl.u32 %v3932, 7
    %v3934 = vsub.s32 %v3931, %v3933
    %v3935 = vrot.slane %v3927, %v3934
    %v3937 = vunpack.c.l.s4 1934713408
    %v3938 = vunpack.c.0.s8 %v3937
    %v3939 = vlaneseq
    %v3940 = vshrl.u32 %v3939, 7
    %v3941 = vsub.s32 %v3938, %v3940
    %v3942 = vrot.slane %v3928, %v3941
    %v3943 = vcombine.low %v3878, %v3894
    %v3944 = vcombine.high %v3878, %v3894
    %v3946 = vunpack.c.l.s4 1934713408
    %v3947 = vunpack.c.0.s8 %v3946
    %v3948 = vlaneseq
    %v3949 = vshrl.u32 %v3948, 7
    %v3950 = vsub.s32 %v3947, %v3949
    %v3951 = vrot.slane %v3943, %v3950
    %v3953 = vunpack.c.l.s4 1934713408
    %v3954 = vunpack.c.0.s8 %v3953
    %v3955 = vlaneseq
    %v3956 = vshrl.u32 %v3955, 7
    %v3957 = vsub.s32 %v3954, %v3956
    %v3958 = vrot.slane %v3944, %v3957
    %v3959 = vcombine.low %v3903, %v3935
    %v3960 = vcombine.high %v3903, %v3935
    %v3961 = vcombine.low %v3910, %v3942
    %v3962 = vcombine.high %v3910, %v3942
    %v3963 = vcombine.low %v3919, %v3951
    %v3964 = vcombine.high %v3919, %v3951
    %v3965 = vcombine.low %v3926, %v3958
    %v3966 = vcombine.high %v3926, %v3958
    %v3967 = vcombine.low %v653, %v691
    %v3968 = vcombine.high %v653, %v691
    %v3970 = vunpack.c.l.s4 1983009808
    %v3971 = vunpack.c.0.s8 %v3970
    %v3972 = vlaneseq
    %v3973 = vshrl.u32 %v3972, 7
    %v3974 = vsub.s32 %v3971, %v3973
    %v3975 = vrot.slane %v3967, %v3974
    %v3977 = vunpack.c.l.s4 1983009808
    %v3978 = vunpack.c.0.s8 %v3977
    %v3979 = vlaneseq
    %v3980 = vshrl.u32 %v3979, 7
    %v3981 = vsub.s32 %v3978, %v3980
    %v3982 = vrot.slane %v3968, %v3981
    %v3983 = vcombine.low %v672, %v710
    %v3984 = vcombine.high %v672, %v710
    %v3986 = vunpack.c.l.s4 1983009808
    %v3987 = vunpack.c.0.s8 %v3986
    %v3988 = vlaneseq
    %v3989 = vshrl.u32 %v3988, 7
    %v3990 = vsub.s32 %v3987, %v3989
    %v3991 = vrot.slane %v3983, %v3990
    %v3993 = vunpack.c.l.s4 1983009808
    %v3994 = vunpack.c.0.s8 %v3993
    %v3995 = vlaneseq
    %v3996 = vshrl.u32 %v3995, 7
    %v3997 = vsub.s32 %v3994, %v3996
    %v3998 = vrot.slane %v3984, %v3997
    %v3999 = vcombine.low %v729, %v767
    %v4000 = vcombine.high %v729, %v767
    %v4002 = vunpack.c.l.s4 1983009808
    %v4003 = vunpack.c.0.s8 %v4002
    %v4004 = vlaneseq
    %v4005 = vshrl.u32 %v4004, 7
    %v4006 = vsub.s32 %v4003, %v4005
    %v4007 = vrot.slane %v3999, %v4006
    %v4009 = vunpack.c.l.s4 1983009808
    %v4010 = vunpack.c.0.s8 %v4009
    %v4011 = vlaneseq
    %v4012 = vshrl.u32 %v4011, 7
    %v4013 = vsub.s32 %v4010, %v4012
    %v4014 = vrot.slane %v4000, %v4013
    %v4015 = vcombine.low %v748, %v786
    %v4016 = vcombine.high %v748, %v786
    %v4018 = vunpack.c.l.s4 1983009808
    %v4019 = vunpack.c.0.s8 %v4018
    %v4020 = vlaneseq
    %v4021 = vshrl.u32 %v4020, 7
    %v4022 = vsub.s32 %v4019, %v4021
    %v4023 = vrot.slane %v4015, %v4022
    %v4025 = vunpack.c.l.s4 1983009808
    %v4026 = vunpack.c.0.s8 %v4025
    %v4027 = vlaneseq
    %v4028 = vshrl.u32 %v4027, 7
    %v4029 = vsub.s32 %v4026, %v4028
    %v4030 = vrot.slane %v4016, %v4029
    %v4031 = vcombine.low %v3975, %v3991
    %v4032 = vcombine.high %v3975, %v3991
    %v4034 = vunpack.c.l.s4 1934713408
    %v4035 = vunpack.c.0.s8 %v4034
    %v4036 = vlaneseq
    %v4037 = vshrl.u32 %v4036, 7
    %v4038 = vsub.s32 %v4035, %v4037
    %v4039 = vrot.slane %v4031, %v4038
    %v4041 = vunpack.c.l.s4 1934713408
    %v4042 = vunpack.c.0.s8 %v4041
    %v4043 = vlaneseq
    %v4044 = vshrl.u32 %v4043, 7
    %v4045 = vsub.s32 %v4042, %v4044
    %v4046 = vrot.slane %v4032, %v4045
    %v4047 = vcombine.low %v3982, %v3998
    %v4048 = vcombine.high %v3982, %v3998
    %v4050 = vunpack.c.l.s4 1934713408
    %v4051 = vunpack.c.0.s8 %v4050
    %v4052 = vlaneseq
    %v4053 = vshrl.u32 %v4052, 7
    %v4054 = vsub.s32 %v4051, %v4053
    %v4055 = vrot.slane %v4047, %v4054
    %v4057 = vunpack.c.l.s4 1934713408
    %v4058 = vunpack.c.0.s8 %v4057
    %v4059 = vlaneseq
    %v4060 = vshrl.u32 %v4059, 7
    %v4061 = vsub.s32 %v4058, %v4060
    %v4062 = vrot.slane %v4048, %v4061
    %v4063 = vcombine.low %v4007, %v4023
    %v4064 = vcombine.high %v4007, %v4023
    %v4066 = vunpack.c.l.s4 1934713408
    %v4067 = vunpack.c.0.s8 %v4066
    %v4068 = vlaneseq
    %v4069 = vshrl.u32 %v4068, 7
    %v4070 = vsub.s32 %v4067, %v4069
    %v4071 = vrot.slane %v4063, %v4070
    %v4073 = vunpack.c.l.s4 1934713408
    %v4074 = vunpack.c.0.s8 %v4073
    %v4075 = vlaneseq
    %v4076 = vshrl.u32 %v4075, 7
    %v4077 = vsub.s32 %v4074, %v4076
    %v4078 = vrot.slane %v4064, %v4077
    %v4079 = vcombine.low %v4014, %v4030
    %v4080 = vcombine.high %v4014, %v4030
    %v4082 = vunpack.c.l.s4 1934713408
    %v4083 = vunpack.c.0.s8 %v4082
    %v4084 = vlaneseq
    %v4085 = vshrl.u32 %v4084, 7
    %v4086 = vsub.s32 %v4083, %v4085
    %v4087 = vrot.slane %v4079, %v4086
    %v4089 = vunpack.c.l.s4 1934713408
    %v4090 = vunpack.c.0.s8 %v4089
    %v4091 = vlaneseq
    %v4092 = vshrl.u32 %v4091, 7
    %v4093 = vsub.s32 %v4090, %v4092
    %v4094 = vrot.slane %v4080, %v4093
    %v4095 = vcombine.low %v4039, %v4071
    %v4096 = vcombine.high %v4039, %v4071
    %v4097 = vcombine.low %v4046, %v4078
    %v4098 = vcombine.high %v4046, %v4078
    %v4099 = vcombine.low %v4055, %v4087
    %v4100 = vcombine.high %v4055, %v4087
    %v4101 = vcombine.low %v4062, %v4094
    %v4102 = vcombine.high %v4062, %v4094
    %v4103 = vcombine.low %v805, %v843
    %v4104 = vcombine.high %v805, %v843
    %v4106 = vunpack.c.l.s4 1983009808
    %v4107 = vunpack.c.0.s8 %v4106
    %v4108 = vlaneseq
    %v4109 = vshrl.u32 %v4108, 7
    %v4110 = vsub.s32 %v4107, %v4109
    %v4111 = vrot.slane %v4103, %v4110
    %v4113 = vunpack.c.l.s4 1983009808
    %v4114 = vunpack.c.0.s8 %v4113
    %v4115 = vlaneseq
    %v4116 = vshrl.u32 %v4115, 7
    %v4117 = vsub.s32 %v4114, %v4116
    %v4118 = vrot.slane %v4104, %v4117
    %v4119 = vcombine.low %v824, %v862
    %v4120 = vcombine.high %v824, %v862
    %v4122 = vunpack.c.l.s4 1983009808
    %v4123 = vunpack.c.0.s8 %v4122
    %v4124 = vlaneseq
    %v4125 = vshrl.u32 %v4124, 7
    %v4126 = vsub.s32 %v4123, %v4125
    %v4127 = vrot.slane %v4119, %v4126
    %v4129 = vunpack.c.l.s4 1983009808
    %v4130 = vunpack.c.0.s8 %v4129
    %v4131 = vlaneseq
    %v4132 = vshrl.u32 %v4131, 7
    %v4133 = vsub.s32 %v4130, %v4132
    %v4134 = vrot.slane %v4120, %v4133
    %v4135 = vcombine.low %v881, %v919
    %v4136 = vcombine.high %v881, %v919
    %v4138 = vunpack.c.l.s4 1983009808
    %v4139 = vunpack.c.0.s8 %v4138
    %v4140 = vlaneseq
    %v4141 = vshrl.u32 %v4140, 7
    %v4142 = vsub.s32 %v4139, %v4141
    %v4143 = vrot.slane %v4135, %v4142
    %v4145 = vunpack.c.l.s4 1983009808
    %v4146 = vunpack.c.0.s8 %v4145
    %v4147 = vlaneseq
    %v4148 = vshrl.u32 %v4147, 7
    %v4149 = vsub.s32 %v4146, %v4148
    %v4150 = vrot.slane %v4136, %v4149
    %v4151 = vcombine.low %v900, %v938
    %v4152 = vcombine.high %v900, %v938
    %v4154 = vunpack.c.l.s4 1983009808
    %v4155 = vunpack.c.0.s8 %v4154
    %v4156 = vlaneseq
    %v4157 = vshrl.u32 %v4156, 7
    %v4158 = vsub.s32 %v4155, %v4157
    %v4159 = vrot.slane %v4151, %v4158
    %v4161 = vunpack.c.l.s4 1983009808
    %v4162 = vunpack.c.0.s8 %v4161
    %v4163 = vlaneseq
    %v4164 = vshrl.u32 %v4163, 7
    %v4165 = vsub.s32 %v4162, %v4164
    %v4166 = vrot.slane %v4152, %v4165
    %v4167 = vcombine.low %v4111, %v4127
    %v4168 = vcombine.high %v4111, %v4127
    %v4170 = vunpack.c.l.s4 1934713408
    %v4171 = vunpack.c.0.s8 %v4170
    %v4172 = vlaneseq
    %v4173 = vshrl.u32 %v4172, 7
    %v4174 = vsub.s32 %v4171, %v4173
    %v4175 = vrot.slane %v4167, %v4174
    %v4177 = vunpack.c.l.s4 1934713408
    %v4178 = vunpack.c.0.s8 %v4177
    %v4179 = vlaneseq
    %v4180 = vshrl.u32 %v4179, 7
    %v4181 = vsub.s32 %v4178, %v4180
    %v4182 = vrot.slane %v4168, %v4181
    %v4183 = vcombine.low %v4118, %v4134
    %v4184 = vcombine.high %v4118, %v4134
    %v4186 = vunpack.c.l.s4 1934713408
    %v4187 = vunpack.c.0.s8 %v4186
    %v4188 = vlaneseq
    %v4189 = vshrl.u32 %v4188, 7
    %v4190 = vsub.s32 %v4187, %v4189
    %v4191 = vrot.slane %v4183, %v4190
    %v4193 = vunpack.c.l.s4 1934713408
    %v4194 = vunpack.c.0.s8 %v4193
    %v4195 = vlaneseq
    %v4196 = vshrl.u32 %v4195, 7
    %v4197 = vsub.s32 %v4194, %v4196
    %v4198 = vrot.slane %v4184, %v4197
    %v4199 = vcombine.low %v4143, %v4159
    %v4200 = vcombine.high %v4143, %v4159
    %v4202 = vunpack.c.l.s4 1934713408
    %v4203 = vunpack.c.0.s8 %v4202
    %v4204 = vlaneseq
    %v4205 = vshrl.u32 %v4204, 7
    %v4206 = vsub.s32 %v4203, %v4205
    %v4207 = vrot.slane %v4199, %v4206
    %v4209 = vunpack.c.l.s4 1934713408
    %v4210 = vunpack.c.0.s8 %v4209
    %v4211 = vlaneseq
    %v4212 = vshrl.u32 %v4211, 7
    %v4213 = vsub.s32 %v4210, %v4212
    %v4214 = vrot.slane %v4200, %v4213
    %v4215 = vcombine.low %v4150, %v4166
    %v4216 = vcombine.high %v4150, %v4166
    %v4218 = vunpack.c.l.s4 1934713408
    %v4219 = vunpack.c.0.s8 %v4218
    %v4220 = vlaneseq
    %v4221 = vshrl.u32 %v4220, 7
    %v4222 = vsub.s32 %v4219, %v4221
    %v4223 = vrot.slane %v4215, %v4222
    %v4225 = vunpack.c.l.s4 1934713408
    %v4226 = vunpack.c.0.s8 %v4225
    %v4227 = vlaneseq
    %v4228 = vshrl.u32 %v4227, 7
    %v4229 = vsub.s32 %v4226, %v4228
    %v4230 = vrot.slane %v4216, %v4229
    %v4231 = vcombine.low %v4175, %v4207
    %v4232 = vcombine.high %v4175, %v4207
    %v4233 = vcombine.low %v4182, %v4214
    %v4234 = vcombine.high %v4182, %v4214
    %v4235 = vcombine.low %v4191, %v4223
    %v4236 = vcombine.high %v4191, %v4223
    %v4237 = vcombine.low %v4198, %v4230
    %v4238 = vcombine.high %v4198, %v4230
    %v4239 = vcombine.low %v957, %v995
    %v4240 = vcombine.high %v957, %v995
    %v4242 = vunpack.c.l.s4 1983009808
    %v4243 = vunpack.c.0.s8 %v4242
    %v4244 = vlaneseq
    %v4245 = vshrl.u32 %v4244, 7
    %v4246 = vsub.s32 %v4243, %v4245
    %v4247 = vrot.slane %v4239, %v4246
    %v4249 = vunpack.c.l.s4 1983009808
    %v4250 = vunpack.c.0.s8 %v4249
    %v4251 = vlaneseq
    %v4252 = vshrl.u32 %v4251, 7
    %v4253 = vsub.s32 %v4250, %v4252
    %v4254 = vrot.slane %v4240, %v4253
    %v4255 = vcombine.low %v976, %v1014
    %v4256 = vcombine.high %v976, %v1014
    %v4258 = vunpack.c.l.s4 1983009808
    %v4259 = vunpack.c.0.s8 %v4258
    %v4260 = vlaneseq
    %v4261 = vshrl.u32 %v4260, 7
    %v4262 = vsub.s32 %v4259, %v4261
    %v4263 = vrot.slane %v4255, %v4262
    %v4265 = vunpack.c.l.s4 1983009808
    %v4266 = vunpack.c.0.s8 %v4265
    %v4267 = vlaneseq
    %v4268 = vshrl.u32 %v4267, 7
    %v4269 = vsub.s32 %v4266, %v4268
    %v4270 = vrot.slane %v4256, %v4269
    %v4271 = vcombine.low %v1033, %v1071
    %v4272 = vcombine.high %v1033, %v1071
    %v4274 = vunpack.c.l.s4 1983009808
    %v4275 = vunpack.c.0.s8 %v4274
    %v4276 = vlaneseq
    %v4277 = vshrl.u32 %v4276, 7
    %v4278 = vsub.s32 %v4275, %v4277
    %v4279 = vrot.slane %v4271, %v4278
    %v4281 = vunpack.c.l.s4 1983009808
    %v4282 = vunpack.c.0.s8 %v4281
    %v4283 = vlaneseq
    %v4284 = vshrl.u32 %v4283, 7
    %v4285 = vsub.s32 %v4282, %v4284
    %v4286 = vrot.slane %v4272, %v4285
    %v4287 = vcombine.low %v1052, %v1090
    %v4288 = vcombine.high %v1052, %v1090
    %v4290 = vunpack.c.l.s4 1983009808
    %v4291 = vunpack.c.0.s8 %v4290
    %v4292 = vlaneseq
    %v4293 = vshrl.u32 %v4292, 7
    %v4294 = vsub.s32 %v4291, %v4293
    %v4295 = vrot.slane %v4287, %v4294
    %v4297 = vunpack.c.l.s4 1983009808
    %v4298 = vunpack.c.0.s8 %v4297
    %v4299 = vlaneseq
    %v4300 = vshrl.u32 %v4299, 7
    %v4301 = vsub.s32 %v4298, %v4300
    %v4302 = vrot.slane %v4288, %v4301
    %v4303 = vcombine.low %v4247, %v4263
    %v4304 = vcombine.high %v4247, %v4263
    %v4306 = vunpack.c.l.s4 1934713408
    %v4307 = vunpack.c.0.s8 %v4306
    %v4308 = vlaneseq
    %v4309 = vshrl.u32 %v4308, 7
    %v4310 = vsub.s32 %v4307, %v4309
    %v4311 = vrot.slane %v4303, %v4310
    %v4313 = vunpack.c.l.s4 1934713408
    %v4314 = vunpack.c.0.s8 %v4313
    %v4315 = vlaneseq
    %v4316 = vshrl.u32 %v4315, 7
    %v4317 = vsub.s32 %v4314, %v4316
    %v4318 = vrot.slane %v4304, %v4317
    %v4319 = vcombine.low %v4254, %v4270
    %v4320 = vcombine.high %v4254, %v4270
    %v4322 = vunpack.c.l.s4 1934713408
    %v4323 = vunpack.c.0.s8 %v4322
    %v4324 = vlaneseq
    %v4325 = vshrl.u32 %v4324, 7
    %v4326 = vsub.s32 %v4323, %v4325
    %v4327 = vrot.slane %v4319, %v4326
    %v4329 = vunpack.c.l.s4 1934713408
    %v4330 = vunpack.c.0.s8 %v4329
    %v4331 = vlaneseq
    %v4332 = vshrl.u32 %v4331, 7
    %v4333 = vsub.s32 %v4330, %v4332
    %v4334 = vrot.slane %v4320, %v4333
    %v4335 = vcombine.low %v4279, %v4295
    %v4336 = vcombine.high %v4279, %v4295
    %v4338 = vunpack.c.l.s4 1934713408
    %v4339 = vunpack.c.0.s8 %v4338
    %v4340 = vlaneseq
    %v4341 = vshrl.u32 %v4340, 7
    %v4342 = vsub.s32 %v4339, %v4341
    %v4343 = vrot.slane %v4335, %v4342
    %v4345 = vunpack.c.l.s4 1934713408
    %v4346 = vunpack.c.0.s8 %v4345
    %v4347 = vlaneseq
    %v4348 = vshrl.u32 %v4347, 7
    %v4349 = vsub.s32 %v4346, %v4348
    %v4350 = vrot.slane %v4336, %v4349
    %v4351 = vcombine.low %v4286, %v4302
    %v4352 = vcombine.high %v4286, %v4302
    %v4354 = vunpack.c.l.s4 1934713408
    %v4355 = vunpack.c.0.s8 %v4354
    %v4356 = vlaneseq
    %v4357 = vshrl.u32 %v4356, 7
    %v4358 = vsub.s32 %v4355, %v4357
    %v4359 = vrot.slane %v4351, %v4358
    %v4361 = vunpack.c.l.s4 1934713408
    %v4362 = vunpack.c.0.s8 %v4361
    %v4363 = vlaneseq
    %v4364 = vshrl.u32 %v4363, 7
    %v4365 = vsub.s32 %v4362, %v4364
    %v4366 = vrot.slane %v4352, %v4365
    %v4367 = vcombine.low %v4311, %v4343
    %v4368 = vcombine.high %v4311, %v4343
    %v4369 = vcombine.low %v4318, %v4350
    %v4370 = vcombine.high %v4318, %v4350
    %v4371 = vcombine.low %v4327, %v4359
    %v4372 = vcombine.high %v4327, %v4359
    %v4373 = vcombine.low %v4334, %v4366
    %v4374 = vcombine.high %v4334, %v4366
    %v4375 = vcombine.low %v1109, %v1147
    %v4376 = vcombine.high %v1109, %v1147
    %v4378 = vunpack.c.l.s4 1983009808
    %v4379 = vunpack.c.0.s8 %v4378
    %v4380 = vlaneseq
    %v4381 = vshrl.u32 %v4380, 7
    %v4382 = vsub.s32 %v4379, %v4381
    %v4383 = vrot.slane %v4375, %v4382
    %v4385 = vunpack.c.l.s4 1983009808
    %v4386 = vunpack.c.0.s8 %v4385
    %v4387 = vlaneseq
    %v4388 = vshrl.u32 %v4387, 7
    %v4389 = vsub.s32 %v4386, %v4388
    %v4390 = vrot.slane %v4376, %v4389
    %v4391 = vcombine.low %v1128, %v1166
    %v4392 = vcombine.high %v1128, %v1166
    %v4394 = vunpack.c.l.s4 1983009808
    %v4395 = vunpack.c.0.s8 %v4394
    %v4396 = vlaneseq
    %v4397 = vshrl.u32 %v4396, 7
    %v4398 = vsub.s32 %v4395, %v4397
    %v4399 = vrot.slane %v4391, %v4398
    %v4401 = vunpack.c.l.s4 1983009808
    %v4402 = vunpack.c.0.s8 %v4401
    %v4403 = vlaneseq
    %v4404 = vshrl.u32 %v4403, 7
    %v4405 = vsub.s32 %v4402, %v4404
    %v4406 = vrot.slane %v4392, %v4405
    %v4407 = vcombine.low %v1185, %v1223
    %v4408 = vcombine.high %v1185, %v1223
    %v4410 = vunpack.c.l.s4 1983009808
    %v4411 = vunpack.c.0.s8 %v4410
    %v4412 = vlaneseq
    %v4413 = vshrl.u32 %v4412, 7
    %v4414 = vsub.s32 %v4411, %v4413
    %v4415 = vrot.slane %v4407, %v4414
    %v4417 = vunpack.c.l.s4 1983009808
    %v4418 = vunpack.c.0.s8 %v4417
    %v4419 = vlaneseq
    %v4420 = vshrl.u32 %v4419, 7
    %v4421 = vsub.s32 %v4418, %v4420
    %v4422 = vrot.slane %v4408, %v4421
    %v4423 = vcombine.low %v1204, %v1242
    %v4424 = vcombine.high %v1204, %v1242
    %v4426 = vunpack.c.l.s4 1983009808
    %v4427 = vunpack.c.0.s8 %v4426
    %v4428 = vlaneseq
    %v4429 = vshrl.u32 %v4428, 7
    %v4430 = vsub.s32 %v4427, %v4429
    %v4431 = vrot.slane %v4423, %v4430
    %v4433 = vunpack.c.l.s4 1983009808
    %v4434 = vunpack.c.0.s8 %v4433
    %v4435 = vlaneseq
    %v4436 = vshrl.u32 %v4435, 7
    %v4437 = vsub.s32 %v4434, %v4436
    %v4438 = vrot.slane %v4424, %v4437
    %v4439 = vcombine.low %v4383, %v4399
    %v4440 = vcombine.high %v4383, %v4399
    %v4442 = vunpack.c.l.s4 1934713408
    %v4443 = vunpack.c.0.s8 %v4442
    %v4444 = vlaneseq
    %v4445 = vshrl.u32 %v4444, 7
    %v4446 = vsub.s32 %v4443, %v4445
    %v4447 = vrot.slane %v4439, %v4446
    %v4449 = vunpack.c.l.s4 1934713408
    %v4450 = vunpack.c.0.s8 %v4449
    %v4451 = vlaneseq
    %v4452 = vshrl.u32 %v4451, 7
    %v4453 = vsub.s32 %v4450, %v4452
    %v4454 = vrot.slane %v4440, %v4453
    %v4455 = vcombine.low %v4390, %v4406
    %v4456 = vcombine.high %v4390, %v4406
    %v4458 = vunpack.c.l.s4 1934713408
    %v4459 = vunpack.c.0.s8 %v4458
    %v4460 = vlaneseq
    %v4461 = vshrl.u32 %v4460, 7
    %v4462 = vsub.s32 %v4459, %v4461
    %v4463 = vrot.slane %v4455, %v4462
    %v4465 = vunpack.c.l.s4 1934713408
    %v4466 = vunpack.c.0.s8 %v4465
    %v4467 = vlaneseq
    %v4468 = vshrl.u32 %v4467, 7
    %v4469 = vsub.s32 %v4466, %v4468
    %v4470 = vrot.slane %v4456, %v4469
    %v4471 = vcombine.low %v4415, %v4431
    %v4472 = vcombine.high %v4415, %v4431
    %v4474 = vunpack.c.l.s4 1934713408
    %v4475 = vunpack.c.0.s8 %v4474
    %v4476 = vlaneseq
    %v4477 = vshrl.u32 %v4476, 7
    %v4478 = vsub.s32 %v4475, %v4477
    %v4479 = vrot.slane %v4471, %v4478
    %v4481 = vunpack.c.l.s4 1934713408
    %v4482 = vunpack.c.0.s8 %v4481
    %v4483 = vlaneseq
    %v4484 = vshrl.u32 %v4483, 7
    %v4485 = vsub.s32 %v4482, %v4484
    %v4486 = vrot.slane %v4472, %v4485
    %v4487 = vcombine.low %v4422, %v4438
    %v4488 = vcombine.high %v4422, %v4438
    %v4490 = vunpack.c.l.s4 1934713408
    %v4491 = vunpack.c.0.s8 %v4490
    %v4492 = vlaneseq
    %v4493 = vshrl.u32 %v4492, 7
    %v4494 = vsub.s32 %v4491, %v4493
    %v4495 = vrot.slane %v4487, %v4494
    %v4497 = vunpack.c.l.s4 1934713408
    %v4498 = vunpack.c.0.s8 %v4497
    %v4499 = vlaneseq
    %v4500 = vshrl.u32 %v4499, 7
    %v4501 = vsub.s32 %v4498, %v4500
    %v4502 = vrot.slane %v4488, %v4501
    %v4503 = vcombine.low %v4447, %v4479
    %v4504 = vcombine.high %v4447, %v4479
    %v4505 = vcombine.low %v4454, %v4486
    %v4506 = vcombine.high %v4454, %v4486
    %v4507 = vcombine.low %v4463, %v4495
    %v4508 = vcombine.high %v4463, %v4495
    %v4509 = vcombine.low %v4470, %v4502
    %v4510 = vcombine.high %v4470, %v4502
    %v4511 = vcombine.low %v49, %v87
    %v4512 = vcombine.high %v49, %v87
    %v4514 = vunpack.c.l.s4 1983009808
    %v4515 = vunpack.c.0.s8 %v4514
    %v4516 = vlaneseq
    %v4517 = vshrl.u32 %v4516, 7
    %v4518 = vsub.s32 %v4515, %v4517
    %v4519 = vrot.slane %v4511, %v4518
    %v4521 = vunpack.c.l.s4 1983009808
    %v4522 = vunpack.c.0.s8 %v4521
    %v4523 = vlaneseq
    %v4524 = vshrl.u32 %v4523, 7
    %v4525 = vsub.s32 %v4522, %v4524
    %v4526 = vrot.slane %v4512, %v4525
    %v4527 = vcombine.low %v68, %v106
    %v4528 = vcombine.high %v68, %v106
    %v4530 = vunpack.c.l.s4 1983009808
    %v4531 = vunpack.c.0.s8 %v4530
    %v4532 = vlaneseq
    %v4533 = vshrl.u32 %v4532, 7
    %v4534 = vsub.s32 %v4531, %v4533
    %v4535 = vrot.slane %v4527, %v4534
    %v4537 = vunpack.c.l.s4 1983009808
    %v4538 = vunpack.c.0.s8 %v4537
    %v4539 = vlaneseq
    %v4540 = vshrl.u32 %v4539, 7
    %v4541 = vsub.s32 %v4538, %v4540
    %v4542 = vrot.slane %v4528, %v4541
    %v4543 = vcombine.low %v125, %v163
    %v4544 = vcombine.high %v125, %v163
    %v4546 = vunpack.c.l.s4 1983009808
    %v4547 = vunpack.c.0.s8 %v4546
    %v4548 = vlaneseq
    %v4549 = vshrl.u32 %v4548, 7
    %v4550 = vsub.s32 %v4547, %v4549
    %v4551 = vrot.slane %v4543, %v4550
    %v4553 = vunpack.c.l.s4 1983009808
    %v4554 = vunpack.c.0.s8 %v4553
    %v4555 = vlaneseq
    %v4556 = vshrl.u32 %v4555, 7
    %v4557 = vsub.s32 %v4554, %v4556
    %v4558 = vrot.slane %v4544, %v4557
    %v4559 = vcombine.low %v144, %v182
    %v4560 = vcombine.high %v144, %v182
    %v4562 = vunpack.c.l.s4 1983009808
    %v4563 = vunpack.c.0.s8 %v4562
    %v4564 = vlaneseq
    %v4565 = vshrl.u32 %v4564, 7
    %v4566 = vsub.s32 %v4563, %v4565
    %v4567 = vrot.slane %v4559, %v4566
    %v4569 = vunpack.c.l.s4 1983009808
    %v4570 = vunpack.c.0.s8 %v4569
    %v4571 = vlaneseq
    %v4572 = vshrl.u32 %v4571, 7
    %v4573 = vsub.s32 %v4570, %v4572
    %v4574 = vrot.slane %v4560, %v4573
    %v4575 = vcombine.low %v4519, %v4535
    %v4576 = vcombine.high %v4519, %v4535
    %v4578 = vunpack.c.l.s4 1934713408
    %v4579 = vunpack.c.0.s8 %v4578
    %v4580 = vlaneseq
    %v4581 = vshrl.u32 %v4580, 7
    %v4582 = vsub.s32 %v4579, %v4581
    %v4583 = vrot.slane %v4575, %v4582
    %v4585 = vunpack.c.l.s4 1934713408
    %v4586 = vunpack.c.0.s8 %v4585
    %v4587 = vlaneseq
    %v4588 = vshrl.u32 %v4587, 7
    %v4589 = vsub.s32 %v4586, %v4588
    %v4590 = vrot.slane %v4576, %v4589
    %v4591 = vcombine.low %v4526, %v4542
    %v4592 = vcombine.high %v4526, %v4542
    %v4594 = vunpack.c.l.s4 1934713408
    %v4595 = vunpack.c.0.s8 %v4594
    %v4596 = vlaneseq
    %v4597 = vshrl.u32 %v4596, 7
    %v4598 = vsub.s32 %v4595, %v4597
    %v4599 = vrot.slane %v4591, %v4598
    %v4601 = vunpack.c.l.s4 1934713408
    %v4602 = vunpack.c.0.s8 %v4601
    %v4603 = vlaneseq
    %v4604 = vshrl.u32 %v4603, 7
    %v4605 = vsub.s32 %v4602, %v4604
    %v4606 = vrot.slane %v4592, %v4605
    %v4607 = vcombine.low %v4551, %v4567
    %v4608 = vcombine.high %v4551, %v4567
    %v4610 = vunpack.c.l.s4 1934713408
    %v4611 = vunpack.c.0.s8 %v4610
    %v4612 = vlaneseq
    %v4613 = vshrl.u32 %v4612, 7
    %v4614 = vsub.s32 %v4611, %v4613
    %v4615 = vrot.slane %v4607, %v4614
    %v4617 = vunpack.c.l.s4 1934713408
    %v4618 = vunpack.c.0.s8 %v4617
    %v4619 = vlaneseq
    %v4620 = vshrl.u32 %v4619, 7
    %v4621 = vsub.s32 %v4618, %v4620
    %v4622 = vrot.slane %v4608, %v4621
    %v4623 = vcombine.low %v4558, %v4574
    %v4624 = vcombine.high %v4558, %v4574
    %v4626 = vunpack.c.l.s4 1934713408
    %v4627 = vunpack.c.0.s8 %v4626
    %v4628 = vlaneseq
    %v4629 = vshrl.u32 %v4628, 7
    %v4630 = vsub.s32 %v4627, %v4629
    %v4631 = vrot.slane %v4623, %v4630
    %v4633 = vunpack.c.l.s4 1934713408
    %v4634 = vunpack.c.0.s8 %v4633
    %v4635 = vlaneseq
    %v4636 = vshrl.u32 %v4635, 7
    %v4637 = vsub.s32 %v4634, %v4636
    %v4638 = vrot.slane %v4624, %v4637
    %v4639 = vcombine.low %v4583, %v4615
    %v4640 = vcombine.high %v4583, %v4615
    %v4641 = vcombine.low %v4590, %v4622
    %v4642 = vcombine.high %v4590, %v4622
    %v4643 = vcombine.low %v4599, %v4631
    %v4644 = vcombine.high %v4599, %v4631
    %v4645 = vcombine.low %v4606, %v4638
    %v4646 = vcombine.high %v4606, %v4638
    %v4647 = vcombine.low %v201, %v239
    %v4648 = vcombine.high %v201, %v239
    %v4650 = vunpack.c.l.s4 1983009808
    %v4651 = vunpack.c.0.s8 %v4650
    %v4652 = vlaneseq
    %v4653 = vshrl.u32 %v4652, 7
    %v4654 = vsub.s32 %v4651, %v4653
    %v4655 = vrot.slane %v4647, %v4654
    %v4657 = vunpack.c.l.s4 1983009808
    %v4658 = vunpack.c.0.s8 %v4657
    %v4659 = vlaneseq
    %v4660 = vshrl.u32 %v4659, 7
    %v4661 = vsub.s32 %v4658, %v4660
    %v4662 = vrot.slane %v4648, %v4661
    %v4663 = vcombine.low %v220, %v258
    %v4664 = vcombine.high %v220, %v258
    %v4666 = vunpack.c.l.s4 1983009808
    %v4667 = vunpack.c.0.s8 %v4666
    %v4668 = vlaneseq
    %v4669 = vshrl.u32 %v4668, 7
    %v4670 = vsub.s32 %v4667, %v4669
    %v4671 = vrot.slane %v4663, %v4670
    %v4673 = vunpack.c.l.s4 1983009808
    %v4674 = vunpack.c.0.s8 %v4673
    %v4675 = vlaneseq
    %v4676 = vshrl.u32 %v4675, 7
    %v4677 = vsub.s32 %v4674, %v4676
    %v4678 = vrot.slane %v4664, %v4677
    %v4679 = vcombine.low %v277, %v315
    %v4680 = vcombine.high %v277, %v315
    %v4682 = vunpack.c.l.s4 1983009808
    %v4683 = vunpack.c.0.s8 %v4682
    %v4684 = vlaneseq
    %v4685 = vshrl.u32 %v4684, 7
    %v4686 = vsub.s32 %v4683, %v4685
    %v4687 = vrot.slane %v4679, %v4686
    %v4689 = vunpack.c.l.s4 1983009808
    %v4690 = vunpack.c.0.s8 %v4689
    %v4691 = vlaneseq
    %v4692 = vshrl.u32 %v4691, 7
    %v4693 = vsub.s32 %v4690, %v4692
    %v4694 = vrot.slane %v4680, %v4693
    %v4695 = vcombine.low %v296, %v334
    %v4696 = vcombine.high %v296, %v334
    %v4698 = vunpack.c.l.s4 1983009808
    %v4699 = vunpack.c.0.s8 %v4698
    %v4700 = vlaneseq
    %v4701 = vshrl.u32 %v4700, 7
    %v4702 = vsub.s32 %v4699, %v4701
    %v4703 = vrot.slane %v4695, %v4702
    %v4705 = vunpack.c.l.s4 1983009808
    %v4706 = vunpack.c.0.s8 %v4705
    %v4707 = vlaneseq
    %v4708 = vshrl.u32 %v4707, 7
    %v4709 = vsub.s32 %v4706, %v4708
    %v4710 = vrot.slane %v4696, %v4709
    %v4711 = vcombine.low %v4655, %v4671
    %v4712 = vcombine.high %v4655, %v4671
    %v4714 = vunpack.c.l.s4 1934713408
    %v4715 = vunpack.c.0.s8 %v4714
    %v4716 = vlaneseq
    %v4717 = vshrl.u32 %v4716, 7
    %v4718 = vsub.s32 %v4715, %v4717
    %v4719 = vrot.slane %v4711, %v4718
    %v4721 = vunpack.c.l.s4 1934713408
    %v4722 = vunpack.c.0.s8 %v4721
    %v4723 = vlaneseq
    %v4724 = vshrl.u32 %v4723, 7
    %v4725 = vsub.s32 %v4722, %v4724
    %v4726 = vrot.slane %v4712, %v4725
    %v4727 = vcombine.low %v4662, %v4678
    %v4728 = vcombine.high %v4662, %v4678
    %v4730 = vunpack.c.l.s4 1934713408
    %v4731 = vunpack.c.0.s8 %v4730
    %v4732 = vlaneseq
    %v4733 = vshrl.u32 %v4732, 7
    %v4734 = vsub.s32 %v4731, %v4733
    %v4735 = vrot.slane %v4727, %v4734
    %v4737 = vunpack.c.l.s4 1934713408
    %v4738 = vunpack.c.0.s8 %v4737
    %v4739 = vlaneseq
    %v4740 = vshrl.u32 %v4739, 7
    %v4741 = vsub.s32 %v4738, %v4740
    %v4742 = vrot.slane %v4728, %v4741
    %v4743 = vcombine.low %v4687, %v4703
    %v4744 = vcombine.high %v4687, %v4703
    %v4746 = vunpack.c.l.s4 1934713408
    %v4747 = vunpack.c.0.s8 %v4746
    %v4748 = vlaneseq
    %v4749 = vshrl.u32 %v4748, 7
    %v4750 = vsub.s32 %v4747, %v4749
    %v4751 = vrot.slane %v4743, %v4750
    %v4753 = vunpack.c.l.s4 1934713408
    %v4754 = vunpack.c.0.s8 %v4753
    %v4755 = vlaneseq
    %v4756 = vshrl.u32 %v4755, 7
    %v4757 = vsub.s32 %v4754, %v4756
    %v4758 = vrot.slane %v4744, %v4757
    %v4759 = vcombine.low %v4694, %v4710
    %v4760 = vcombine.high %v4694, %v4710
    %v4762 = vunpack.c.l.s4 1934713408
    %v4763 = vunpack.c.0.s8 %v4762
    %v4764 = vlaneseq
    %v4765 = vshrl.u32 %v4764, 7
    %v4766 = vsub.s32 %v4763, %v4765
    %v4767 = vrot.slane %v4759, %v4766
    %v4769 = vunpack.c.l.s4 1934713408
    %v4770 = vunpack.c.0.s8 %v4769
    %v4771 = vlaneseq
    %v4772 = vshrl.u32 %v4771, 7
    %v4773 = vsub.s32 %v4770, %v4772
    %v4774 = vrot.slane %v4760, %v4773
    %v4775 = vcombine.low %v4719, %v4751
    %v4776 = vcombine.high %v4719, %v4751
    %v4777 = vcombine.low %v4726, %v4758
    %v4778 = vcombine.high %v4726, %v4758
    %v4779 = vcombine.low %v4735, %v4767
    %v4780 = vcombine.high %v4735, %v4767
    %v4781 = vcombine.low %v4742, %v4774
    %v4782 = vcombine.high %v4742, %v4774
    %v4783 = vcombine.low %v353, %v391
    %v4784 = vcombine.high %v353, %v391
    %v4786 = vunpack.c.l.s4 1983009808
    %v4787 = vunpack.c.0.s8 %v4786
    %v4788 = vlaneseq
    %v4789 = vshrl.u32 %v4788, 7
    %v4790 = vsub.s32 %v4787, %v4789
    %v4791 = vrot.slane %v4783, %v4790
    %v4793 = vunpack.c.l.s4 1983009808
    %v4794 = vunpack.c.0.s8 %v4793
    %v4795 = vlaneseq
    %v4796 = vshrl.u32 %v4795, 7
    %v4797 = vsub.s32 %v4794, %v4796
    %v4798 = vrot.slane %v4784, %v4797
    %v4799 = vcombine.low %v372, %v410
    %v4800 = vcombine.high %v372, %v410
    %v4802 = vunpack.c.l.s4 1983009808
    %v4803 = vunpack.c.0.s8 %v4802
    %v4804 = vlaneseq
    %v4805 = vshrl.u32 %v4804, 7
    %v4806 = vsub.s32 %v4803, %v4805
    %v4807 = vrot.slane %v4799, %v4806
    %v4809 = vunpack.c.l.s4 1983009808
    %v4810 = vunpack.c.0.s8 %v4809
    %v4811 = vlaneseq
    %v4812 = vshrl.u32 %v4811, 7
    %v4813 = vsub.s32 %v4810, %v4812
    %v4814 = vrot.slane %v4800, %v4813
    %v4815 = vcombine.low %v429, %v467
    %v4816 = vcombine.high %v429, %v467
    %v4818 = vunpack.c.l.s4 1983009808
    %v4819 = vunpack.c.0.s8 %v4818
    %v4820 = vlaneseq
    %v4821 = vshrl.u32 %v4820, 7
    %v4822 = vsub.s32 %v4819, %v4821
    %v4823 = vrot.slane %v4815, %v4822
    %v4825 = vunpack.c.l.s4 1983009808
    %v4826 = vunpack.c.0.s8 %v4825
    %v4827 = vlaneseq
    %v4828 = vshrl.u32 %v4827, 7
    %v4829 = vsub.s32 %v4826, %v4828
    %v4830 = vrot.slane %v4816, %v4829
    %v4831 = vcombine.low %v448, %v486
    %v4832 = vcombine.high %v448, %v486
    %v4834 = vunpack.c.l.s4 1983009808
    %v4835 = vunpack.c.0.s8 %v4834
    %v4836 = vlaneseq
    %v4837 = vshrl.u32 %v4836, 7
    %v4838 = vsub.s32 %v4835, %v4837
    %v4839 = vrot.slane %v4831, %v4838
    %v4841 = vunpack.c.l.s4 1983009808
    %v4842 = vunpack.c.0.s8 %v4841
    %v4843 = vlaneseq
    %v4844 = vshrl.u32 %v4843, 7
    %v4845 = vsub.s32 %v4842, %v4844
    %v4846 = vrot.slane %v4832, %v4845
    %v4847 = vcombine.low %v4791, %v4807
    %v4848 = vcombine.high %v4791, %v4807
    %v4850 = vunpack.c.l.s4 1934713408
    %v4851 = vunpack.c.0.s8 %v4850
    %v4852 = vlaneseq
    %v4853 = vshrl.u32 %v4852, 7
    %v4854 = vsub.s32 %v4851, %v4853
    %v4855 = vrot.slane %v4847, %v4854
    %v4857 = vunpack.c.l.s4 1934713408
    %v4858 = vunpack.c.0.s8 %v4857
    %v4859 = vlaneseq
    %v4860 = vshrl.u32 %v4859, 7
    %v4861 = vsub.s32 %v4858, %v4860
    %v4862 = vrot.slane %v4848, %v4861
    %v4863 = vcombine.low %v4798, %v4814
    %v4864 = vcombine.high %v4798, %v4814
    %v4866 = vunpack.c.l.s4 1934713408
    %v4867 = vunpack.c.0.s8 %v4866
    %v4868 = vlaneseq
    %v4869 = vshrl.u32 %v4868, 7
    %v4870 = vsub.s32 %v4867, %v4869
    %v4871 = vrot.slane %v4863, %v4870
    %v4873 = vunpack.c.l.s4 1934713408
    %v4874 = vunpack.c.0.s8 %v4873
    %v4875 = vlaneseq
    %v4876 = vshrl.u32 %v4875, 7
    %v4877 = vsub.s32 %v4874, %v4876
    %v4878 = vrot.slane %v4864, %v4877
    %v4879 = vcombine.low %v4823, %v4839
    %v4880 = vcombine.high %v4823, %v4839
    %v4882 = vunpack.c.l.s4 1934713408
    %v4883 = vunpack.c.0.s8 %v4882
    %v4884 = vlaneseq
    %v4885 = vshrl.u32 %v4884, 7
    %v4886 = vsub.s32 %v4883, %v4885
    %v4887 = vrot.slane %v4879, %v4886
    %v4889 = vunpack.c.l.s4 1934713408
    %v4890 = vunpack.c.0.s8 %v4889
    %v4891 = vlaneseq
    %v4892 = vshrl.u32 %v4891, 7
    %v4893 = vsub.s32 %v4890, %v4892
    %v4894 = vrot.slane %v4880, %v4893
    %v4895 = vcombine.low %v4830, %v4846
    %v4896 = vcombine.high %v4830, %v4846
    %v4898 = vunpack.c.l.s4 1934713408
    %v4899 = vunpack.c.0.s8 %v4898
    %v4900 = vlaneseq
    %v4901 = vshrl.u32 %v4900, 7
    %v4902 = vsub.s32 %v4899, %v4901
    %v4903 = vrot.slane %v4895, %v4902
    %v4905 = vunpack.c.l.s4 1934713408
    %v4906 = vunpack.c.0.s8 %v4905
    %v4907 = vlaneseq
    %v4908 = vshrl.u32 %v4907, 7
    %v4909 = vsub.s32 %v4906, %v4908
    %v4910 = vrot.slane %v4896, %v4909
    %v4911 = vcombine.low %v4855, %v4887
    %v4912 = vcombine.high %v4855, %v4887
    %v4913 = vcombine.low %v4862, %v4894
    %v4914 = vcombine.high %v4862, %v4894
    %v4915 = vcombine.low %v4871, %v4903
    %v4916 = vcombine.high %v4871, %v4903
    %v4917 = vcombine.low %v4878, %v4910
    %v4918 = vcombine.high %v4878, %v4910
    %v4919 = vcombine.low %v505, %v543
    %v4920 = vcombine.high %v505, %v543
    %v4922 = vunpack.c.l.s4 1983009808
    %v4923 = vunpack.c.0.s8 %v4922
    %v4924 = vlaneseq
    %v4925 = vshrl.u32 %v4924, 7
    %v4926 = vsub.s32 %v4923, %v4925
    %v4927 = vrot.slane %v4919, %v4926
    %v4929 = vunpack.c.l.s4 1983009808
    %v4930 = vunpack.c.0.s8 %v4929
    %v4931 = vlaneseq
    %v4932 = vshrl.u32 %v4931, 7
    %v4933 = vsub.s32 %v4930, %v4932
    %v4934 = vrot.slane %v4920, %v4933
    %v4935 = vcombine.low %v524, %v562
    %v4936 = vcombine.high %v524, %v562
    %v4938 = vunpack.c.l.s4 1983009808
    %v4939 = vunpack.c.0.s8 %v4938
    %v4940 = vlaneseq
    %v4941 = vshrl.u32 %v4940, 7
    %v4942 = vsub.s32 %v4939, %v4941
    %v4943 = vrot.slane %v4935, %v4942
    %v4945 = vunpack.c.l.s4 1983009808
    %v4946 = vunpack.c.0.s8 %v4945
    %v4947 = vlaneseq
    %v4948 = vshrl.u32 %v4947, 7
    %v4949 = vsub.s32 %v4946, %v4948
    %v4950 = vrot.slane %v4936, %v4949
    %v4951 = vcombine.low %v581, %v619
    %v4952 = vcombine.high %v581, %v619
    %v4954 = vunpack.c.l.s4 1983009808
    %v4955 = vunpack.c.0.s8 %v4954
    %v4956 = vlaneseq
    %v4957 = vshrl.u32 %v4956, 7
    %v4958 = vsub.s32 %v4955, %v4957
    %v4959 = vrot.slane %v4951, %v4958
    %v4961 = vunpack.c.l.s4 1983009808
    %v4962 = vunpack.c.0.s8 %v4961
    %v4963 = vlaneseq
    %v4964 = vshrl.u32 %v4963, 7
    %v4965 = vsub.s32 %v4962, %v4964
    %v4966 = vrot.slane %v4952, %v4965
    %v4967 = vcombine.low %v600, %v638
    %v4968 = vcombine.high %v600, %v638
    %v4970 = vunpack.c.l.s4 1983009808
    %v4971 = vunpack.c.0.s8 %v4970
    %v4972 = vlaneseq
    %v4973 = vshrl.u32 %v4972, 7
    %v4974 = vsub.s32 %v4971, %v4973
    %v4975 = vrot.slane %v4967, %v4974
    %v4977 = vunpack.c.l.s4 1983009808
    %v4978 = vunpack.c.0.s8 %v4977
    %v4979 = vlaneseq
    %v4980 = vshrl.u32 %v4979, 7
    %v4981 = vsub.s32 %v4978, %v4980
    %v4982 = vrot.slane %v4968, %v4981
    %v4983 = vcombine.low %v4927, %v4943
    %v4984 = vcombine.high %v4927, %v4943
    %v4986 = vunpack.c.l.s4 1934713408
    %v4987 = vunpack.c.0.s8 %v4986
    %v4988 = vlaneseq
    %v4989 = vshrl.u32 %v4988, 7
    %v4990 = vsub.s32 %v4987, %v4989
    %v4991 = vrot.slane %v4983, %v4990
    %v4993 = vunpack.c.l.s4 1934713408
    %v4994 = vunpack.c.0.s8 %v4993
    %v4995 = vlaneseq
    %v4996 = vshrl.u32 %v4995, 7
    %v4997 = vsub.s32 %v4994, %v4996
    %v4998 = vrot.slane %v4984, %v4997
    %v4999 = vcombine.low %v4934, %v4950
    %v5000 = vcombine.high %v4934, %v4950
    %v5002 = vunpack.c.l.s4 1934713408
    %v5003 = vunpack.c.0.s8 %v5002
    %v5004 = vlaneseq
    %v5005 = vshrl.u32 %v5004, 7
    %v5006 = vsub.s32 %v5003, %v5005
    %v5007 = vrot.slane %v4999, %v5006
    %v5009 = vunpack.c.l.s4 1934713408
    %v5010 = vunpack.c.0.s8 %v5009
    %v5011 = vlaneseq
    %v5012 = vshrl.u32 %v5011, 7
    %v5013 = vsub.s32 %v5010, %v5012
    %v5014 = vrot.slane %v5000, %v5013
    %v5015 = vcombine.low %v4959, %v4975
    %v5016 = vcombine.high %v4959, %v4975
    %v5018 = vunpack.c.l.s4 1934713408
    %v5019 = vunpack.c.0.s8 %v5018
    %v5020 = vlaneseq
    %v5021 = vshrl.u32 %v5020, 7
    %v5022 = vsub.s32 %v5019, %v5021
    %v5023 = vrot.slane %v5015, %v5022
    %v5025 = vunpack.c.l.s4 1934713408
    %v5026 = vunpack.c.0.s8 %v5025
    %v5027 = vlaneseq
    %v5028 = vshrl.u32 %v5027, 7
    %v5029 = vsub.s32 %v5026, %v5028
    %v5030 = vrot.slane %v5016, %v5029
    %v5031 = vcombine.low %v4966, %v4982
    %v5032 = vcombine.high %v4966, %v4982
    %v5034 = vunpack.c.l.s4 1934713408
    %v5035 = vunpack.c.0.s8 %v5034
    %v5036 = vlaneseq
    %v5037 = vshrl.u32 %v5036, 7
    %v5038 = vsub.s32 %v5035, %v5037
    %v5039 = vrot.slane %v5031, %v5038
    %v5041 = vunpack.c.l.s4 1934713408
    %v5042 = vunpack.c.0.s8 %v5041
    %v5043 = vlaneseq
    %v5044 = vshrl.u32 %v5043, 7
    %v5045 = vsub.s32 %v5042, %v5044
    %v5046 = vrot.slane %v5032, %v5045
    %v5047 = vcombine.low %v4991, %v5023
    %v5048 = vcombine.high %v4991, %v5023
    %v5049 = vcombine.low %v4998, %v5030
    %v5050 = vcombine.high %v4998, %v5030
    %v5051 = vcombine.low %v5007, %v5039
    %v5052 = vcombine.high %v5007, %v5039
    %v5053 = vcombine.low %v5014, %v5046
    %v5054 = vcombine.high %v5014, %v5046
    %v5055 = vcombine.low %v657, %v695
    %v5056 = vcombine.high %v657, %v695
    %v5058 = vunpack.c.l.s4 1983009808
    %v5059 = vunpack.c.0.s8 %v5058
    %v5060 = vlaneseq
    %v5061 = vshrl.u32 %v5060, 7
    %v5062 = vsub.s32 %v5059, %v5061
    %v5063 = vrot.slane %v5055, %v5062
    %v5065 = vunpack.c.l.s4 1983009808
    %v5066 = vunpack.c.0.s8 %v5065
    %v5067 = vlaneseq
    %v5068 = vshrl.u32 %v5067, 7
    %v5069 = vsub.s32 %v5066, %v5068
    %v5070 = vrot.slane %v5056, %v5069
    %v5071 = vcombine.low %v676, %v714
    %v5072 = vcombine.high %v676, %v714
    %v5074 = vunpack.c.l.s4 1983009808
    %v5075 = vunpack.c.0.s8 %v5074
    %v5076 = vlaneseq
    %v5077 = vshrl.u32 %v5076, 7
    %v5078 = vsub.s32 %v5075, %v5077
    %v5079 = vrot.slane %v5071, %v5078
    %v5081 = vunpack.c.l.s4 1983009808
    %v5082 = vunpack.c.0.s8 %v5081
    %v5083 = vlaneseq
    %v5084 = vshrl.u32 %v5083, 7
    %v5085 = vsub.s32 %v5082, %v5084
    %v5086 = vrot.slane %v5072, %v5085
    %v5087 = vcombine.low %v733, %v771
    %v5088 = vcombine.high %v733, %v771
    %v5090 = vunpack.c.l.s4 1983009808
    %v5091 = vunpack.c.0.s8 %v5090
    %v5092 = vlaneseq
    %v5093 = vshrl.u32 %v5092, 7
    %v5094 = vsub.s32 %v5091, %v5093
    %v5095 = vrot.slane %v5087, %v5094
    %v5097 = vunpack.c.l.s4 1983009808
    %v5098 = vunpack.c.0.s8 %v5097
    %v5099 = vlaneseq
    %v5100 = vshrl.u32 %v5099, 7
    %v5101 = vsub.s32 %v5098, %v5100
    %v5102 = vrot.slane %v5088, %v5101
    %v5103 = vcombine.low %v752, %v790
    %v5104 = vcombine.high %v752, %v790
    %v5106 = vunpack.c.l.s4 1983009808
    %v5107 = vunpack.c.0.s8 %v5106
    %v5108 = vlaneseq
    %v5109 = vshrl.u32 %v5108, 7
    %v5110 = vsub.s32 %v5107, %v5109
    %v5111 = vrot.slane %v5103, %v5110
    %v5113 = vunpack.c.l.s4 1983009808
    %v5114 = vunpack.c.0.s8 %v5113
    %v5115 = vlaneseq
    %v5116 = vshrl.u32 %v5115, 7
    %v5117 = vsub.s32 %v5114, %v5116
    %v5118 = vrot.slane %v5104, %v5117
    %v5119 = vcombine.low %v5063, %v5079
    %v5120 = vcombine.high %v5063, %v5079
    %v5122 = vunpack.c.l.s4 1934713408
    %v5123 = vunpack.c.0.s8 %v5122
    %v5124 = vlaneseq
    %v5125 = vshrl.u32 %v5124, 7
    %v5126 = vsub.s32 %v5123, %v5125
    %v5127 = vrot.slane %v5119, %v5126
    %v5129 = vunpack.c.l.s4 1934713408
    %v5130 = vunpack.c.0.s8 %v5129
    %v5131 = vlaneseq
    %v5132 = vshrl.u32 %v5131, 7
    %v5133 = vsub.s32 %v5130, %v5132
    %v5134 = vrot.slane %v5120, %v5133
    %v5135 = vcombine.low %v5070, %v5086
    %v5136 = vcombine.high %v5070, %v5086
    %v5138 = vunpack.c.l.s4 1934713408
    %v5139 = vunpack.c.0.s8 %v5138
    %v5140 = vlaneseq
    %v5141 = vshrl.u32 %v5140, 7
    %v5142 = vsub.s32 %v5139, %v5141
    %v5143 = vrot.slane %v5135, %v5142
    %v5145 = vunpack.c.l.s4 1934713408
    %v5146 = vunpack.c.0.s8 %v5145
    %v5147 = vlaneseq
    %v5148 = vshrl.u32 %v5147, 7
    %v5149 = vsub.s32 %v5146, %v5148
    %v5150 = vrot.slane %v5136, %v5149
    %v5151 = vcombine.low %v5095, %v5111
    %v5152 = vcombine.high %v5095, %v5111
    %v5154 = vunpack.c.l.s4 1934713408
    %v5155 = vunpack.c.0.s8 %v5154
    %v5156 = vlaneseq
    %v5157 = vshrl.u32 %v5156, 7
    %v5158 = vsub.s32 %v5155, %v5157
    %v5159 = vrot.slane %v5151, %v5158
    %v5161 = vunpack.c.l.s4 1934713408
    %v5162 = vunpack.c.0.s8 %v5161
    %v5163 = vlaneseq
    %v5164 = vshrl.u32 %v5163, 7
    %v5165 = vsub.s32 %v5162, %v5164
    %v5166 = vrot.slane %v5152, %v5165
    %v5167 = vcombine.low %v5102, %v5118
    %v5168 = vcombine.high %v5102, %v5118
    %v5170 = vunpack.c.l.s4 1934713408
    %v5171 = vunpack.c.0.s8 %v5170
    %v5172 = vlaneseq
    %v5173 = vshrl.u32 %v5172, 7
    %v5174 = vsub.s32 %v5171, %v5173
    %v5175 = vrot.slane %v5167, %v5174
    %v5177 = vunpack.c.l.s4 1934713408
    %v5178 = vunpack.c.0.s8 %v5177
    %v5179 = vlaneseq
    %v5180 = vshrl.u32 %v5179, 7
    %v5181 = vsub.s32 %v5178, %v5180
    %v5182 = vrot.slane %v5168, %v5181
    %v5183 = vcombine.low %v5127, %v5159
    %v5184 = vcombine.high %v5127, %v5159
    %v5185 = vcombine.low %v5134, %v5166
    %v5186 = vcombine.high %v5134, %v5166
    %v5187 = vcombine.low %v5143, %v5175
    %v5188 = vcombine.high %v5143, %v5175
    %v5189 = vcombine.low %v5150, %v5182
    %v5190 = vcombine.high %v5150, %v5182
    %v5191 = vcombine.low %v809, %v847
    %v5192 = vcombine.high %v809, %v847
    %v5194 = vunpack.c.l.s4 1983009808
    %v5195 = vunpack.c.0.s8 %v5194
    %v5196 = vlaneseq
    %v5197 = vshrl.u32 %v5196, 7
    %v5198 = vsub.s32 %v5195, %v5197
    %v5199 = vrot.slane %v5191, %v5198
    %v5201 = vunpack.c.l.s4 1983009808
    %v5202 = vunpack.c.0.s8 %v5201
    %v5203 = vlaneseq
    %v5204 = vshrl.u32 %v5203, 7
    %v5205 = vsub.s32 %v5202, %v5204
    %v5206 = vrot.slane %v5192, %v5205
    %v5207 = vcombine.low %v828, %v866
    %v5208 = vcombine.high %v828, %v866
    %v5210 = vunpack.c.l.s4 1983009808
    %v5211 = vunpack.c.0.s8 %v5210
    %v5212 = vlaneseq
    %v5213 = vshrl.u32 %v5212, 7
    %v5214 = vsub.s32 %v5211, %v5213
    %v5215 = vrot.slane %v5207, %v5214
    %v5217 = vunpack.c.l.s4 1983009808
    %v5218 = vunpack.c.0.s8 %v5217
    %v5219 = vlaneseq
    %v5220 = vshrl.u32 %v5219, 7
    %v5221 = vsub.s32 %v5218, %v5220
    %v5222 = vrot.slane %v5208, %v5221
    %v5223 = vcombine.low %v885, %v923
    %v5224 = vcombine.high %v885, %v923
    %v5226 = vunpack.c.l.s4 1983009808
    %v5227 = vunpack.c.0.s8 %v5226
    %v5228 = vlaneseq
    %v5229 = vshrl.u32 %v5228, 7
    %v5230 = vsub.s32 %v5227, %v5229
    %v5231 = vrot.slane %v5223, %v5230
    %v5233 = vunpack.c.l.s4 1983009808
    %v5234 = vunpack.c.0.s8 %v5233
    %v5235 = vlaneseq
    %v5236 = vshrl.u32 %v5235, 7
    %v5237 = vsub.s32 %v5234, %v5236
    %v5238 = vrot.slane %v5224, %v5237
    %v5239 = vcombine.low %v904, %v942
    %v5240 = vcombine.high %v904, %v942
    %v5242 = vunpack.c.l.s4 1983009808
    %v5243 = vunpack.c.0.s8 %v5242
    %v5244 = vlaneseq
    %v5245 = vshrl.u32 %v5244, 7
    %v5246 = vsub.s32 %v5243, %v5245
    %v5247 = vrot.slane %v5239, %v5246
    %v5249 = vunpack.c.l.s4 1983009808
    %v5250 = vunpack.c.0.s8 %v5249
    %v5251 = vlaneseq
    %v5252 = vshrl.u32 %v5251, 7
    %v5253 = vsub.s32 %v5250, %v5252
    %v5254 = vrot.slane %v5240, %v5253
    %v5255 = vcombine.low %v5199, %v5215
    %v5256 = vcombine.high %v5199, %v5215
    %v5258 = vunpack.c.l.s4 1934713408
    %v5259 = vunpack.c.0.s8 %v5258
    %v5260 = vlaneseq
    %v5261 = vshrl.u32 %v5260, 7
    %v5262 = vsub.s32 %v5259, %v5261
    %v5263 = vrot.slane %v5255, %v5262
    %v5265 = vunpack.c.l.s4 1934713408
    %v5266 = vunpack.c.0.s8 %v5265
    %v5267 = vlaneseq
    %v5268 = vshrl.u32 %v5267, 7
    %v5269 = vsub.s32 %v5266, %v5268
    %v5270 = vrot.slane %v5256, %v5269
    %v5271 = vcombine.low %v5206, %v5222
    %v5272 = vcombine.high %v5206, %v5222
    %v5274 = vunpack.c.l.s4 1934713408
    %v5275 = vunpack.c.0.s8 %v5274
    %v5276 = vlaneseq
    %v5277 = vshrl.u32 %v5276, 7
    %v5278 = vsub.s32 %v5275, %v5277
    %v5279 = vrot.slane %v5271, %v5278
    %v5281 = vunpack.c.l.s4 1934713408
    %v5282 = vunpack.c.0.s8 %v5281
    %v5283 = vlaneseq
    %v5284 = vshrl.u32 %v5283, 7
    %v5285 = vsub.s32 %v5282, %v5284
    %v5286 = vrot.slane %v5272, %v5285
    %v5287 = vcombine.low %v5231, %v5247
    %v5288 = vcombine.high %v5231, %v5247
    %v5290 = vunpack.c.l.s4 1934713408
    %v5291 = vunpack.c.0.s8 %v5290
    %v5292 = vlaneseq
    %v5293 = vshrl.u32 %v5292, 7
    %v5294 = vsub.s32 %v5291, %v5293
    %v5295 = vrot.slane %v5287, %v5294
    %v5297 = vunpack.c.l.s4 1934713408
    %v5298 = vunpack.c.0.s8 %v5297
    %v5299 = vlaneseq
    %v5300 = vshrl.u32 %v5299, 7
    %v5301 = vsub.s32 %v5298, %v5300
    %v5302 = vrot.slane %v5288, %v5301
    %v5303 = vcombine.low %v5238, %v5254
    %v5304 = vcombine.high %v5238, %v5254
    %v5306 = vunpack.c.l.s4 1934713408
    %v5307 = vunpack.c.0.s8 %v5306
    %v5308 = vlaneseq
    %v5309 = vshrl.u32 %v5308, 7
    %v5310 = vsub.s32 %v5307, %v5309
    %v5311 = vrot.slane %v5303, %v5310
    %v5313 = vunpack.c.l.s4 1934713408
    %v5314 = vunpack.c.0.s8 %v5313
    %v5315 = vlaneseq
    %v5316 = vshrl.u32 %v5315, 7
    %v5317 = vsub.s32 %v5314, %v5316
    %v5318 = vrot.slane %v5304, %v5317
    %v5319 = vcombine.low %v5263, %v5295
    %v5320 = vcombine.high %v5263, %v5295
    %v5321 = vcombine.low %v5270, %v5302
    %v5322 = vcombine.high %v5270, %v5302
    %v5323 = vcombine.low %v5279, %v5311
    %v5324 = vcombine.high %v5279, %v5311
    %v5325 = vcombine.low %v5286, %v5318
    %v5326 = vcombine.high %v5286, %v5318
    %v5327 = vcombine.low %v961, %v999
    %v5328 = vcombine.high %v961, %v999
    %v5330 = vunpack.c.l.s4 1983009808
    %v5331 = vunpack.c.0.s8 %v5330
    %v5332 = vlaneseq
    %v5333 = vshrl.u32 %v5332, 7
    %v5334 = vsub.s32 %v5331, %v5333
    %v5335 = vrot.slane %v5327, %v5334
    %v5337 = vunpack.c.l.s4 1983009808
    %v5338 = vunpack.c.0.s8 %v5337
    %v5339 = vlaneseq
    %v5340 = vshrl.u32 %v5339, 7
    %v5341 = vsub.s32 %v5338, %v5340
    %v5342 = vrot.slane %v5328, %v5341
    %v5343 = vcombine.low %v980, %v1018
    %v5344 = vcombine.high %v980, %v1018
    %v5346 = vunpack.c.l.s4 1983009808
    %v5347 = vunpack.c.0.s8 %v5346
    %v5348 = vlaneseq
    %v5349 = vshrl.u32 %v5348, 7
    %v5350 = vsub.s32 %v5347, %v5349
    %v5351 = vrot.slane %v5343, %v5350
    %v5353 = vunpack.c.l.s4 1983009808
    %v5354 = vunpack.c.0.s8 %v5353
    %v5355 = vlaneseq
    %v5356 = vshrl.u32 %v5355, 7
    %v5357 = vsub.s32 %v5354, %v5356
    %v5358 = vrot.slane %v5344, %v5357
    %v5359 = vcombine.low %v1037, %v1075
    %v5360 = vcombine.high %v1037, %v1075
    %v5362 = vunpack.c.l.s4 1983009808
    %v5363 = vunpack.c.0.s8 %v5362
    %v5364 = vlaneseq
    %v5365 = vshrl.u32 %v5364, 7
    %v5366 = vsub.s32 %v5363, %v5365
    %v5367 = vrot.slane %v5359, %v5366
    %v5369 = vunpack.c.l.s4 1983009808
    %v5370 = vunpack.c.0.s8 %v5369
    %v5371 = vlaneseq
    %v5372 = vshrl.u32 %v5371, 7
    %v5373 = vsub.s32 %v5370, %v5372
    %v5374 = vrot.slane %v5360, %v5373
    %v5375 = vcombine.low %v1056, %v1094
    %v5376 = vcombine.high %v1056, %v1094
    %v5378 = vunpack.c.l.s4 1983009808
    %v5379 = vunpack.c.0.s8 %v5378
    %v5380 = vlaneseq
    %v5381 = vshrl.u32 %v5380, 7
    %v5382 = vsub.s32 %v5379, %v5381
    %v5383 = vrot.slane %v5375, %v5382
    %v5385 = vunpack.c.l.s4 1983009808
    %v5386 = vunpack.c.0.s8 %v5385
    %v5387 = vlaneseq
    %v5388 = vshrl.u32 %v5387, 7
    %v5389 = vsub.s32 %v5386, %v5388
    %v5390 = vrot.slane %v5376, %v5389
    %v5391 = vcombine.low %v5335, %v5351
    %v5392 = vcombine.high %v5335, %v5351
    %v5394 = vunpack.c.l.s4 1934713408
    %v5395 = vunpack.c.0.s8 %v5394
    %v5396 = vlaneseq
    %v5397 = vshrl.u32 %v5396, 7
    %v5398 = vsub.s32 %v5395, %v5397
    %v5399 = vrot.slane %v5391, %v5398
    %v5401 = vunpack.c.l.s4 1934713408
    %v5402 = vunpack.c.0.s8 %v5401
    %v5403 = vlaneseq
    %v5404 = vshrl.u32 %v5403, 7
    %v5405 = vsub.s32 %v5402, %v5404
    %v5406 = vrot.slane %v5392, %v5405
    %v5407 = vcombine.low %v5342, %v5358
    %v5408 = vcombine.high %v5342, %v5358
    %v5410 = vunpack.c.l.s4 1934713408
    %v5411 = vunpack.c.0.s8 %v5410
    %v5412 = vlaneseq
    %v5413 = vshrl.u32 %v5412, 7
    %v5414 = vsub.s32 %v5411, %v5413
    %v5415 = vrot.slane %v5407, %v5414
    %v5417 = vunpack.c.l.s4 1934713408
    %v5418 = vunpack.c.0.s8 %v5417
    %v5419 = vlaneseq
    %v5420 = vshrl.u32 %v5419, 7
    %v5421 = vsub.s32 %v5418, %v5420
    %v5422 = vrot.slane %v5408, %v5421
    %v5423 = vcombine.low %v5367, %v5383
    %v5424 = vcombine.high %v5367, %v5383
    %v5426 = vunpack.c.l.s4 1934713408
    %v5427 = vunpack.c.0.s8 %v5426
    %v5428 = vlaneseq
    %v5429 = vshrl.u32 %v5428, 7
    %v5430 = vsub.s32 %v5427, %v5429
    %v5431 = vrot.slane %v5423, %v5430
    %v5433 = vunpack.c.l.s4 1934713408
    %v5434 = vunpack.c.0.s8 %v5433
    %v5435 = vlaneseq
    %v5436 = vshrl.u32 %v5435, 7
    %v5437 = vsub.s32 %v5434, %v5436
    %v5438 = vrot.slane %v5424, %v5437
    %v5439 = vcombine.low %v5374, %v5390
    %v5440 = vcombine.high %v5374, %v5390
    %v5442 = vunpack.c.l.s4 1934713408
    %v5443 = vunpack.c.0.s8 %v5442
    %v5444 = vlaneseq
    %v5445 = vshrl.u32 %v5444, 7
    %v5446 = vsub.s32 %v5443, %v5445
    %v5447 = vrot.slane %v5439, %v5446
    %v5449 = vunpack.c.l.s4 1934713408
    %v5450 = vunpack.c.0.s8 %v5449
    %v5451 = vlaneseq
    %v5452 = vshrl.u32 %v5451, 7
    %v5453 = vsub.s32 %v5450, %v5452
    %v5454 = vrot.slane %v5440, %v5453
    %v5455 = vcombine.low %v5399, %v5431
    %v5456 = vcombine.high %v5399, %v5431
    %v5457 = vcombine.low %v5406, %v5438
    %v5458 = vcombine.high %v5406, %v5438
    %v5459 = vcombine.low %v5415, %v5447
    %v5460 = vcombine.high %v5415, %v5447
    %v5461 = vcombine.low %v5422, %v5454
    %v5462 = vcombine.high %v5422, %v5454
    %v5463 = vcombine.low %v1113, %v1151
    %v5464 = vcombine.high %v1113, %v1151
    %v5466 = vunpack.c.l.s4 1983009808
    %v5467 = vunpack.c.0.s8 %v5466
    %v5468 = vlaneseq
    %v5469 = vshrl.u32 %v5468, 7
    %v5470 = vsub.s32 %v5467, %v5469
    %v5471 = vrot.slane %v5463, %v5470
    %v5473 = vunpack.c.l.s4 1983009808
    %v5474 = vunpack.c.0.s8 %v5473
    %v5475 = vlaneseq
    %v5476 = vshrl.u32 %v5475, 7
    %v5477 = vsub.s32 %v5474, %v5476
    %v5478 = vrot.slane %v5464, %v5477
    %v5479 = vcombine.low %v1132, %v1170
    %v5480 = vcombine.high %v1132, %v1170
    %v5482 = vunpack.c.l.s4 1983009808
    %v5483 = vunpack.c.0.s8 %v5482
    %v5484 = vlaneseq
    %v5485 = vshrl.u32 %v5484, 7
    %v5486 = vsub.s32 %v5483, %v5485
    %v5487 = vrot.slane %v5479, %v5486
    %v5489 = vunpack.c.l.s4 1983009808
    %v5490 = vunpack.c.0.s8 %v5489
    %v5491 = vlaneseq
    %v5492 = vshrl.u32 %v5491, 7
    %v5493 = vsub.s32 %v5490, %v5492
    %v5494 = vrot.slane %v5480, %v5493
    %v5495 = vcombine.low %v1189, %v1227
    %v5496 = vcombine.high %v1189, %v1227
    %v5498 = vunpack.c.l.s4 1983009808
    %v5499 = vunpack.c.0.s8 %v5498
    %v5500 = vlaneseq
    %v5501 = vshrl.u32 %v5500, 7
    %v5502 = vsub.s32 %v5499, %v5501
    %v5503 = vrot.slane %v5495, %v5502
    %v5505 = vunpack.c.l.s4 1983009808
    %v5506 = vunpack.c.0.s8 %v5505
    %v5507 = vlaneseq
    %v5508 = vshrl.u32 %v5507, 7
    %v5509 = vsub.s32 %v5506, %v5508
    %v5510 = vrot.slane %v5496, %v5509
    %v5511 = vcombine.low %v1208, %v1246
    %v5512 = vcombine.high %v1208, %v1246
    %v5514 = vunpack.c.l.s4 1983009808
    %v5515 = vunpack.c.0.s8 %v5514
    %v5516 = vlaneseq
    %v5517 = vshrl.u32 %v5516, 7
    %v5518 = vsub.s32 %v5515, %v5517
    %v5519 = vrot.slane %v5511, %v5518
    %v5521 = vunpack.c.l.s4 1983009808
    %v5522 = vunpack.c.0.s8 %v5521
    %v5523 = vlaneseq
    %v5524 = vshrl.u32 %v5523, 7
    %v5525 = vsub.s32 %v5522, %v5524
    %v5526 = vrot.slane %v5512, %v5525
    %v5527 = vcombine.low %v5471, %v5487
    %v5528 = vcombine.high %v5471, %v5487
    %v5530 = vunpack.c.l.s4 1934713408
    %v5531 = vunpack.c.0.s8 %v5530
    %v5532 = vlaneseq
    %v5533 = vshrl.u32 %v5532, 7
    %v5534 = vsub.s32 %v5531, %v5533
    %v5535 = vrot.slane %v5527, %v5534
    %v5537 = vunpack.c.l.s4 1934713408
    %v5538 = vunpack.c.0.s8 %v5537
    %v5539 = vlaneseq
    %v5540 = vshrl.u32 %v5539, 7
    %v5541 = vsub.s32 %v5538, %v5540
    %v5542 = vrot.slane %v5528, %v5541
    %v5543 = vcombine.low %v5478, %v5494
    %v5544 = vcombine.high %v5478, %v5494
    %v5546 = vunpack.c.l.s4 1934713408
    %v5547 = vunpack.c.0.s8 %v5546
    %v5548 = vlaneseq
    %v5549 = vshrl.u32 %v5548, 7
    %v5550 = vsub.s32 %v5547, %v5549
    %v5551 = vrot.slane %v5543, %v5550
    %v5553 = vunpack.c.l.s4 1934713408
    %v5554 = vunpack.c.0.s8 %v5553
    %v5555 = vlaneseq
    %v5556 = vshrl.u32 %v5555, 7
    %v5557 = vsub.s32 %v5554, %v5556
    %v5558 = vrot.slane %v5544, %v5557
    %v5559 = vcombine.low %v5503, %v5519
    %v5560 = vcombine.high %v5503, %v5519
    %v5562 = vunpack.c.l.s4 1934713408
    %v5563 = vunpack.c.0.s8 %v5562
    %v5564 = vlaneseq
    %v5565 = vshrl.u32 %v5564, 7
    %v5566 = vsub.s32 %v5563, %v5565
    %v5567 = vrot.slane %v5559, %v5566
    %v5569 = vunpack.c.l.s4 1934713408
    %v5570 = vunpack.c.0.s8 %v5569
    %v5571 = vlaneseq
    %v5572 = vshrl.u32 %v5571, 7
    %v5573 = vsub.s32 %v5570, %v5572
    %v5574 = vrot.slane %v5560, %v5573
    %v5575 = vcombine.low %v5510, %v5526
    %v5576 = vcombine.high %v5510, %v5526
    %v5578 = vunpack.c.l.s4 1934713408
    %v5579 = vunpack.c.0.s8 %v5578
    %v5580 = vlaneseq
    %v5581 = vshrl.u32 %v5580, 7
    %v5582 = vsub.s32 %v5579, %v5581
    %v5583 = vrot.slane %v5575, %v5582
    %v5585 = vunpack.c.l.s4 1934713408
    %v5586 = vunpack.c.0.s8 %v5585
    %v5587 = vlaneseq
    %v5588 = vshrl.u32 %v5587, 7
    %v5589 = vsub.s32 %v5586, %v5588
    %v5590 = vrot.slane %v5576, %v5589
    %v5591 = vcombine.low %v5535, %v5567
    %v5592 = vcombine.high %v5535, %v5567
    %v5593 = vcombine.low %v5542, %v5574
    %v5594 = vcombine.high %v5542, %v5574
    %v5595 = vcombine.low %v5551, %v5583
    %v5596 = vcombine.high %v5551, %v5583
    %v5597 = vcombine.low %v5558, %v5590
    %v5598 = vcombine.high %v5558, %v5590
    %5607 = vrot.lane.b32.xlu0 %v1376, 2
    %v5608 = vpop.permute.xlu0 %5607
    %5609 = vrot.lane.b32.xlu0 %v1512, 2
    %v5610 = vpop.permute.xlu0 %5609
    %5611 = vrot.lane.b32.xlu0 %v1648, 2
    %v5612 = vpop.permute.xlu0 %5611
    %5613 = vrot.lane.b32.xlu0 %v1784, 2
    %v5614 = vpop.permute.xlu0 %5613
    %5615 = vrot.lane.b32.xlu0 %v1920, 2
    %v5616 = vpop.permute.xlu0 %5615
    %5617 = vrot.lane.b32.xlu0 %v2056, 2
    %v5618 = vpop.permute.xlu0 %5617
    %5619 = vrot.lane.b32.xlu0 %v2192, 2
    %v5620 = vpop.permute.xlu0 %5619
    %5621 = vrot.lane.b32.xlu0 %v2328, 2
    %v5622 = vpop.permute.xlu0 %5621
    %5639 = vrot.lane.b32.xlu0 %v1377, 4
    %v5640 = vpop.permute.xlu0 %5639
    %5641 = vrot.lane.b32.xlu0 %v1513, 4
    %v5642 = vpop.permute.xlu0 %5641
    %5643 = vrot.lane.b32.xlu0 %v1649, 4
    %v5644 = vpop.permute.xlu0 %5643
    %5645 = vrot.lane.b32.xlu0 %v1785, 4
    %v5646 = vpop.permute.xlu0 %5645
    %5647 = vrot.lane.b32.xlu0 %v1921, 4
    %v5648 = vpop.permute.xlu0 %5647
    %5649 = vrot.lane.b32.xlu0 %v2057, 4
    %v5650 = vpop.permute.xlu0 %5649
    %5651 = vrot.lane.b32.xlu0 %v2193, 4
    %v5652 = vpop.permute.xlu0 %5651
    %5653 = vrot.lane.b32.xlu0 %v2329, 4
    %v5654 = vpop.permute.xlu0 %5653
    %5671 = vrot.lane.b32.xlu0 %v1378, 6
    %v5672 = vpop.permute.xlu0 %5671
    %5673 = vrot.lane.b32.xlu0 %v1514, 6
    %v5674 = vpop.permute.xlu0 %5673
    %5675 = vrot.lane.b32.xlu0 %v1650, 6
    %v5676 = vpop.permute.xlu0 %5675
    %5677 = vrot.lane.b32.xlu0 %v1786, 6
    %v5678 = vpop.permute.xlu0 %5677
    %5679 = vrot.lane.b32.xlu0 %v1922, 6
    %v5680 = vpop.permute.xlu0 %5679
    %5681 = vrot.lane.b32.xlu0 %v2058, 6
    %v5682 = vpop.permute.xlu0 %5681
    %5683 = vrot.lane.b32.xlu0 %v2194, 6
    %v5684 = vpop.permute.xlu0 %5683
    %5685 = vrot.lane.b32.xlu0 %v2330, 6
    %v5686 = vpop.permute.xlu0 %5685
    %5703 = vrot.lane.b32.xlu0 %v1379, 8
    %v5704 = vpop.permute.xlu0 %5703
    %5705 = vrot.lane.b32.xlu0 %v1515, 8
    %v5706 = vpop.permute.xlu0 %5705
    %5707 = vrot.lane.b32.xlu0 %v1651, 8
    %v5708 = vpop.permute.xlu0 %5707
    %5709 = vrot.lane.b32.xlu0 %v1787, 8
    %v5710 = vpop.permute.xlu0 %5709
    %5711 = vrot.lane.b32.xlu0 %v1923, 8
    %v5712 = vpop.permute.xlu0 %5711
    %5713 = vrot.lane.b32.xlu0 %v2059, 8
    %v5714 = vpop.permute.xlu0 %5713
    %5715 = vrot.lane.b32.xlu0 %v2195, 8
    %v5716 = vpop.permute.xlu0 %5715
    %5717 = vrot.lane.b32.xlu0 %v2331, 8
    %v5718 = vpop.permute.xlu0 %5717
    %5735 = vrot.lane.b32.xlu0 %v1380, 10
    %v5736 = vpop.permute.xlu0 %5735
    %5737 = vrot.lane.b32.xlu0 %v1516, 10
    %v5738 = vpop.permute.xlu0 %5737
    %5739 = vrot.lane.b32.xlu0 %v1652, 10
    %v5740 = vpop.permute.xlu0 %5739
    %5741 = vrot.lane.b32.xlu0 %v1788, 10
    %v5742 = vpop.permute.xlu0 %5741
    %5743 = vrot.lane.b32.xlu0 %v1924, 10
    %v5744 = vpop.permute.xlu0 %5743
    %5745 = vrot.lane.b32.xlu0 %v2060, 10
    %v5746 = vpop.permute.xlu0 %5745
    %5747 = vrot.lane.b32.xlu0 %v2196, 10
    %v5748 = vpop.permute.xlu0 %5747
    %5749 = vrot.lane.b32.xlu0 %v2332, 10
    %v5750 = vpop.permute.xlu0 %5749
    %5767 = vrot.lane.b32.xlu0 %v1381, 12
    %v5768 = vpop.permute.xlu0 %5767
    %5769 = vrot.lane.b32.xlu0 %v1517, 12
    %v5770 = vpop.permute.xlu0 %5769
    %5771 = vrot.lane.b32.xlu0 %v1653, 12
    %v5772 = vpop.permute.xlu0 %5771
    %5773 = vrot.lane.b32.xlu0 %v1789, 12
    %v5774 = vpop.permute.xlu0 %5773
    %5775 = vrot.lane.b32.xlu0 %v1925, 12
    %v5776 = vpop.permute.xlu0 %5775
    %5777 = vrot.lane.b32.xlu0 %v2061, 12
    %v5778 = vpop.permute.xlu0 %5777
    %5779 = vrot.lane.b32.xlu0 %v2197, 12
    %v5780 = vpop.permute.xlu0 %5779
    %5781 = vrot.lane.b32.xlu0 %v2333, 12
    %v5782 = vpop.permute.xlu0 %5781
    %5799 = vrot.lane.b32.xlu0 %v1382, 14
    %v5800 = vpop.permute.xlu0 %5799
    %5801 = vrot.lane.b32.xlu0 %v1518, 14
    %v5802 = vpop.permute.xlu0 %5801
    %5803 = vrot.lane.b32.xlu0 %v1654, 14
    %v5804 = vpop.permute.xlu0 %5803
    %5805 = vrot.lane.b32.xlu0 %v1790, 14
    %v5806 = vpop.permute.xlu0 %5805
    %5807 = vrot.lane.b32.xlu0 %v1926, 14
    %v5808 = vpop.permute.xlu0 %5807
    %5809 = vrot.lane.b32.xlu0 %v2062, 14
    %v5810 = vpop.permute.xlu0 %5809
    %5811 = vrot.lane.b32.xlu0 %v2198, 14
    %v5812 = vpop.permute.xlu0 %5811
    %5813 = vrot.lane.b32.xlu0 %v2334, 14
    %v5814 = vpop.permute.xlu0 %5813
    %5831 = vrot.lane.b32.xlu0 %v2463, 16
    %v5832 = vpop.permute.xlu0 %5831
    %5833 = vrot.lane.b32.xlu0 %v2599, 16
    %v5834 = vpop.permute.xlu0 %5833
    %5835 = vrot.lane.b32.xlu0 %v2735, 16
    %v5836 = vpop.permute.xlu0 %5835
    %5837 = vrot.lane.b32.xlu0 %v2871, 16
    %v5838 = vpop.permute.xlu0 %5837
    %5839 = vrot.lane.b32.xlu0 %v3007, 16
    %v5840 = vpop.permute.xlu0 %5839
    %5841 = vrot.lane.b32.xlu0 %v3143, 16
    %v5842 = vpop.permute.xlu0 %5841
    %5843 = vrot.lane.b32.xlu0 %v3279, 16
    %v5844 = vpop.permute.xlu0 %5843
    %5845 = vrot.lane.b32.xlu0 %v3415, 16
    %v5846 = vpop.permute.xlu0 %5845
    %5863 = vrot.lane.b32.xlu0 %v2464, 18
    %v5864 = vpop.permute.xlu0 %5863
    %5865 = vrot.lane.b32.xlu0 %v2600, 18
    %v5866 = vpop.permute.xlu0 %5865
    %5867 = vrot.lane.b32.xlu0 %v2736, 18
    %v5868 = vpop.permute.xlu0 %5867
    %5869 = vrot.lane.b32.xlu0 %v2872, 18
    %v5870 = vpop.permute.xlu0 %5869
    %5871 = vrot.lane.b32.xlu0 %v3008, 18
    %v5872 = vpop.permute.xlu0 %5871
    %5873 = vrot.lane.b32.xlu0 %v3144, 18
    %v5874 = vpop.permute.xlu0 %5873
    %5875 = vrot.lane.b32.xlu0 %v3280, 18
    %v5876 = vpop.permute.xlu0 %5875
    %5877 = vrot.lane.b32.xlu0 %v3416, 18
    %v5878 = vpop.permute.xlu0 %5877
    %5895 = vrot.lane.b32.xlu0 %v2465, 20
    %v5896 = vpop.permute.xlu0 %5895
    %5897 = vrot.lane.b32.xlu0 %v2601, 20
    %v5898 = vpop.permute.xlu0 %5897
    %5899 = vrot.lane.b32.xlu0 %v2737, 20
    %v5900 = vpop.permute.xlu0 %5899
    %5901 = vrot.lane.b32.xlu0 %v2873, 20
    %v5902 = vpop.permute.xlu0 %5901
    %5903 = vrot.lane.b32.xlu0 %v3009, 20
    %v5904 = vpop.permute.xlu0 %5903
    %5905 = vrot.lane.b32.xlu0 %v3145, 20
    %v5906 = vpop.permute.xlu0 %5905
    %5907 = vrot.lane.b32.xlu0 %v3281, 20
    %v5908 = vpop.permute.xlu0 %5907
    %5909 = vrot.lane.b32.xlu0 %v3417, 20
    %v5910 = vpop.permute.xlu0 %5909
    %5927 = vrot.lane.b32.xlu0 %v2466, 22
    %v5928 = vpop.permute.xlu0 %5927
    %5929 = vrot.lane.b32.xlu0 %v2602, 22
    %v5930 = vpop.permute.xlu0 %5929
    %5931 = vrot.lane.b32.xlu0 %v2738, 22
    %v5932 = vpop.permute.xlu0 %5931
    %5933 = vrot.lane.b32.xlu0 %v2874, 22
    %v5934 = vpop.permute.xlu0 %5933
    %5935 = vrot.lane.b32.xlu0 %v3010, 22
    %v5936 = vpop.permute.xlu0 %5935
    %5937 = vrot.lane.b32.xlu0 %v3146, 22
    %v5938 = vpop.permute.xlu0 %5937
    %5939 = vrot.lane.b32.xlu0 %v3282, 22
    %v5940 = vpop.permute.xlu0 %5939
    %5941 = vrot.lane.b32.xlu0 %v3418, 22
    %v5942 = vpop.permute.xlu0 %5941
    %5959 = vrot.lane.b32.xlu0 %v2467, 24
    %v5960 = vpop.permute.xlu0 %5959
    %5961 = vrot.lane.b32.xlu0 %v2603, 24
    %v5962 = vpop.permute.xlu0 %5961
    %5963 = vrot.lane.b32.xlu0 %v2739, 24
    %v5964 = vpop.permute.xlu0 %5963
    %5965 = vrot.lane.b32.xlu0 %v2875, 24
    %v5966 = vpop.permute.xlu0 %5965
    %5967 = vrot.lane.b32.xlu0 %v3011, 24
    %v5968 = vpop.permute.xlu0 %5967
    %5969 = vrot.lane.b32.xlu0 %v3147, 24
    %v5970 = vpop.permute.xlu0 %5969
    %5971 = vrot.lane.b32.xlu0 %v3283, 24
    %v5972 = vpop.permute.xlu0 %5971
    %5973 = vrot.lane.b32.xlu0 %v3419, 24
    %v5974 = vpop.permute.xlu0 %5973
    %5991 = vrot.lane.b32.xlu0 %v2468, 26
    %v5992 = vpop.permute.xlu0 %5991
    %5993 = vrot.lane.b32.xlu0 %v2604, 26
    %v5994 = vpop.permute.xlu0 %5993
    %5995 = vrot.lane.b32.xlu0 %v2740, 26
    %v5996 = vpop.permute.xlu0 %5995
    %5997 = vrot.lane.b32.xlu0 %v2876, 26
    %v5998 = vpop.permute.xlu0 %5997
    %5999 = vrot.lane.b32.xlu0 %v3012, 26
    %v6000 = vpop.permute.xlu0 %5999
    %6001 = vrot.lane.b32.xlu0 %v3148, 26
    %v6002 = vpop.permute.xlu0 %6001
    %6003 = vrot.lane.b32.xlu0 %v3284, 26
    %v6004 = vpop.permute.xlu0 %6003
    %6005 = vrot.lane.b32.xlu0 %v3420, 26
    %v6006 = vpop.permute.xlu0 %6005
    %6023 = vrot.lane.b32.xlu0 %v2469, 28
    %v6024 = vpop.permute.xlu0 %6023
    %6025 = vrot.lane.b32.xlu0 %v2605, 28
    %v6026 = vpop.permute.xlu0 %6025
    %6027 = vrot.lane.b32.xlu0 %v2741, 28
    %v6028 = vpop.permute.xlu0 %6027
    %6029 = vrot.lane.b32.xlu0 %v2877, 28
    %v6030 = vpop.permute.xlu0 %6029
    %6031 = vrot.lane.b32.xlu0 %v3013, 28
    %v6032 = vpop.permute.xlu0 %6031
    %6033 = vrot.lane.b32.xlu0 %v3149, 28
    %v6034 = vpop.permute.xlu0 %6033
    %6035 = vrot.lane.b32.xlu0 %v3285, 28
    %v6036 = vpop.permute.xlu0 %6035
    %6037 = vrot.lane.b32.xlu0 %v3421, 28
    %v6038 = vpop.permute.xlu0 %6037
    %6055 = vrot.lane.b32.xlu0 %v2470, 30
    %v6056 = vpop.permute.xlu0 %6055
    %6057 = vrot.lane.b32.xlu0 %v2606, 30
    %v6058 = vpop.permute.xlu0 %6057
    %6059 = vrot.lane.b32.xlu0 %v2742, 30
    %v6060 = vpop.permute.xlu0 %6059
    %6061 = vrot.lane.b32.xlu0 %v2878, 30
    %v6062 = vpop.permute.xlu0 %6061
    %6063 = vrot.lane.b32.xlu0 %v3014, 30
    %v6064 = vpop.permute.xlu0 %6063
    %6065 = vrot.lane.b32.xlu0 %v3150, 30
    %v6066 = vpop.permute.xlu0 %6065
    %6067 = vrot.lane.b32.xlu0 %v3286, 30
    %v6068 = vpop.permute.xlu0 %6067
    %6069 = vrot.lane.b32.xlu0 %v3422, 30
    %v6070 = vpop.permute.xlu0 %6069
    %6087 = vrot.lane.b32.xlu0 %v3551, 32
    %v6088 = vpop.permute.xlu0 %6087
    %6089 = vrot.lane.b32.xlu0 %v3687, 32
    %v6090 = vpop.permute.xlu0 %6089
    %6091 = vrot.lane.b32.xlu0 %v3823, 32
    %v6092 = vpop.permute.xlu0 %6091
    %6093 = vrot.lane.b32.xlu0 %v3959, 32
    %v6094 = vpop.permute.xlu0 %6093
    %6095 = vrot.lane.b32.xlu0 %v4095, 32
    %v6096 = vpop.permute.xlu0 %6095
    %6097 = vrot.lane.b32.xlu0 %v4231, 32
    %v6098 = vpop.permute.xlu0 %6097
    %6099 = vrot.lane.b32.xlu0 %v4367, 32
    %v6100 = vpop.permute.xlu0 %6099
    %6101 = vrot.lane.b32.xlu0 %v4503, 32
    %v6102 = vpop.permute.xlu0 %6101
    %6119 = vrot.lane.b32.xlu0 %v3552, 34
    %v6120 = vpop.permute.xlu0 %6119
    %6121 = vrot.lane.b32.xlu0 %v3688, 34
    %v6122 = vpop.permute.xlu0 %6121
    %6123 = vrot.lane.b32.xlu0 %v3824, 34
    %v6124 = vpop.permute.xlu0 %6123
    %6125 = vrot.lane.b32.xlu0 %v3960, 34
    %v6126 = vpop.permute.xlu0 %6125
    %6127 = vrot.lane.b32.xlu0 %v4096, 34
    %v6128 = vpop.permute.xlu0 %6127
    %6129 = vrot.lane.b32.xlu0 %v4232, 34
    %v6130 = vpop.permute.xlu0 %6129
    %6131 = vrot.lane.b32.xlu0 %v4368, 34
    %v6132 = vpop.permute.xlu0 %6131
    %6133 = vrot.lane.b32.xlu0 %v4504, 34
    %v6134 = vpop.permute.xlu0 %6133
    %6151 = vrot.lane.b32.xlu0 %v3553, 36
    %v6152 = vpop.permute.xlu0 %6151
    %6153 = vrot.lane.b32.xlu0 %v3689, 36
    %v6154 = vpop.permute.xlu0 %6153
    %6155 = vrot.lane.b32.xlu0 %v3825, 36
    %v6156 = vpop.permute.xlu0 %6155
    %6157 = vrot.lane.b32.xlu0 %v3961, 36
    %v6158 = vpop.permute.xlu0 %6157
    %6159 = vrot.lane.b32.xlu0 %v4097, 36
    %v6160 = vpop.permute.xlu0 %6159
    %6161 = vrot.lane.b32.xlu0 %v4233, 36
    %v6162 = vpop.permute.xlu0 %6161
    %6163 = vrot.lane.b32.xlu0 %v4369, 36
    %v6164 = vpop.permute.xlu0 %6163
    %6165 = vrot.lane.b32.xlu0 %v4505, 36
    %v6166 = vpop.permute.xlu0 %6165
    %6183 = vrot.lane.b32.xlu0 %v3554, 38
    %v6184 = vpop.permute.xlu0 %6183
    %6185 = vrot.lane.b32.xlu0 %v3690, 38
    %v6186 = vpop.permute.xlu0 %6185
    %6187 = vrot.lane.b32.xlu0 %v3826, 38
    %v6188 = vpop.permute.xlu0 %6187
    %6189 = vrot.lane.b32.xlu0 %v3962, 38
    %v6190 = vpop.permute.xlu0 %6189
    %6191 = vrot.lane.b32.xlu0 %v4098, 38
    %v6192 = vpop.permute.xlu0 %6191
    %6193 = vrot.lane.b32.xlu0 %v4234, 38
    %v6194 = vpop.permute.xlu0 %6193
    %6195 = vrot.lane.b32.xlu0 %v4370, 38
    %v6196 = vpop.permute.xlu0 %6195
    %6197 = vrot.lane.b32.xlu0 %v4506, 38
    %v6198 = vpop.permute.xlu0 %6197
    %6215 = vrot.lane.b32.xlu0 %v3555, 40
    %v6216 = vpop.permute.xlu0 %6215
    %6217 = vrot.lane.b32.xlu0 %v3691, 40
    %v6218 = vpop.permute.xlu0 %6217
    %6219 = vrot.lane.b32.xlu0 %v3827, 40
    %v6220 = vpop.permute.xlu0 %6219
    %6221 = vrot.lane.b32.xlu0 %v3963, 40
    %v6222 = vpop.permute.xlu0 %6221
    %6223 = vrot.lane.b32.xlu0 %v4099, 40
    %v6224 = vpop.permute.xlu0 %6223
    %6225 = vrot.lane.b32.xlu0 %v4235, 40
    %v6226 = vpop.permute.xlu0 %6225
    %6227 = vrot.lane.b32.xlu0 %v4371, 40
    %v6228 = vpop.permute.xlu0 %6227
    %6229 = vrot.lane.b32.xlu0 %v4507, 40
    %v6230 = vpop.permute.xlu0 %6229
    %6247 = vrot.lane.b32.xlu0 %v3556, 42
    %v6248 = vpop.permute.xlu0 %6247
    %6249 = vrot.lane.b32.xlu0 %v3692, 42
    %v6250 = vpop.permute.xlu0 %6249
    %6251 = vrot.lane.b32.xlu0 %v3828, 42
    %v6252 = vpop.permute.xlu0 %6251
    %6253 = vrot.lane.b32.xlu0 %v3964, 42
    %v6254 = vpop.permute.xlu0 %6253
    %6255 = vrot.lane.b32.xlu0 %v4100, 42
    %v6256 = vpop.permute.xlu0 %6255
    %6257 = vrot.lane.b32.xlu0 %v4236, 42
    %v6258 = vpop.permute.xlu0 %6257
    %6259 = vrot.lane.b32.xlu0 %v4372, 42
    %v6260 = vpop.permute.xlu0 %6259
    %6261 = vrot.lane.b32.xlu0 %v4508, 42
    %v6262 = vpop.permute.xlu0 %6261
    %6279 = vrot.lane.b32.xlu0 %v3557, 44
    %v6280 = vpop.permute.xlu0 %6279
    %6281 = vrot.lane.b32.xlu0 %v3693, 44
    %v6282 = vpop.permute.xlu0 %6281
    %6283 = vrot.lane.b32.xlu0 %v3829, 44
    %v6284 = vpop.permute.xlu0 %6283
    %6285 = vrot.lane.b32.xlu0 %v3965, 44
    %v6286 = vpop.permute.xlu0 %6285
    %6287 = vrot.lane.b32.xlu0 %v4101, 44
    %v6288 = vpop.permute.xlu0 %6287
    %6289 = vrot.lane.b32.xlu0 %v4237, 44
    %v6290 = vpop.permute.xlu0 %6289
    %6291 = vrot.lane.b32.xlu0 %v4373, 44
    %v6292 = vpop.permute.xlu0 %6291
    %6293 = vrot.lane.b32.xlu0 %v4509, 44
    %v6294 = vpop.permute.xlu0 %6293
    %6311 = vrot.lane.b32.xlu0 %v3558, 46
    %v6312 = vpop.permute.xlu0 %6311
    %6313 = vrot.lane.b32.xlu0 %v3694, 46
    %v6314 = vpop.permute.xlu0 %6313
    %6315 = vrot.lane.b32.xlu0 %v3830, 46
    %v6316 = vpop.permute.xlu0 %6315
    %6317 = vrot.lane.b32.xlu0 %v3966, 46
    %v6318 = vpop.permute.xlu0 %6317
    %6319 = vrot.lane.b32.xlu0 %v4102, 46
    %v6320 = vpop.permute.xlu0 %6319
    %6321 = vrot.lane.b32.xlu0 %v4238, 46
    %v6322 = vpop.permute.xlu0 %6321
    %6323 = vrot.lane.b32.xlu0 %v4374, 46
    %v6324 = vpop.permute.xlu0 %6323
    %6325 = vrot.lane.b32.xlu0 %v4510, 46
    %v6326 = vpop.permute.xlu0 %6325
    %6343 = vrot.lane.b32.xlu0 %v4639, 48
    %v6344 = vpop.permute.xlu0 %6343
    %6345 = vrot.lane.b32.xlu0 %v4775, 48
    %v6346 = vpop.permute.xlu0 %6345
    %6347 = vrot.lane.b32.xlu0 %v4911, 48
    %v6348 = vpop.permute.xlu0 %6347
    %6349 = vrot.lane.b32.xlu0 %v5047, 48
    %v6350 = vpop.permute.xlu0 %6349
    %6351 = vrot.lane.b32.xlu0 %v5183, 48
    %v6352 = vpop.permute.xlu0 %6351
    %6353 = vrot.lane.b32.xlu0 %v5319, 48
    %v6354 = vpop.permute.xlu0 %6353
    %6355 = vrot.lane.b32.xlu0 %v5455, 48
    %v6356 = vpop.permute.xlu0 %6355
    %6357 = vrot.lane.b32.xlu0 %v5591, 48
    %v6358 = vpop.permute.xlu0 %6357
    %6375 = vrot.lane.b32.xlu0 %v4640, 50
    %v6376 = vpop.permute.xlu0 %6375
    %6377 = vrot.lane.b32.xlu0 %v4776, 50
    %v6378 = vpop.permute.xlu0 %6377
    %6379 = vrot.lane.b32.xlu0 %v4912, 50
    %v6380 = vpop.permute.xlu0 %6379
    %6381 = vrot.lane.b32.xlu0 %v5048, 50
    %v6382 = vpop.permute.xlu0 %6381
    %6383 = vrot.lane.b32.xlu0 %v5184, 50
    %v6384 = vpop.permute.xlu0 %6383
    %6385 = vrot.lane.b32.xlu0 %v5320, 50
    %v6386 = vpop.permute.xlu0 %6385
    %6387 = vrot.lane.b32.xlu0 %v5456, 50
    %v6388 = vpop.permute.xlu0 %6387
    %6389 = vrot.lane.b32.xlu0 %v5592, 50
    %v6390 = vpop.permute.xlu0 %6389
    %6407 = vrot.lane.b32.xlu0 %v4641, 52
    %v6408 = vpop.permute.xlu0 %6407
    %6409 = vrot.lane.b32.xlu0 %v4777, 52
    %v6410 = vpop.permute.xlu0 %6409
    %6411 = vrot.lane.b32.xlu0 %v4913, 52
    %v6412 = vpop.permute.xlu0 %6411
    %6413 = vrot.lane.b32.xlu0 %v5049, 52
    %v6414 = vpop.permute.xlu0 %6413
    %6415 = vrot.lane.b32.xlu0 %v5185, 52
    %v6416 = vpop.permute.xlu0 %6415
    %6417 = vrot.lane.b32.xlu0 %v5321, 52
    %v6418 = vpop.permute.xlu0 %6417
    %6419 = vrot.lane.b32.xlu0 %v5457, 52
    %v6420 = vpop.permute.xlu0 %6419
    %6421 = vrot.lane.b32.xlu0 %v5593, 52
    %v6422 = vpop.permute.xlu0 %6421
    %6439 = vrot.lane.b32.xlu0 %v4642, 54
    %v6440 = vpop.permute.xlu0 %6439
    %6441 = vrot.lane.b32.xlu0 %v4778, 54
    %v6442 = vpop.permute.xlu0 %6441
    %6443 = vrot.lane.b32.xlu0 %v4914, 54
    %v6444 = vpop.permute.xlu0 %6443
    %6445 = vrot.lane.b32.xlu0 %v5050, 54
    %v6446 = vpop.permute.xlu0 %6445
    %6447 = vrot.lane.b32.xlu0 %v5186, 54
    %v6448 = vpop.permute.xlu0 %6447
    %6449 = vrot.lane.b32.xlu0 %v5322, 54
    %v6450 = vpop.permute.xlu0 %6449
    %6451 = vrot.lane.b32.xlu0 %v5458, 54
    %v6452 = vpop.permute.xlu0 %6451
    %6453 = vrot.lane.b32.xlu0 %v5594, 54
    %v6454 = vpop.permute.xlu0 %6453
    %6471 = vrot.lane.b32.xlu0 %v4643, 56
    %v6472 = vpop.permute.xlu0 %6471
    %6473 = vrot.lane.b32.xlu0 %v4779, 56
    %v6474 = vpop.permute.xlu0 %6473
    %6475 = vrot.lane.b32.xlu0 %v4915, 56
    %v6476 = vpop.permute.xlu0 %6475
    %6477 = vrot.lane.b32.xlu0 %v5051, 56
    %v6478 = vpop.permute.xlu0 %6477
    %6479 = vrot.lane.b32.xlu0 %v5187, 56
    %v6480 = vpop.permute.xlu0 %6479
    %6481 = vrot.lane.b32.xlu0 %v5323, 56
    %v6482 = vpop.permute.xlu0 %6481
    %6483 = vrot.lane.b32.xlu0 %v5459, 56
    %v6484 = vpop.permute.xlu0 %6483
    %6485 = vrot.lane.b32.xlu0 %v5595, 56
    %v6486 = vpop.permute.xlu0 %6485
    %6503 = vrot.lane.b32.xlu0 %v4644, 58
    %v6504 = vpop.permute.xlu0 %6503
    %6505 = vrot.lane.b32.xlu0 %v4780, 58
    %v6506 = vpop.permute.xlu0 %6505
    %6507 = vrot.lane.b32.xlu0 %v4916, 58
    %v6508 = vpop.permute.xlu0 %6507
    %6509 = vrot.lane.b32.xlu0 %v5052, 58
    %v6510 = vpop.permute.xlu0 %6509
    %6511 = vrot.lane.b32.xlu0 %v5188, 58
    %v6512 = vpop.permute.xlu0 %6511
    %6513 = vrot.lane.b32.xlu0 %v5324, 58
    %v6514 = vpop.permute.xlu0 %6513
    %6515 = vrot.lane.b32.xlu0 %v5460, 58
    %v6516 = vpop.permute.xlu0 %6515
    %6517 = vrot.lane.b32.xlu0 %v5596, 58
    %v6518 = vpop.permute.xlu0 %6517
    %6535 = vrot.lane.b32.xlu0 %v4645, 60
    %v6536 = vpop.permute.xlu0 %6535
    %6537 = vrot.lane.b32.xlu0 %v4781, 60
    %v6538 = vpop.permute.xlu0 %6537
    %6539 = vrot.lane.b32.xlu0 %v4917, 60
    %v6540 = vpop.permute.xlu0 %6539
    %6541 = vrot.lane.b32.xlu0 %v5053, 60
    %v6542 = vpop.permute.xlu0 %6541
    %6543 = vrot.lane.b32.xlu0 %v5189, 60
    %v6544 = vpop.permute.xlu0 %6543
    %6545 = vrot.lane.b32.xlu0 %v5325, 60
    %v6546 = vpop.permute.xlu0 %6545
    %6547 = vrot.lane.b32.xlu0 %v5461, 60
    %v6548 = vpop.permute.xlu0 %6547
    %6549 = vrot.lane.b32.xlu0 %v5597, 60
    %v6550 = vpop.permute.xlu0 %6549
    %6567 = vrot.lane.b32.xlu0 %v4646, 62
    %v6568 = vpop.permute.xlu0 %6567
    %6569 = vrot.lane.b32.xlu0 %v4782, 62
    %v6570 = vpop.permute.xlu0 %6569
    %6571 = vrot.lane.b32.xlu0 %v4918, 62
    %v6572 = vpop.permute.xlu0 %6571
    %6573 = vrot.lane.b32.xlu0 %v5054, 62
    %v6574 = vpop.permute.xlu0 %6573
    %6575 = vrot.lane.b32.xlu0 %v5190, 62
    %v6576 = vpop.permute.xlu0 %6575
    %6577 = vrot.lane.b32.xlu0 %v5326, 62
    %v6578 = vpop.permute.xlu0 %6577
    %6579 = vrot.lane.b32.xlu0 %v5462, 62
    %v6580 = vpop.permute.xlu0 %6579
    %6581 = vrot.lane.b32.xlu0 %v5598, 62
    %v6582 = vpop.permute.xlu0 %6581
    %vm6591 = vcmask 15360
    %v6592 = vsel %vm6591, %v1375, %v5608
    %v6593 = vsel %vm6591, %v1511, %v5610
    %v6594 = vsel %vm6591, %v1647, %v5612
    %v6595 = vsel %vm6591, %v1783, %v5614
    %v6596 = vsel %vm6591, %v1919, %v5616
    %v6597 = vsel %vm6591, %v2055, %v5618
    %v6598 = vsel %vm6591, %v2191, %v5620
    %v6599 = vsel %vm6591, %v2327, %v5622
    %vm6600 = vcmask 31744
    %v6601 = vsel %vm6600, %v6592, %v5640
    %v6602 = vsel %vm6600, %v6593, %v5642
    %v6603 = vsel %vm6600, %v6594, %v5644
    %v6604 = vsel %vm6600, %v6595, %v5646
    %v6605 = vsel %vm6600, %v6596, %v5648
    %v6606 = vsel %vm6600, %v6597, %v5650
    %v6607 = vsel %vm6600, %v6598, %v5652
    %v6608 = vsel %vm6600, %v6599, %v5654
    %vm6609 = vcmask 48128
    %v6610 = vsel %vm6609, %v6601, %v5672
    %v6611 = vsel %vm6609, %v6602, %v5674
    %v6612 = vsel %vm6609, %v6603, %v5676
    %v6613 = vsel %vm6609, %v6604, %v5678
    %v6614 = vsel %vm6609, %v6605, %v5680
    %v6615 = vsel %vm6609, %v6606, %v5682
    %v6616 = vsel %vm6609, %v6607, %v5684
    %v6617 = vsel %vm6609, %v6608, %v5686
    %vm6618 = vcmask 64512
    %v6619 = vsel %vm6618, %v6610, %v5704
    %v6620 = vsel %vm6618, %v6611, %v5706
    %v6621 = vsel %vm6618, %v6612, %v5708
    %v6622 = vsel %vm6618, %v6613, %v5710
    %v6623 = vsel %vm6618, %v6614, %v5712
    %v6624 = vsel %vm6618, %v6615, %v5714
    %v6625 = vsel %vm6618, %v6616, %v5716
    %v6626 = vsel %vm6618, %v6617, %v5718
    %vm6627 = vcmask 80896
    %v6628 = vsel %vm6627, %v6619, %v5736
    %v6629 = vsel %vm6627, %v6620, %v5738
    %v6630 = vsel %vm6627, %v6621, %v5740
    %v6631 = vsel %vm6627, %v6622, %v5742
    %v6632 = vsel %vm6627, %v6623, %v5744
    %v6633 = vsel %vm6627, %v6624, %v5746
    %v6634 = vsel %vm6627, %v6625, %v5748
    %v6635 = vsel %vm6627, %v6626, %v5750
    %vm6636 = vcmask 97280
    %v6637 = vsel %vm6636, %v6628, %v5768
    %v6638 = vsel %vm6636, %v6629, %v5770
    %v6639 = vsel %vm6636, %v6630, %v5772
    %v6640 = vsel %vm6636, %v6631, %v5774
    %v6641 = vsel %vm6636, %v6632, %v5776
    %v6642 = vsel %vm6636, %v6633, %v5778
    %v6643 = vsel %vm6636, %v6634, %v5780
    %v6644 = vsel %vm6636, %v6635, %v5782
    %vm6645 = vcmask 113664
    %v6646 = vsel %vm6645, %v6637, %v5800
    %v6647 = vsel %vm6645, %v6638, %v5802
    %v6648 = vsel %vm6645, %v6639, %v5804
    %v6649 = vsel %vm6645, %v6640, %v5806
    %v6650 = vsel %vm6645, %v6641, %v5808
    %v6651 = vsel %vm6645, %v6642, %v5810
    %v6652 = vsel %vm6645, %v6643, %v5812
    %v6653 = vsel %vm6645, %v6644, %v5814
    %vm6654 = vcmask 130048
    %v6655 = vsel %vm6654, %v6646, %v5832
    %v6656 = vsel %vm6654, %v6647, %v5834
    %v6657 = vsel %vm6654, %v6648, %v5836
    %v6658 = vsel %vm6654, %v6649, %v5838
    %v6659 = vsel %vm6654, %v6650, %v5840
    %v6660 = vsel %vm6654, %v6651, %v5842
    %v6661 = vsel %vm6654, %v6652, %v5844
    %v6662 = vsel %vm6654, %v6653, %v5846
    %vm6663 = vcmask 146432
    %v6664 = vsel %vm6663, %v6655, %v5864
    %v6665 = vsel %vm6663, %v6656, %v5866
    %v6666 = vsel %vm6663, %v6657, %v5868
    %v6667 = vsel %vm6663, %v6658, %v5870
    %v6668 = vsel %vm6663, %v6659, %v5872
    %v6669 = vsel %vm6663, %v6660, %v5874
    %v6670 = vsel %vm6663, %v6661, %v5876
    %v6671 = vsel %vm6663, %v6662, %v5878
    %vm6672 = vcmask 162816
    %v6673 = vsel %vm6672, %v6664, %v5896
    %v6674 = vsel %vm6672, %v6665, %v5898
    %v6675 = vsel %vm6672, %v6666, %v5900
    %v6676 = vsel %vm6672, %v6667, %v5902
    %v6677 = vsel %vm6672, %v6668, %v5904
    %v6678 = vsel %vm6672, %v6669, %v5906
    %v6679 = vsel %vm6672, %v6670, %v5908
    %v6680 = vsel %vm6672, %v6671, %v5910
    %vm6681 = vcmask 179200
    %v6682 = vsel %vm6681, %v6673, %v5928
    %v6683 = vsel %vm6681, %v6674, %v5930
    %v6684 = vsel %vm6681, %v6675, %v5932
    %v6685 = vsel %vm6681, %v6676, %v5934
    %v6686 = vsel %vm6681, %v6677, %v5936
    %v6687 = vsel %vm6681, %v6678, %v5938
    %v6688 = vsel %vm6681, %v6679, %v5940
    %v6689 = vsel %vm6681, %v6680, %v5942
    %vm6690 = vcmask 195584
    %v6691 = vsel %vm6690, %v6682, %v5960
    %v6692 = vsel %vm6690, %v6683, %v5962
    %v6693 = vsel %vm6690, %v6684, %v5964
    %v6694 = vsel %vm6690, %v6685, %v5966
    %v6695 = vsel %vm6690, %v6686, %v5968
    %v6696 = vsel %vm6690, %v6687, %v5970
    %v6697 = vsel %vm6690, %v6688, %v5972
    %v6698 = vsel %vm6690, %v6689, %v5974
    %vm6699 = vcmask 211968
    %v6700 = vsel %vm6699, %v6691, %v5992
    %v6701 = vsel %vm6699, %v6692, %v5994
    %v6702 = vsel %vm6699, %v6693, %v5996
    %v6703 = vsel %vm6699, %v6694, %v5998
    %v6704 = vsel %vm6699, %v6695, %v6000
    %v6705 = vsel %vm6699, %v6696, %v6002
    %v6706 = vsel %vm6699, %v6697, %v6004
    %v6707 = vsel %vm6699, %v6698, %v6006
    %vm6708 = vcmask 228352
    %v6709 = vsel %vm6708, %v6700, %v6024
    %v6710 = vsel %vm6708, %v6701, %v6026
    %v6711 = vsel %vm6708, %v6702, %v6028
    %v6712 = vsel %vm6708, %v6703, %v6030
    %v6713 = vsel %vm6708, %v6704, %v6032
    %v6714 = vsel %vm6708, %v6705, %v6034
    %v6715 = vsel %vm6708, %v6706, %v6036
    %v6716 = vsel %vm6708, %v6707, %v6038
    %vm6717 = vcmask 244736
    %v6718 = vsel %vm6717, %v6709, %v6056
    %v6719 = vsel %vm6717, %v6710, %v6058
    %v6720 = vsel %vm6717, %v6711, %v6060
    %v6721 = vsel %vm6717, %v6712, %v6062
    %v6722 = vsel %vm6717, %v6713, %v6064
    %v6723 = vsel %vm6717, %v6714, %v6066
    %v6724 = vsel %vm6717, %v6715, %v6068
    %v6725 = vsel %vm6717, %v6716, %v6070
    %vm6726 = vcmask 261120
    %v6727 = vsel %vm6726, %v6718, %v6088
    %v6728 = vsel %vm6726, %v6719, %v6090
    %v6729 = vsel %vm6726, %v6720, %v6092
    %v6730 = vsel %vm6726, %v6721, %v6094
    %v6731 = vsel %vm6726, %v6722, %v6096
    %v6732 = vsel %vm6726, %v6723, %v6098
    %v6733 = vsel %vm6726, %v6724, %v6100
    %v6734 = vsel %vm6726, %v6725, %v6102
    %vm6735 = vcmask 277504
    %v6736 = vsel %vm6735, %v6727, %v6120
    %v6737 = vsel %vm6735, %v6728, %v6122
    %v6738 = vsel %vm6735, %v6729, %v6124
    %v6739 = vsel %vm6735, %v6730, %v6126
    %v6740 = vsel %vm6735, %v6731, %v6128
    %v6741 = vsel %vm6735, %v6732, %v6130
    %v6742 = vsel %vm6735, %v6733, %v6132
    %v6743 = vsel %vm6735, %v6734, %v6134
    %vm6744 = vcmask 293888
    %v6745 = vsel %vm6744, %v6736, %v6152
    %v6746 = vsel %vm6744, %v6737, %v6154
    %v6747 = vsel %vm6744, %v6738, %v6156
    %v6748 = vsel %vm6744, %v6739, %v6158
    %v6749 = vsel %vm6744, %v6740, %v6160
    %v6750 = vsel %vm6744, %v6741, %v6162
    %v6751 = vsel %vm6744, %v6742, %v6164
    %v6752 = vsel %vm6744, %v6743, %v6166
    %vm6753 = vcmask 310272
    %v6754 = vsel %vm6753, %v6745, %v6184
    %v6755 = vsel %vm6753, %v6746, %v6186
    %v6756 = vsel %vm6753, %v6747, %v6188
    %v6757 = vsel %vm6753, %v6748, %v6190
    %v6758 = vsel %vm6753, %v6749, %v6192
    %v6759 = vsel %vm6753, %v6750, %v6194
    %v6760 = vsel %vm6753, %v6751, %v6196
    %v6761 = vsel %vm6753, %v6752, %v6198
    %vm6762 = vcmask 326656
    %v6763 = vsel %vm6762, %v6754, %v6216
    %v6764 = vsel %vm6762, %v6755, %v6218
    %v6765 = vsel %vm6762, %v6756, %v6220
    %v6766 = vsel %vm6762, %v6757, %v6222
    %v6767 = vsel %vm6762, %v6758, %v6224
    %v6768 = vsel %vm6762, %v6759, %v6226
    %v6769 = vsel %vm6762, %v6760, %v6228
    %v6770 = vsel %vm6762, %v6761, %v6230
    %vm6771 = vcmask 343040
    %v6772 = vsel %vm6771, %v6763, %v6248
    %v6773 = vsel %vm6771, %v6764, %v6250
    %v6774 = vsel %vm6771, %v6765, %v6252
    %v6775 = vsel %vm6771, %v6766, %v6254
    %v6776 = vsel %vm6771, %v6767, %v6256
    %v6777 = vsel %vm6771, %v6768, %v6258
    %v6778 = vsel %vm6771, %v6769, %v6260
    %v6779 = vsel %vm6771, %v6770, %v6262
    %vm6780 = vcmask 359424
    %v6781 = vsel %vm6780, %v6772, %v6280
    %v6782 = vsel %vm6780, %v6773, %v6282
    %v6783 = vsel %vm6780, %v6774, %v6284
    %v6784 = vsel %vm6780, %v6775, %v6286
    %v6785 = vsel %vm6780, %v6776, %v6288
    %v6786 = vsel %vm6780, %v6777, %v6290
    %v6787 = vsel %vm6780, %v6778, %v6292
    %v6788 = vsel %vm6780, %v6779, %v6294
    %vm6789 = vcmask 375808
    %v6790 = vsel %vm6789, %v6781, %v6312
    %v6791 = vsel %vm6789, %v6782, %v6314
    %v6792 = vsel %vm6789, %v6783, %v6316
    %v6793 = vsel %vm6789, %v6784, %v6318
    %v6794 = vsel %vm6789, %v6785, %v6320
    %v6795 = vsel %vm6789, %v6786, %v6322
    %v6796 = vsel %vm6789, %v6787, %v6324
    %v6797 = vsel %vm6789, %v6788, %v6326
    %vm6798 = vcmask 392192
    %v6799 = vsel %vm6798, %v6790, %v6344
    %v6800 = vsel %vm6798, %v6791, %v6346
    %v6801 = vsel %vm6798, %v6792, %v6348
    %v6802 = vsel %vm6798, %v6793, %v6350
    %v6803 = vsel %vm6798, %v6794, %v6352
    %v6804 = vsel %vm6798, %v6795, %v6354
    %v6805 = vsel %vm6798, %v6796, %v6356
    %v6806 = vsel %vm6798, %v6797, %v6358
    %vm6807 = vcmask 408576
    %v6808 = vsel %vm6807, %v6799, %v6376
    %v6809 = vsel %vm6807, %v6800, %v6378
    %v6810 = vsel %vm6807, %v6801, %v6380
    %v6811 = vsel %vm6807, %v6802, %v6382
    %v6812 = vsel %vm6807, %v6803, %v6384
    %v6813 = vsel %vm6807, %v6804, %v6386
    %v6814 = vsel %vm6807, %v6805, %v6388
    %v6815 = vsel %vm6807, %v6806, %v6390
    %vm6816 = vcmask 424960
    %v6817 = vsel %vm6816, %v6808, %v6408
    %v6818 = vsel %vm6816, %v6809, %v6410
    %v6819 = vsel %vm6816, %v6810, %v6412
    %v6820 = vsel %vm6816, %v6811, %v6414
    %v6821 = vsel %vm6816, %v6812, %v6416
    %v6822 = vsel %vm6816, %v6813, %v6418
    %v6823 = vsel %vm6816, %v6814, %v6420
    %v6824 = vsel %vm6816, %v6815, %v6422
    %vm6825 = vcmask 441344
    %v6826 = vsel %vm6825, %v6817, %v6440
    %v6827 = vsel %vm6825, %v6818, %v6442
    %v6828 = vsel %vm6825, %v6819, %v6444
    %v6829 = vsel %vm6825, %v6820, %v6446
    %v6830 = vsel %vm6825, %v6821, %v6448
    %v6831 = vsel %vm6825, %v6822, %v6450
    %v6832 = vsel %vm6825, %v6823, %v6452
    %v6833 = vsel %vm6825, %v6824, %v6454
    %vm6834 = vcmask 457728
    %v6835 = vsel %vm6834, %v6826, %v6472
    %v6836 = vsel %vm6834, %v6827, %v6474
    %v6837 = vsel %vm6834, %v6828, %v6476
    %v6838 = vsel %vm6834, %v6829, %v6478
    %v6839 = vsel %vm6834, %v6830, %v6480
    %v6840 = vsel %vm6834, %v6831, %v6482
    %v6841 = vsel %vm6834, %v6832, %v6484
    %v6842 = vsel %vm6834, %v6833, %v6486
    %vm6843 = vcmask 474112
    %v6844 = vsel %vm6843, %v6835, %v6504
    %v6845 = vsel %vm6843, %v6836, %v6506
    %v6846 = vsel %vm6843, %v6837, %v6508
    %v6847 = vsel %vm6843, %v6838, %v6510
    %v6848 = vsel %vm6843, %v6839, %v6512
    %v6849 = vsel %vm6843, %v6840, %v6514
    %v6850 = vsel %vm6843, %v6841, %v6516
    %v6851 = vsel %vm6843, %v6842, %v6518
    %vm6852 = vcmask 490496
    %v6853 = vsel %vm6852, %v6844, %v6536
    %v6854 = vsel %vm6852, %v6845, %v6538
    %v6855 = vsel %vm6852, %v6846, %v6540
    %v6856 = vsel %vm6852, %v6847, %v6542
    %v6857 = vsel %vm6852, %v6848, %v6544
    %v6858 = vsel %vm6852, %v6849, %v6546
    %v6859 = vsel %vm6852, %v6850, %v6548
    %v6860 = vsel %vm6852, %v6851, %v6550
    %vm6861 = vcmask 506880
    %v6862 = vsel %vm6861, %v6853, %v6568
    %v6863 = vsel %vm6861, %v6854, %v6570
    %v6864 = vsel %vm6861, %v6855, %v6572
    %v6865 = vsel %vm6861, %v6856, %v6574
    %v6866 = vsel %vm6861, %v6857, %v6576
    %v6867 = vsel %vm6861, %v6858, %v6578
    %v6868 = vsel %vm6861, %v6859, %v6580
    %v6869 = vsel %vm6861, %v6860, %v6582
    %6878 = vrot.lane.b32.xlu0 %v6862, 32
    %v6879 = vpop.permute.xlu0 %6878
    %6880 = vrot.lane.b32.xlu0 %v6863, 32
    %v6881 = vpop.permute.xlu0 %6880
    %6882 = vrot.lane.b32.xlu0 %v6864, 32
    %v6883 = vpop.permute.xlu0 %6882
    %6884 = vrot.lane.b32.xlu0 %v6865, 32
    %v6885 = vpop.permute.xlu0 %6884
    %6886 = vrot.lane.b32.xlu0 %v6866, 32
    %v6887 = vpop.permute.xlu0 %6886
    %6888 = vrot.lane.b32.xlu0 %v6867, 32
    %v6889 = vpop.permute.xlu0 %6888
    %6890 = vrot.lane.b32.xlu0 %v6868, 32
    %v6891 = vpop.permute.xlu0 %6890
    %6892 = vrot.lane.b32.xlu0 %v6869, 32
    %v6893 = vpop.permute.xlu0 %6892
    %6902 = vrot.lane.b32.xlu0 %v6862, 64
    %v6903 = vpop.permute.xlu0 %6902
    %6904 = vrot.lane.b32.xlu0 %v6863, 64
    %v6905 = vpop.permute.xlu0 %6904
    %6906 = vrot.lane.b32.xlu0 %v6864, 64
    %v6907 = vpop.permute.xlu0 %6906
    %6908 = vrot.lane.b32.xlu0 %v6865, 64
    %v6909 = vpop.permute.xlu0 %6908
    %6910 = vrot.lane.b32.xlu0 %v6866, 64
    %v6911 = vpop.permute.xlu0 %6910
    %6912 = vrot.lane.b32.xlu0 %v6867, 64
    %v6913 = vpop.permute.xlu0 %6912
    %6914 = vrot.lane.b32.xlu0 %v6868, 64
    %v6915 = vpop.permute.xlu0 %6914
    %6916 = vrot.lane.b32.xlu0 %v6869, 64
    %v6917 = vpop.permute.xlu0 %6916
    %v6926 = vsel %vm6726, %v6862, %v6879
    %v6927 = vsel %vm6726, %v6863, %v6881
    %v6928 = vsel %vm6726, %v6864, %v6883
    %v6929 = vsel %vm6726, %v6865, %v6885
    %v6930 = vsel %vm6726, %v6866, %v6887
    %v6931 = vsel %vm6726, %v6867, %v6889
    %v6932 = vsel %vm6726, %v6868, %v6891
    %v6933 = vsel %vm6726, %v6869, %v6893
    %vm6934 = vcmask 523264
    %v6935 = vsel %vm6934, %v6926, %v6879
    %v6936 = vsel %vm6934, %v6927, %v6881
    %v6937 = vsel %vm6934, %v6928, %v6883
    %v6938 = vsel %vm6934, %v6929, %v6885
    %v6939 = vsel %vm6934, %v6930, %v6887
    %v6940 = vsel %vm6934, %v6931, %v6889
    %v6941 = vsel %vm6934, %v6932, %v6891
    %v6942 = vsel %vm6934, %v6933, %v6893
    %vm6943 = vcmask 785408
    %v6944 = vsel %vm6943, %v6935, %v6903
    %v6945 = vsel %vm6943, %v6936, %v6905
    %v6946 = vsel %vm6943, %v6937, %v6907
    %v6947 = vsel %vm6943, %v6938, %v6909
    %v6948 = vsel %vm6943, %v6939, %v6911
    %v6949 = vsel %vm6943, %v6940, %v6913
    %v6950 = vsel %vm6943, %v6941, %v6915
    %v6951 = vsel %vm6943, %v6942, %v6917
    %6952 = vst [vmem:[#allocation5] sm:$0xff] %v6944
    %6953 = vst [vmem:[#allocation5 + $0x8] sm:$0xff] %v6945
    %6954 = vst [vmem:[#allocation5 + $0x10] sm:$0xff] %v6946
    %6955 = vst [vmem:[#allocation5 + $0x18] sm:$0xff] %v6947
    %6956 = vst [vmem:[#allocation5 + $0x20] sm:$0xff] %v6948
    %6957 = vst [vmem:[#allocation5 + $0x28] sm:$0xff] %v6949
    %6958 = vst [vmem:[#allocation5 + $0x30] sm:$0xff] %v6950
    %6959 = vst [vmem:[#allocation5 + $0x38] sm:$0xff] %v6951
    // Predicated region
    $region10: #{upsample_nearest.1} parent=1 // pred_check
      _
    $region11: #{upsample_nearest.1} parent=1 // pred_check_branch
      %6961 = sbr.rel (0) target = $region13
    $region12: #{upsample_nearest.1} parent=1 // pred_region
      %s6963 = ssub.s32 1024, 1024
      %6964 = vsyncadd [#allocation4], %s6963
      %s6965 = sshll.u32 [#allocation5], 4
      %s6966 = int_to_ptr.vmem [resolvable:$true] %s6965
      %6971 = dma.vmem_to_hbm [thread:$0]  %s6966, 1024, %s1, [#allocation4], 128, 128, 8
    $region13: #{upsample_nearest.1} parent=1 // pred_fallthru
      _
    // Predicated region
    $region14: #{upsample_nearest.1} parent=1 // pred_check
      _
    $region15: #{upsample_nearest.1} parent=1 // pred_check_branch
      %6973 = sbr.rel (0) target = $region17
    $region16: #{upsample_nearest.1} parent=1 // pred_region
      %6974 = dma.done [#allocation4], 1024
    $region17: #{upsample_nearest.1} parent=1 // pred_fallthru
      _
    %6975 = vsyncpa [#allocation3], 1
    %6976 = vsyncpa [#allocation4], 1

</llo_original>
